<compile_context>
chip_gen: v6e
topology: v6e:2x2x1
jax: 0.10.0
libtpu: 0.0.40
codegen_flags: <defaults>
</compile_context>

<pallas_src>
import functools

import jax
import jax.numpy as jnp
from jax import lax
from jax.experimental import pallas as pl
from jax.experimental.pallas import tpu as pltpu

# ----------------------- small, module-consistent sizes -----------------------
B = 2            # batch_size
S = 8            # encoder seq_len
T = S + 1        # decoder seq_len (max_seq_len + 1)
V = 16           # word_vocab_size
VPAD = 128       # lane-dense padded vocab dim for the logits store
E = 32           # word_embed_size
H_ENC = 32       # encoder_rnn_size
H_DEC = 32       # decoder_rnn_size
L = 16           # latent_variable_size

_VMEM = pl.BlockSpec(memory_space=pltpu.MemorySpace.VMEM)
_F32 = jnp.float32
_BF16 = jnp.bfloat16


# ------------------------------ fused kernel ----------------------------------
def _lstm_cell(g, c):
    """g: [B, 4H] pre-activation gates (PyTorch order i, f, g, o); c: [B, H].

    At B=2 the gates [2, 128] fit one vreg, so full-width sigmoid/tanh is free.
    If B is ever raised to >= 8, slice gates before the activations instead.
    """
    H = c.shape[-1]
    sg = jax.nn.sigmoid(g)
    tg = jnp.tanh(g)
    i = sg[:, 0 * H:1 * H]
    f = sg[:, 1 * H:2 * H]
    gg = tg[:, 2 * H:3 * H]
    o = sg[:, 3 * H:4 * H]
    c_new = f * c + i * gg
    h_new = o * jnp.tanh(c_new)
    return h_new, c_new


def _make_rvae_kernel(with_dropout: bool):
    """Builds the fused kernel; `with_dropout` selects the unfolded decoder
    embedding path (dropout acts on the E-dim embedding, so the embed@W_ih
    fold is only exact when drop_prob == 0)."""

    def kernel(*refs):
        if with_dropout:
            (enc_ids_ref, dec_ids_ref, eps_ref, h0_ref, c0_ref, dmask_ref,
             t_enc_ref, b_enc_ref, whh_f_ref, whh_b_ref,
             w_lat_ref, b_lat_ref,
             embed_ref, wih_de_ref, b_d_ref, wih_dz_ref, whh_d_ref,
             wfc_ref, bfc_ref,
             logits_ref, hN_ref, cN_ref, kld_ref, z_ref, h_all) = refs
        else:
            (enc_ids_ref, dec_ids_ref, eps_ref, h0_ref, c0_ref,
             t_enc_ref, b_enc_ref, whh_f_ref, whh_b_ref,
             w_lat_ref, b_lat_ref,
             t_dec_ref, b_d_ref, wih_dz_ref, whh_d_ref,
             wfc_ref, bfc_ref,
             logits_ref, hN_ref, cN_ref, kld_ref, z_ref, h_all) = refs

        G = 4 * H_ENC

        # ------------------------------ encoder -------------------------------
        # Embedding folded into the fused fwd|bwd gate table: one 256-wide
        # one-hot matmul produces both directions' hoisted input projections.
        # TODO(synk): token ids outside [0, V) map to an all-zero embedding
        #             row here instead of raising like nn.Embedding would.
        oh_e = (enc_ids_ref[...] ==
                lax.broadcasted_iota(jnp.int32, (S * B, V), 1)).astype(_BF16)
        gx = jnp.dot(oh_e, t_enc_ref[...],
                     preferred_element_type=_F32) + b_enc_ref[...]      # [S*B, 8H]
        whh_f = whh_f_ref[...]
        whh_b = whh_b_ref[...]

        hf = jnp.zeros((B, H_ENC), _F32)
        cf = jnp.zeros((B, H_ENC), _F32)
        hb = jnp.zeros((B, H_ENC), _F32)
        cb = jnp.zeros((B, H_ENC), _F32)
        # fully unrolled; fwd & bwd directions interleaved (independent MXU pushes)
        for t in range(S):
            u = S - 1 - t
            gf = gx[t * B:(t + 1) * B, 0:G] + jnp.dot(
                hf.astype(_BF16), whh_f, preferred_element_type=_F32)
            gb = gx[u * B:(u + 1) * B, G:2 * G] + jnp.dot(
                hb.astype(_BF16), whh_b, preferred_element_type=_F32)
            hf, cf = _lstm_cell(gf, cf)
            hb, cb = _lstm_cell(gb, cb)

        # kefirski-style RVAE encoder context: concat of the two final cell states.
        ctx = jnp.concatenate([cf, cb], axis=1)                          # [B, 2H] f32

        # ------------------------------ latent ---------------------------------
        mu_lv = jnp.dot(ctx.astype(_BF16), w_lat_ref[...],
                        preferred_element_type=_F32) + b_lat_ref[...]    # [B, 2L]
        mu = mu_lv[:, 0:L]
        logvar = mu_lv[:, L:2 * L]
        std = jnp.exp(0.5 * logvar)
        z = jnp.tanh(eps_ref[...] * std + mu)                            # enc_activation == 'tanh'
        z_ref[...] = z
        per_ex = -0.5 * jnp.sum(logvar - mu * mu - jnp.exp(logvar) + 1.0,
                                axis=1, keepdims=True)                   # [B, 1]
        kld_ref[...] = jnp.mean(per_ex, axis=0, keepdims=True)           # [1, 1]

        # ------------------------------ decoder --------------------------------
        oh_d = (dec_ids_ref[...] ==
                lax.broadcasted_iota(jnp.int32, (T * B, V), 1)).astype(_BF16)
        if with_dropout:
            # dropout on embeddings -> cannot use the folded table
            x_d = (jnp.dot(oh_d, embed_ref[...], preferred_element_type=_F32)
                   * dmask_ref[...]).astype(_BF16)                       # [T*B, E]
            gxd = jnp.dot(x_d, wih_de_ref[...],
                          preferred_element_type=_F32) + b_d_ref[...]    # [T*B, 4H]
        else:
            gxd = jnp.dot(oh_d, t_dec_ref[...],
                          preferred_element_type=_F32) + b_d_ref[...]    # [T*B, 4H]
        # z contribution of cat([emb, z]) @ W_ih is step-invariant.
        z_g = jnp.dot(z.astype(_BF16), wih_dz_ref[...],
                      preferred_element_type=_F32)                        # [B, 4H]
        whh_d = whh_d_ref[...]

        h = h0_ref[...]
        c = c0_ref[...]
        for t in range(T):
            g = (gxd[t * B:(t + 1) * B, :] + z_g
                 + jnp.dot(h.astype(_BF16), whh_d, preferred_element_type=_F32))
            h, c = _lstm_cell(g, c)
            h_all[t * B:(t + 1) * B, :] = h                              # time-major scratch
        hN_ref[...] = h
        cN_ref[...] = c

        # vocab projection: ONE matmul over all T*B hidden states, lane-dense
        # (zero-padded to 128 lanes) output store.
        logits_ref[...] = (jnp.dot(h_all[...].astype(_BF16), wfc_ref[...],
                                   preferred_element_type=_F32) + bfc_ref[...])

    return kernel


def _rvae_pallas(enc_ids, dec_ids, eps, h0, c0, w, dmask=None):
    with_dropout = dmask is not None
    common_w = (w['t_enc'], w['b_enc'], w['whh_f'], w['whh_b'],
                w['w_lat'], w['b_lat'])
    if with_dropout:
        args = ((enc_ids, dec_ids, eps, h0, c0, dmask) + common_w
                + (w['embed'], w['wih_de'], w['b_d'], w['wih_dz'], w['whh_d'],
                   w['wfc_p'], w['bfc_p']))
    else:
        args = ((enc_ids, dec_ids, eps, h0, c0) + common_w
                + (w['t_dec'], w['b_d'], w['wih_dz'], w['whh_d'],
                   w['wfc_p'], w['bfc_p']))
    return pl.pallas_call(
        _make_rvae_kernel(with_dropout),
        out_shape=(jax.ShapeDtypeStruct((T * B, VPAD), _F32),   # logits (flat, padded)
                   jax.ShapeDtypeStruct((B, H_DEC), _F32),      # h_n
                   jax.ShapeDtypeStruct((B, H_DEC), _F32),      # c_n
                   jax.ShapeDtypeStruct((1, 1), _F32),          # kld
                   jax.ShapeDtypeStruct((B, L), _F32)),         # z
        in_specs=[_VMEM] * len(args),
        out_specs=(_VMEM,) * 5,
        scratch_shapes=[pltpu.VMEM((T * B, H_DEC), _F32)],
        cost_estimate=pl.CostEstimate(flops=2_000_000, transcendentals=4_000,
                                      bytes_accessed=60_000),
    )(*args)


# ------------------------------ parameter init ---------------------------------
def init_weights(key):
    ks = jax.random.split(key, 16)
    sc = 0.1

    def w(k, shape):
        return sc * jax.random.normal(k, shape, _F32)

    # Base (PyTorch-equivalent) parameters, f32.
    embed = w(ks[0], (V, E))
    wih_f = w(ks[1], (E, 4 * H_ENC))
    whh_f = w(ks[2], (H_ENC, 4 * H_ENC))
    b_f = w(ks[3], (1, 4 * H_ENC))               # b_ih + b_hh combined
    wih_b = w(ks[4], (E, 4 * H_ENC))
    whh_b = w(ks[5], (H_ENC, 4 * H_ENC))
    b_b = w(ks[6], (1, 4 * H_ENC))
    w_mu = w(ks[7], (2 * H_ENC, L))
    b_mu = w(ks[8], (1, L))
    w_lv = w(ks[9], (2 * H_ENC, L))
    b_lv = w(ks[10], (1, L))
    wih_d = w(ks[11], (E + L, 4 * H_DEC))
    whh_d = w(ks[12], (H_DEC, 4 * H_DEC))
    b_d = w(ks[13], (1, 4 * H_DEC))
    wfc = w(ks[14], (H_DEC, V))
    bfc = w(ks[15], (1, V))

    # Host-side folded / fused tables (bf16 for MXU; biases stay f32).
    t_enc = jnp.concatenate([embed @ wih_f, embed @ wih_b], axis=1).astype(_BF16)  # [V, 8H]
    b_enc = jnp.concatenate([b_f, b_b], axis=1)                                    # [1, 8H]
    w_lat = jnp.concatenate([w_mu, w_lv], axis=1).astype(_BF16)                    # [2H, 2L]
    b_lat = jnp.concatenate([b_mu, b_lv], axis=1)                                  # [1, 2L]
    t_dec = (embed @ wih_d[:E]).astype(_BF16)                                      # [V, 4H] (drop_prob==0 path)
    wfc_p = jnp.zeros((H_DEC, VPAD), _F32).at[:, :V].set(wfc).astype(_BF16)        # lane-dense
    bfc_p = jnp.zeros((1, VPAD), _F32).at[:, :V].set(bfc)

    return {
        # fused / folded tables
        't_enc': t_enc, 'b_enc': b_enc,
        'whh_f': whh_f.astype(_BF16), 'whh_b': whh_b.astype(_BF16),
        'w_lat': w_lat, 'b_lat': b_lat,
        't_dec': t_dec, 'b_d': b_d,
        'wih_dz': wih_d[E:].astype(_BF16), 'whh_d': whh_d.astype(_BF16),
        'wfc_p': wfc_p, 'bfc_p': bfc_p,
        # unfolded pieces needed only for the drop_prob > 0 kernel variant
        'embed': embed.astype(_BF16), 'wih_de': wih_d[:E].astype(_BF16),
    }


# --------------------------------- forward -------------------------------------
@functools.partial(jax.jit, static_argnames=('drop_prob',))
def rvae_forward(weights, encoder_word_input, decoder_word_input, noise_key,
                 drop_prob=0.0, initial_state=None):
    k_eps, k_drop = jax.random.split(noise_key)
    eps = jax.random.normal(k_eps, (B, L), _F32)                  # t.randn(...)

    # time-major flat index columns (row n = t*B + b) so the kernel slices
    # contiguous [B, 4H] rows per recurrent step.
    enc_ids = encoder_word_input.astype(jnp.int32).T.reshape(S * B, 1)
    dec_ids = decoder_word_input.astype(jnp.int32).T.reshape(T * B, 1)

    if drop_prob > 0.0:
        keep = jax.random.bernoulli(k_drop, 1.0 - drop_prob, (T * B, E))
        dmask = keep.astype(_F32) / (1.0 - drop_prob)
    else:
        dmask = None                                              # no-dropout kernel variant

    if initial_state is None:
        h0 = jnp.zeros((B, H_DEC), _F32)
        c0 = jnp.zeros((B, H_DEC), _F32)
    else:
        h0 = initial_state[0].reshape(B, H_DEC)
        c0 = initial_state[1].reshape(B, H_DEC)

    logits_flat, hN, cN, kld2d, z = _rvae_pallas(enc_ids, dec_ids, eps, h0, c0,
                                                 weights, dmask)
    # layout plumbing on a tiny array: [T*B, 128] -> [B, T, V]
    logits = logits_flat.reshape(T, B, VPAD).transpose(1, 0, 2)[:, :, :V]
    final_state = (hN[None, ...], cN[None, ...])                  # ([1,B,H], [1,B,H])
    return logits, final_state, kld2d[0, 0], z


# TODO(synk): self.sample / trainer / validater / reconstructor are host-side
#             autoregressive / training loops and are intentionally not
#             reproduced in-kernel.  The MINIHACK embedding branch and the
#             non-'tanh' enc_activation variants are config options not used
#             by this forward configuration.

if __name__ == "__main__":
    key = jax.random.PRNGKey(0)
    k_w, k_enc, k_dec, k_noise = jax.random.split(key, 4)

    weights = init_weights(k_w)
    encoder_word_input = jax.random.randint(k_enc, (B, S), 0, V, dtype=jnp.int32)
    decoder_word_input = jax.random.randint(k_dec, (B, T), 0, V, dtype=jnp.int32)

    # inference path (drop_prob == 0: folded decoder table, no dmask input)
    logits, final_state, kld, z = rvae_forward(
        weights, encoder_word_input, decoder_word_input, k_noise, drop_prob=0.0)
    jax.block_until_ready((logits, final_state, kld, z))
    assert logits.shape == (B, T, V)
    assert final_state[0].shape == (1, B, H_DEC) and final_state[1].shape == (1, B, H_DEC)
    assert kld.shape == () and z.shape == (B, L)
    assert bool(jnp.isfinite(logits).all()) and bool(jnp.isfinite(kld))

    # training path (drop_prob > 0: unfolded decoder embedding + dropout mask)
    logits_d, final_state_d, kld_d, z_d = rvae_forward(
        weights, encoder_word_input, decoder_word_input, k_noise, drop_prob=0.3)
    jax.block_until_ready((logits_d, final_state_d, kld_d, z_d))
    assert logits_d.shape == (B, T, V)
    assert bool(jnp.isfinite(logits_d).all()) and bool(jnp.isfinite(kld_d))

    print("KERNEL_OK")
</pallas_src>

<mosaic_0001>
module attributes {stable_mosaic.version = 11 : i64} {
  func.func @kernel(%arg0: memref<16x1xi32, #tpu.memory_space<vmem>>, %arg1: memref<18x1xi32, #tpu.memory_space<vmem>>, %arg2: memref<2x16xf32, #tpu.memory_space<vmem>>, %arg3: memref<2x32xf32, #tpu.memory_space<vmem>>, %arg4: memref<2x32xf32, #tpu.memory_space<vmem>>, %arg5: memref<16x256xbf16, #tpu.memory_space<vmem>>, %arg6: memref<1x256xf32, #tpu.memory_space<vmem>>, %arg7: memref<32x128xbf16, #tpu.memory_space<vmem>>, %arg8: memref<32x128xbf16, #tpu.memory_space<vmem>>, %arg9: memref<64x32xbf16, #tpu.memory_space<vmem>>, %arg10: memref<1x32xf32, #tpu.memory_space<vmem>>, %arg11: memref<16x128xbf16, #tpu.memory_space<vmem>>, %arg12: memref<1x128xf32, #tpu.memory_space<vmem>>, %arg13: memref<16x128xbf16, #tpu.memory_space<vmem>>, %arg14: memref<32x128xbf16, #tpu.memory_space<vmem>>, %arg15: memref<32x128xbf16, #tpu.memory_space<vmem>>, %arg16: memref<1x128xf32, #tpu.memory_space<vmem>>, %arg17: memref<18x128xf32, #tpu.memory_space<vmem>>, %arg18: memref<2x32xf32, #tpu.memory_space<vmem>>, %arg19: memref<2x32xf32, #tpu.memory_space<vmem>>, %arg20: memref<1x1xf32, #tpu.memory_space<vmem>>, %arg21: memref<2x16xf32, #tpu.memory_space<vmem>>, %arg22: memref<18x32xf32, #tpu.memory_space<vmem>>) attributes {dimension_semantics = [], scalar_prefetch = 0 : i64, scratch_operands = 1 : i64, tpu.core_type = #tpu.core_type<tc>} {
    %c0 = arith.constant 0 : index
    %c0_0 = arith.constant 0 : index
    %0 = vector.load %arg0[%c0, %c0_0] : memref<16x1xi32, #tpu.memory_space<vmem>>, vector<16x1xi32>
    %1 = tpu.iota {dimensions = array<i32: 1>} : vector<16x16xi32>
    %2 = vector.broadcast %0 : vector<16x1xi32> to vector<16x16xi32>
    %3 = arith.cmpi eq, %2, %1 : vector<16x16xi32>
    %4 = arith.extui %3 : vector<16x16xi1> to vector<16x16xi32>
    %5 = arith.sitofp %4 : vector<16x16xi32> to vector<16x16xf32>
    %6 = arith.truncf %5 : vector<16x16xf32> to vector<16x16xbf16>
    %c0_1 = arith.constant 0 : index
    %c0_2 = arith.constant 0 : index
    %7 = vector.load %arg5[%c0_1, %c0_2] : memref<16x256xbf16, #tpu.memory_space<vmem>>, vector<16x256xbf16>
    %cst = arith.constant dense<0.000000e+00> : vector<16x256xf32>
    %8 = tpu.matmul %6, %7, %cst {dimension_numbers = #tpu.dot_dimension_numbers<[1], [0], [0], [1], [0, 0, 1, 1], [], []>} : vector<16x16xbf16>, vector<16x256xbf16>, vector<16x256xf32> -> vector<16x256xf32>
    %c0_3 = arith.constant 0 : index
    %c0_4 = arith.constant 0 : index
    %9 = vector.load %arg6[%c0_3, %c0_4] : memref<1x256xf32, #tpu.memory_space<vmem>>, vector<1x256xf32>
    %10 = vector.broadcast %9 : vector<1x256xf32> to vector<16x256xf32>
    %11 = arith.addf %8, %10 : vector<16x256xf32>
    %c0_5 = arith.constant 0 : index
    %c0_6 = arith.constant 0 : index
    %12 = vector.load %arg7[%c0_5, %c0_6] : memref<32x128xbf16, #tpu.memory_space<vmem>>, vector<32x128xbf16>
    %c0_7 = arith.constant 0 : index
    %c0_8 = arith.constant 0 : index
    %13 = vector.load %arg8[%c0_7, %c0_8] : memref<32x128xbf16, #tpu.memory_space<vmem>>, vector<32x128xbf16>
    %cst_9 = arith.constant 0.000000e+00 : f32
    %14 = vector.broadcast %cst_9 : f32 to vector<2x32xf32>
    %cst_10 = arith.constant 0.000000e+00 : f32
    %15 = vector.broadcast %cst_10 : f32 to vector<2x32xf32>
    %cst_11 = arith.constant 0.000000e+00 : f32
    %16 = vector.broadcast %cst_11 : f32 to vector<2x32xf32>
    %cst_12 = arith.constant 0.000000e+00 : f32
    %17 = vector.broadcast %cst_12 : f32 to vector<2x32xf32>
    %18 = vector.extract_strided_slice %11 {offsets = [0, 0], sizes = [2, 128], strides = [1, 1]} : vector<16x256xf32> to vector<2x128xf32>
    %19 = arith.truncf %14 : vector<2x32xf32> to vector<2x32xbf16>
    %cst_13 = arith.constant dense<0.000000e+00> : vector<2x128xf32>
    %20 = tpu.matmul %19, %12, %cst_13 {dimension_numbers = #tpu.dot_dimension_numbers<[1], [0], [0], [1], [0, 0, 1, 1], [], []>} : vector<2x32xbf16>, vector<32x128xbf16>, vector<2x128xf32> -> vector<2x128xf32>
    %21 = arith.addf %18, %20 : vector<2x128xf32>
    %22 = vector.extract_strided_slice %11 {offsets = [14, 128], sizes = [2, 128], strides = [1, 1]} : vector<16x256xf32> to vector<2x128xf32>
    %23 = arith.truncf %16 : vector<2x32xf32> to vector<2x32xbf16>
    %cst_14 = arith.constant dense<0.000000e+00> : vector<2x128xf32>
    %24 = tpu.matmul %23, %13, %cst_14 {dimension_numbers = #tpu.dot_dimension_numbers<[1], [0], [0], [1], [0, 0, 1, 1], [], []>} : vector<2x32xbf16>, vector<32x128xbf16>, vector<2x128xf32> -> vector<2x128xf32>
    %25 = arith.addf %22, %24 : vector<2x128xf32>
    %26 = arith.negf %21 : vector<2x128xf32>
    %27 = math.exp %26 : vector<2x128xf32>
    %cst_15 = arith.constant 1.000000e+00 : f32
    %28 = vector.broadcast %cst_15 : f32 to vector<2x128xf32>
    %29 = arith.addf %28, %27 : vector<2x128xf32>
    %30 = arith.divf %28, %29 : vector<2x128xf32>
    %31 = math.tanh %21 : vector<2x128xf32>
    %32 = vector.extract_strided_slice %30 {offsets = [0, 0], sizes = [2, 32], strides = [1, 1]} : vector<2x128xf32> to vector<2x32xf32>
    %33 = vector.extract_strided_slice %30 {offsets = [0, 32], sizes = [2, 32], strides = [1, 1]} : vector<2x128xf32> to vector<2x32xf32>
    %34 = vector.extract_strided_slice %31 {offsets = [0, 64], sizes = [2, 32], strides = [1, 1]} : vector<2x128xf32> to vector<2x32xf32>
    %35 = vector.extract_strided_slice %30 {offsets = [0, 96], sizes = [2, 32], strides = [1, 1]} : vector<2x128xf32> to vector<2x32xf32>
    %36 = arith.mulf %33, %15 : vector<2x32xf32>
    %37 = arith.mulf %32, %34 : vector<2x32xf32>
    %38 = arith.addf %36, %37 : vector<2x32xf32>
    %39 = math.tanh %38 : vector<2x32xf32>
    %40 = arith.mulf %35, %39 : vector<2x32xf32>
    %41 = arith.negf %25 : vector<2x128xf32>
    %42 = math.exp %41 : vector<2x128xf32>
    %cst_16 = arith.constant 1.000000e+00 : f32
    %43 = vector.broadcast %cst_16 : f32 to vector<2x128xf32>
    %44 = arith.addf %43, %42 : vector<2x128xf32>
    %45 = arith.divf %43, %44 : vector<2x128xf32>
    %46 = math.tanh %25 : vector<2x128xf32>
    %47 = vector.extract_strided_slice %45 {offsets = [0, 0], sizes = [2, 32], strides = [1, 1]} : vector<2x128xf32> to vector<2x32xf32>
    %48 = vector.extract_strided_slice %45 {offsets = [0, 32], sizes = [2, 32], strides = [1, 1]} : vector<2x128xf32> to vector<2x32xf32>
    %49 = vector.extract_strided_slice %46 {offsets = [0, 64], sizes = [2, 32], strides = [1, 1]} : vector<2x128xf32> to vector<2x32xf32>
    %50 = vector.extract_strided_slice %45 {offsets = [0, 96], sizes = [2, 32], strides = [1, 1]} : vector<2x128xf32> to vector<2x32xf32>
    %51 = arith.mulf %48, %17 : vector<2x32xf32>
    %52 = arith.mulf %47, %49 : vector<2x32xf32>
    %53 = arith.addf %51, %52 : vector<2x32xf32>
    %54 = math.tanh %53 : vector<2x32xf32>
    %55 = arith.mulf %50, %54 : vector<2x32xf32>
    %56 = vector.extract_strided_slice %11 {offsets = [2, 0], sizes = [2, 128], strides = [1, 1]} : vector<16x256xf32> to vector<2x128xf32>
    %57 = arith.truncf %40 : vector<2x32xf32> to vector<2x32xbf16>
    %cst_17 = arith.constant dense<0.000000e+00> : vector<2x128xf32>
    %58 = tpu.matmul %57, %12, %cst_17 {dimension_numbers = #tpu.dot_dimension_numbers<[1], [0], [0], [1], [0, 0, 1, 1], [], []>} : vector<2x32xbf16>, vector<32x128xbf16>, vector<2x128xf32> -> vector<2x128xf32>
    %59 = arith.addf %56, %58 : vector<2x128xf32>
    %60 = vector.extract_strided_slice %11 {offsets = [12, 128], sizes = [2, 128], strides = [1, 1]} : vector<16x256xf32> to vector<2x128xf32>
    %61 = arith.truncf %55 : vector<2x32xf32> to vector<2x32xbf16>
    %cst_18 = arith.constant dense<0.000000e+00> : vector<2x128xf32>
    %62 = tpu.matmul %61, %13, %cst_18 {dimension_numbers = #tpu.dot_dimension_numbers<[1], [0], [0], [1], [0, 0, 1, 1], [], []>} : vector<2x32xbf16>, vector<32x128xbf16>, vector<2x128xf32> -> vector<2x128xf32>
    %63 = arith.addf %60, %62 : vector<2x128xf32>
    %64 = arith.negf %59 : vector<2x128xf32>
    %65 = math.exp %64 : vector<2x128xf32>
    %cst_19 = arith.constant 1.000000e+00 : f32
    %66 = vector.broadcast %cst_19 : f32 to vector<2x128xf32>
    %67 = arith.addf %66, %65 : vector<2x128xf32>
    %68 = arith.divf %66, %67 : vector<2x128xf32>
    %69 = math.tanh %59 : vector<2x128xf32>
    %70 = vector.extract_strided_slice %68 {offsets = [0, 0], sizes = [2, 32], strides = [1, 1]} : vector<2x128xf32> to vector<2x32xf32>
    %71 = vector.extract_strided_slice %68 {offsets = [0, 32], sizes = [2, 32], strides = [1, 1]} : vector<2x128xf32> to vector<2x32xf32>
    %72 = vector.extract_strided_slice %69 {offsets = [0, 64], sizes = [2, 32], strides = [1, 1]} : vector<2x128xf32> to vector<2x32xf32>
    %73 = vector.extract_strided_slice %68 {offsets = [0, 96], sizes = [2, 32], strides = [1, 1]} : vector<2x128xf32> to vector<2x32xf32>
    %74 = arith.mulf %71, %38 : vector<2x32xf32>
    %75 = arith.mulf %70, %72 : vector<2x32xf32>
    %76 = arith.addf %74, %75 : vector<2x32xf32>
    %77 = math.tanh %76 : vector<2x32xf32>
    %78 = arith.mulf %73, %77 : vector<2x32xf32>
    %79 = arith.negf %63 : vector<2x128xf32>
    %80 = math.exp %79 : vector<2x128xf32>
    %cst_20 = arith.constant 1.000000e+00 : f32
    %81 = vector.broadcast %cst_20 : f32 to vector<2x128xf32>
    %82 = arith.addf %81, %80 : vector<2x128xf32>
    %83 = arith.divf %81, %82 : vector<2x128xf32>
    %84 = math.tanh %63 : vector<2x128xf32>
    %85 = vector.extract_strided_slice %83 {offsets = [0, 0], sizes = [2, 32], strides = [1, 1]} : vector<2x128xf32> to vector<2x32xf32>
    %86 = vector.extract_strided_slice %83 {offsets = [0, 32], sizes = [2, 32], strides = [1, 1]} : vector<2x128xf32> to vector<2x32xf32>
    %87 = vector.extract_strided_slice %84 {offsets = [0, 64], sizes = [2, 32], strides = [1, 1]} : vector<2x128xf32> to vector<2x32xf32>
    %88 = vector.extract_strided_slice %83 {offsets = [0, 96], sizes = [2, 32], strides = [1, 1]} : vector<2x128xf32> to vector<2x32xf32>
    %89 = arith.mulf %86, %53 : vector<2x32xf32>
    %90 = arith.mulf %85, %87 : vector<2x32xf32>
    %91 = arith.addf %89, %90 : vector<2x32xf32>
    %92 = math.tanh %91 : vector<2x32xf32>
    %93 = arith.mulf %88, %92 : vector<2x32xf32>
    %94 = vector.extract_strided_slice %11 {offsets = [4, 0], sizes = [2, 128], strides = [1, 1]} : vector<16x256xf32> to vector<2x128xf32>
    %95 = arith.truncf %78 : vector<2x32xf32> to vector<2x32xbf16>
    %cst_21 = arith.constant dense<0.000000e+00> : vector<2x128xf32>
    %96 = tpu.matmul %95, %12, %cst_21 {dimension_numbers = #tpu.dot_dimension_numbers<[1], [0], [0], [1], [0, 0, 1, 1], [], []>} : vector<2x32xbf16>, vector<32x128xbf16>, vector<2x128xf32> -> vector<2x128xf32>
    %97 = arith.addf %94, %96 : vector<2x128xf32>
    %98 = vector.extract_strided_slice %11 {offsets = [10, 128], sizes = [2, 128], strides = [1, 1]} : vector<16x256xf32> to vector<2x128xf32>
    %99 = arith.truncf %93 : vector<2x32xf32> to vector<2x32xbf16>
    %cst_22 = arith.constant dense<0.000000e+00> : vector<2x128xf32>
    %100 = tpu.matmul %99, %13, %cst_22 {dimension_numbers = #tpu.dot_dimension_numbers<[1], [0], [0], [1], [0, 0, 1, 1], [], []>} : vector<2x32xbf16>, vector<32x128xbf16>, vector<2x128xf32> -> vector<2x128xf32>
    %101 = arith.addf %98, %100 : vector<2x128xf32>
    %102 = arith.negf %97 : vector<2x128xf32>
    %103 = math.exp %102 : vector<2x128xf32>
    %cst_23 = arith.constant 1.000000e+00 : f32
    %104 = vector.broadcast %cst_23 : f32 to vector<2x128xf32>
    %105 = arith.addf %104, %103 : vector<2x128xf32>
    %106 = arith.divf %104, %105 : vector<2x128xf32>
    %107 = math.tanh %97 : vector<2x128xf32>
    %108 = vector.extract_strided_slice %106 {offsets = [0, 0], sizes = [2, 32], strides = [1, 1]} : vector<2x128xf32> to vector<2x32xf32>
    %109 = vector.extract_strided_slice %106 {offsets = [0, 32], sizes = [2, 32], strides = [1, 1]} : vector<2x128xf32> to vector<2x32xf32>
    %110 = vector.extract_strided_slice %107 {offsets = [0, 64], sizes = [2, 32], strides = [1, 1]} : vector<2x128xf32> to vector<2x32xf32>
    %111 = vector.extract_strided_slice %106 {offsets = [0, 96], sizes = [2, 32], strides = [1, 1]} : vector<2x128xf32> to vector<2x32xf32>
    %112 = arith.mulf %109, %76 : vector<2x32xf32>
    %113 = arith.mulf %108, %110 : vector<2x32xf32>
    %114 = arith.addf %112, %113 : vector<2x32xf32>
    %115 = math.tanh %114 : vector<2x32xf32>
    %116 = arith.mulf %111, %115 : vector<2x32xf32>
    %117 = arith.negf %101 : vector<2x128xf32>
    %118 = math.exp %117 : vector<2x128xf32>
    %cst_24 = arith.constant 1.000000e+00 : f32
    %119 = vector.broadcast %cst_24 : f32 to vector<2x128xf32>
    %120 = arith.addf %119, %118 : vector<2x128xf32>
    %121 = arith.divf %119, %120 : vector<2x128xf32>
    %122 = math.tanh %101 : vector<2x128xf32>
    %123 = vector.extract_strided_slice %121 {offsets = [0, 0], sizes = [2, 32], strides = [1, 1]} : vector<2x128xf32> to vector<2x32xf32>
    %124 = vector.extract_strided_slice %121 {offsets = [0, 32], sizes = [2, 32], strides = [1, 1]} : vector<2x128xf32> to vector<2x32xf32>
    %125 = vector.extract_strided_slice %122 {offsets = [0, 64], sizes = [2, 32], strides = [1, 1]} : vector<2x128xf32> to vector<2x32xf32>
    %126 = vector.extract_strided_slice %121 {offsets = [0, 96], sizes = [2, 32], strides = [1, 1]} : vector<2x128xf32> to vector<2x32xf32>
    %127 = arith.mulf %124, %91 : vector<2x32xf32>
    %128 = arith.mulf %123, %125 : vector<2x32xf32>
    %129 = arith.addf %127, %128 : vector<2x32xf32>
    %130 = math.tanh %129 : vector<2x32xf32>
    %131 = arith.mulf %126, %130 : vector<2x32xf32>
    %132 = vector.extract_strided_slice %11 {offsets = [6, 0], sizes = [2, 128], strides = [1, 1]} : vector<16x256xf32> to vector<2x128xf32>
    %133 = arith.truncf %116 : vector<2x32xf32> to vector<2x32xbf16>
    %cst_25 = arith.constant dense<0.000000e+00> : vector<2x128xf32>
    %134 = tpu.matmul %133, %12, %cst_25 {dimension_numbers = #tpu.dot_dimension_numbers<[1], [0], [0], [1], [0, 0, 1, 1], [], []>} : vector<2x32xbf16>, vector<32x128xbf16>, vector<2x128xf32> -> vector<2x128xf32>
    %135 = arith.addf %132, %134 : vector<2x128xf32>
    %136 = vector.extract_strided_slice %11 {offsets = [8, 128], sizes = [2, 128], strides = [1, 1]} : vector<16x256xf32> to vector<2x128xf32>
    %137 = arith.truncf %131 : vector<2x32xf32> to vector<2x32xbf16>
    %cst_26 = arith.constant dense<0.000000e+00> : vector<2x128xf32>
    %138 = tpu.matmul %137, %13, %cst_26 {dimension_numbers = #tpu.dot_dimension_numbers<[1], [0], [0], [1], [0, 0, 1, 1], [], []>} : vector<2x32xbf16>, vector<32x128xbf16>, vector<2x128xf32> -> vector<2x128xf32>
    %139 = arith.addf %136, %138 : vector<2x128xf32>
    %140 = arith.negf %135 : vector<2x128xf32>
    %141 = math.exp %140 : vector<2x128xf32>
    %cst_27 = arith.constant 1.000000e+00 : f32
    %142 = vector.broadcast %cst_27 : f32 to vector<2x128xf32>
    %143 = arith.addf %142, %141 : vector<2x128xf32>
    %144 = arith.divf %142, %143 : vector<2x128xf32>
    %145 = math.tanh %135 : vector<2x128xf32>
    %146 = vector.extract_strided_slice %144 {offsets = [0, 0], sizes = [2, 32], strides = [1, 1]} : vector<2x128xf32> to vector<2x32xf32>
    %147 = vector.extract_strided_slice %144 {offsets = [0, 32], sizes = [2, 32], strides = [1, 1]} : vector<2x128xf32> to vector<2x32xf32>
    %148 = vector.extract_strided_slice %145 {offsets = [0, 64], sizes = [2, 32], strides = [1, 1]} : vector<2x128xf32> to vector<2x32xf32>
    %149 = vector.extract_strided_slice %144 {offsets = [0, 96], sizes = [2, 32], strides = [1, 1]} : vector<2x128xf32> to vector<2x32xf32>
    %150 = arith.mulf %147, %114 : vector<2x32xf32>
    %151 = arith.mulf %146, %148 : vector<2x32xf32>
    %152 = arith.addf %150, %151 : vector<2x32xf32>
    %153 = math.tanh %152 : vector<2x32xf32>
    %154 = arith.mulf %149, %153 : vector<2x32xf32>
    %155 = arith.negf %139 : vector<2x128xf32>
    %156 = math.exp %155 : vector<2x128xf32>
    %cst_28 = arith.constant 1.000000e+00 : f32
    %157 = vector.broadcast %cst_28 : f32 to vector<2x128xf32>
    %158 = arith.addf %157, %156 : vector<2x128xf32>
    %159 = arith.divf %157, %158 : vector<2x128xf32>
    %160 = math.tanh %139 : vector<2x128xf32>
    %161 = vector.extract_strided_slice %159 {offsets = [0, 0], sizes = [2, 32], strides = [1, 1]} : vector<2x128xf32> to vector<2x32xf32>
    %162 = vector.extract_strided_slice %159 {offsets = [0, 32], sizes = [2, 32], strides = [1, 1]} : vector<2x128xf32> to vector<2x32xf32>
    %163 = vector.extract_strided_slice %160 {offsets = [0, 64], sizes = [2, 32], strides = [1, 1]} : vector<2x128xf32> to vector<2x32xf32>
    %164 = vector.extract_strided_slice %159 {offsets = [0, 96], sizes = [2, 32], strides = [1, 1]} : vector<2x128xf32> to vector<2x32xf32>
    %165 = arith.mulf %162, %129 : vector<2x32xf32>
    %166 = arith.mulf %161, %163 : vector<2x32xf32>
    %167 = arith.addf %165, %166 : vector<2x32xf32>
    %168 = math.tanh %167 : vector<2x32xf32>
    %169 = arith.mulf %164, %168 : vector<2x32xf32>
    %170 = vector.extract_strided_slice %11 {offsets = [8, 0], sizes = [2, 128], strides = [1, 1]} : vector<16x256xf32> to vector<2x128xf32>
    %171 = arith.truncf %154 : vector<2x32xf32> to vector<2x32xbf16>
    %cst_29 = arith.constant dense<0.000000e+00> : vector<2x128xf32>
    %172 = tpu.matmul %171, %12, %cst_29 {dimension_numbers = #tpu.dot_dimension_numbers<[1], [0], [0], [1], [0, 0, 1, 1], [], []>} : vector<2x32xbf16>, vector<32x128xbf16>, vector<2x128xf32> -> vector<2x128xf32>
    %173 = arith.addf %170, %172 : vector<2x128xf32>
    %174 = vector.extract_strided_slice %11 {offsets = [6, 128], sizes = [2, 128], strides = [1, 1]} : vector<16x256xf32> to vector<2x128xf32>
    %175 = arith.truncf %169 : vector<2x32xf32> to vector<2x32xbf16>
    %cst_30 = arith.constant dense<0.000000e+00> : vector<2x128xf32>
    %176 = tpu.matmul %175, %13, %cst_30 {dimension_numbers = #tpu.dot_dimension_numbers<[1], [0], [0], [1], [0, 0, 1, 1], [], []>} : vector<2x32xbf16>, vector<32x128xbf16>, vector<2x128xf32> -> vector<2x128xf32>
    %177 = arith.addf %174, %176 : vector<2x128xf32>
    %178 = arith.negf %173 : vector<2x128xf32>
    %179 = math.exp %178 : vector<2x128xf32>
    %cst_31 = arith.constant 1.000000e+00 : f32
    %180 = vector.broadcast %cst_31 : f32 to vector<2x128xf32>
    %181 = arith.addf %180, %179 : vector<2x128xf32>
    %182 = arith.divf %180, %181 : vector<2x128xf32>
    %183 = math.tanh %173 : vector<2x128xf32>
    %184 = vector.extract_strided_slice %182 {offsets = [0, 0], sizes = [2, 32], strides = [1, 1]} : vector<2x128xf32> to vector<2x32xf32>
    %185 = vector.extract_strided_slice %182 {offsets = [0, 32], sizes = [2, 32], strides = [1, 1]} : vector<2x128xf32> to vector<2x32xf32>
    %186 = vector.extract_strided_slice %183 {offsets = [0, 64], sizes = [2, 32], strides = [1, 1]} : vector<2x128xf32> to vector<2x32xf32>
    %187 = vector.extract_strided_slice %182 {offsets = [0, 96], sizes = [2, 32], strides = [1, 1]} : vector<2x128xf32> to vector<2x32xf32>
    %188 = arith.mulf %185, %152 : vector<2x32xf32>
    %189 = arith.mulf %184, %186 : vector<2x32xf32>
    %190 = arith.addf %188, %189 : vector<2x32xf32>
    %191 = math.tanh %190 : vector<2x32xf32>
    %192 = arith.mulf %187, %191 : vector<2x32xf32>
    %193 = arith.negf %177 : vector<2x128xf32>
    %194 = math.exp %193 : vector<2x128xf32>
    %cst_32 = arith.constant 1.000000e+00 : f32
    %195 = vector.broadcast %cst_32 : f32 to vector<2x128xf32>
    %196 = arith.addf %195, %194 : vector<2x128xf32>
    %197 = arith.divf %195, %196 : vector<2x128xf32>
    %198 = math.tanh %177 : vector<2x128xf32>
    %199 = vector.extract_strided_slice %197 {offsets = [0, 0], sizes = [2, 32], strides = [1, 1]} : vector<2x128xf32> to vector<2x32xf32>
    %200 = vector.extract_strided_slice %197 {offsets = [0, 32], sizes = [2, 32], strides = [1, 1]} : vector<2x128xf32> to vector<2x32xf32>
    %201 = vector.extract_strided_slice %198 {offsets = [0, 64], sizes = [2, 32], strides = [1, 1]} : vector<2x128xf32> to vector<2x32xf32>
    %202 = vector.extract_strided_slice %197 {offsets = [0, 96], sizes = [2, 32], strides = [1, 1]} : vector<2x128xf32> to vector<2x32xf32>
    %203 = arith.mulf %200, %167 : vector<2x32xf32>
    %204 = arith.mulf %199, %201 : vector<2x32xf32>
    %205 = arith.addf %203, %204 : vector<2x32xf32>
    %206 = math.tanh %205 : vector<2x32xf32>
    %207 = arith.mulf %202, %206 : vector<2x32xf32>
    %208 = vector.extract_strided_slice %11 {offsets = [10, 0], sizes = [2, 128], strides = [1, 1]} : vector<16x256xf32> to vector<2x128xf32>
    %209 = arith.truncf %192 : vector<2x32xf32> to vector<2x32xbf16>
    %cst_33 = arith.constant dense<0.000000e+00> : vector<2x128xf32>
    %210 = tpu.matmul %209, %12, %cst_33 {dimension_numbers = #tpu.dot_dimension_numbers<[1], [0], [0], [1], [0, 0, 1, 1], [], []>} : vector<2x32xbf16>, vector<32x128xbf16>, vector<2x128xf32> -> vector<2x128xf32>
    %211 = arith.addf %208, %210 : vector<2x128xf32>
    %212 = vector.extract_strided_slice %11 {offsets = [4, 128], sizes = [2, 128], strides = [1, 1]} : vector<16x256xf32> to vector<2x128xf32>
    %213 = arith.truncf %207 : vector<2x32xf32> to vector<2x32xbf16>
    %cst_34 = arith.constant dense<0.000000e+00> : vector<2x128xf32>
    %214 = tpu.matmul %213, %13, %cst_34 {dimension_numbers = #tpu.dot_dimension_numbers<[1], [0], [0], [1], [0, 0, 1, 1], [], []>} : vector<2x32xbf16>, vector<32x128xbf16>, vector<2x128xf32> -> vector<2x128xf32>
    %215 = arith.addf %212, %214 : vector<2x128xf32>
    %216 = arith.negf %211 : vector<2x128xf32>
    %217 = math.exp %216 : vector<2x128xf32>
    %cst_35 = arith.constant 1.000000e+00 : f32
    %218 = vector.broadcast %cst_35 : f32 to vector<2x128xf32>
    %219 = arith.addf %218, %217 : vector<2x128xf32>
    %220 = arith.divf %218, %219 : vector<2x128xf32>
    %221 = math.tanh %211 : vector<2x128xf32>
    %222 = vector.extract_strided_slice %220 {offsets = [0, 0], sizes = [2, 32], strides = [1, 1]} : vector<2x128xf32> to vector<2x32xf32>
    %223 = vector.extract_strided_slice %220 {offsets = [0, 32], sizes = [2, 32], strides = [1, 1]} : vector<2x128xf32> to vector<2x32xf32>
    %224 = vector.extract_strided_slice %221 {offsets = [0, 64], sizes = [2, 32], strides = [1, 1]} : vector<2x128xf32> to vector<2x32xf32>
    %225 = vector.extract_strided_slice %220 {offsets = [0, 96], sizes = [2, 32], strides = [1, 1]} : vector<2x128xf32> to vector<2x32xf32>
    %226 = arith.mulf %223, %190 : vector<2x32xf32>
    %227 = arith.mulf %222, %224 : vector<2x32xf32>
    %228 = arith.addf %226, %227 : vector<2x32xf32>
    %229 = math.tanh %228 : vector<2x32xf32>
    %230 = arith.mulf %225, %229 : vector<2x32xf32>
    %231 = arith.negf %215 : vector<2x128xf32>
    %232 = math.exp %231 : vector<2x128xf32>
    %cst_36 = arith.constant 1.000000e+00 : f32
    %233 = vector.broadcast %cst_36 : f32 to vector<2x128xf32>
    %234 = arith.addf %233, %232 : vector<2x128xf32>
    %235 = arith.divf %233, %234 : vector<2x128xf32>
    %236 = math.tanh %215 : vector<2x128xf32>
    %237 = vector.extract_strided_slice %235 {offsets = [0, 0], sizes = [2, 32], strides = [1, 1]} : vector<2x128xf32> to vector<2x32xf32>
    %238 = vector.extract_strided_slice %235 {offsets = [0, 32], sizes = [2, 32], strides = [1, 1]} : vector<2x128xf32> to vector<2x32xf32>
    %239 = vector.extract_strided_slice %236 {offsets = [0, 64], sizes = [2, 32], strides = [1, 1]} : vector<2x128xf32> to vector<2x32xf32>
    %240 = vector.extract_strided_slice %235 {offsets = [0, 96], sizes = [2, 32], strides = [1, 1]} : vector<2x128xf32> to vector<2x32xf32>
    %241 = arith.mulf %238, %205 : vector<2x32xf32>
    %242 = arith.mulf %237, %239 : vector<2x32xf32>
    %243 = arith.addf %241, %242 : vector<2x32xf32>
    %244 = math.tanh %243 : vector<2x32xf32>
    %245 = arith.mulf %240, %244 : vector<2x32xf32>
    %246 = vector.extract_strided_slice %11 {offsets = [12, 0], sizes = [2, 128], strides = [1, 1]} : vector<16x256xf32> to vector<2x128xf32>
    %247 = arith.truncf %230 : vector<2x32xf32> to vector<2x32xbf16>
    %cst_37 = arith.constant dense<0.000000e+00> : vector<2x128xf32>
    %248 = tpu.matmul %247, %12, %cst_37 {dimension_numbers = #tpu.dot_dimension_numbers<[1], [0], [0], [1], [0, 0, 1, 1], [], []>} : vector<2x32xbf16>, vector<32x128xbf16>, vector<2x128xf32> -> vector<2x128xf32>
    %249 = arith.addf %246, %248 : vector<2x128xf32>
    %250 = vector.extract_strided_slice %11 {offsets = [2, 128], sizes = [2, 128], strides = [1, 1]} : vector<16x256xf32> to vector<2x128xf32>
    %251 = arith.truncf %245 : vector<2x32xf32> to vector<2x32xbf16>
    %cst_38 = arith.constant dense<0.000000e+00> : vector<2x128xf32>
    %252 = tpu.matmul %251, %13, %cst_38 {dimension_numbers = #tpu.dot_dimension_numbers<[1], [0], [0], [1], [0, 0, 1, 1], [], []>} : vector<2x32xbf16>, vector<32x128xbf16>, vector<2x128xf32> -> vector<2x128xf32>
    %253 = arith.addf %250, %252 : vector<2x128xf32>
    %254 = arith.negf %249 : vector<2x128xf32>
    %255 = math.exp %254 : vector<2x128xf32>
    %cst_39 = arith.constant 1.000000e+00 : f32
    %256 = vector.broadcast %cst_39 : f32 to vector<2x128xf32>
    %257 = arith.addf %256, %255 : vector<2x128xf32>
    %258 = arith.divf %256, %257 : vector<2x128xf32>
    %259 = math.tanh %249 : vector<2x128xf32>
    %260 = vector.extract_strided_slice %258 {offsets = [0, 0], sizes = [2, 32], strides = [1, 1]} : vector<2x128xf32> to vector<2x32xf32>
    %261 = vector.extract_strided_slice %258 {offsets = [0, 32], sizes = [2, 32], strides = [1, 1]} : vector<2x128xf32> to vector<2x32xf32>
    %262 = vector.extract_strided_slice %259 {offsets = [0, 64], sizes = [2, 32], strides = [1, 1]} : vector<2x128xf32> to vector<2x32xf32>
    %263 = vector.extract_strided_slice %258 {offsets = [0, 96], sizes = [2, 32], strides = [1, 1]} : vector<2x128xf32> to vector<2x32xf32>
    %264 = arith.mulf %261, %228 : vector<2x32xf32>
    %265 = arith.mulf %260, %262 : vector<2x32xf32>
    %266 = arith.addf %264, %265 : vector<2x32xf32>
    %267 = math.tanh %266 : vector<2x32xf32>
    %268 = arith.mulf %263, %267 : vector<2x32xf32>
    %269 = arith.negf %253 : vector<2x128xf32>
    %270 = math.exp %269 : vector<2x128xf32>
    %cst_40 = arith.constant 1.000000e+00 : f32
    %271 = vector.broadcast %cst_40 : f32 to vector<2x128xf32>
    %272 = arith.addf %271, %270 : vector<2x128xf32>
    %273 = arith.divf %271, %272 : vector<2x128xf32>
    %274 = math.tanh %253 : vector<2x128xf32>
    %275 = vector.extract_strided_slice %273 {offsets = [0, 0], sizes = [2, 32], strides = [1, 1]} : vector<2x128xf32> to vector<2x32xf32>
    %276 = vector.extract_strided_slice %273 {offsets = [0, 32], sizes = [2, 32], strides = [1, 1]} : vector<2x128xf32> to vector<2x32xf32>
    %277 = vector.extract_strided_slice %274 {offsets = [0, 64], sizes = [2, 32], strides = [1, 1]} : vector<2x128xf32> to vector<2x32xf32>
    %278 = vector.extract_strided_slice %273 {offsets = [0, 96], sizes = [2, 32], strides = [1, 1]} : vector<2x128xf32> to vector<2x32xf32>
    %279 = arith.mulf %276, %243 : vector<2x32xf32>
    %280 = arith.mulf %275, %277 : vector<2x32xf32>
    %281 = arith.addf %279, %280 : vector<2x32xf32>
    %282 = math.tanh %281 : vector<2x32xf32>
    %283 = arith.mulf %278, %282 : vector<2x32xf32>
    %284 = vector.extract_strided_slice %11 {offsets = [14, 0], sizes = [2, 128], strides = [1, 1]} : vector<16x256xf32> to vector<2x128xf32>
    %285 = arith.truncf %268 : vector<2x32xf32> to vector<2x32xbf16>
    %cst_41 = arith.constant dense<0.000000e+00> : vector<2x128xf32>
    %286 = tpu.matmul %285, %12, %cst_41 {dimension_numbers = #tpu.dot_dimension_numbers<[1], [0], [0], [1], [0, 0, 1, 1], [], []>} : vector<2x32xbf16>, vector<32x128xbf16>, vector<2x128xf32> -> vector<2x128xf32>
    %287 = arith.addf %284, %286 : vector<2x128xf32>
    %288 = vector.extract_strided_slice %11 {offsets = [0, 128], sizes = [2, 128], strides = [1, 1]} : vector<16x256xf32> to vector<2x128xf32>
    %289 = arith.truncf %283 : vector<2x32xf32> to vector<2x32xbf16>
    %cst_42 = arith.constant dense<0.000000e+00> : vector<2x128xf32>
    %290 = tpu.matmul %289, %13, %cst_42 {dimension_numbers = #tpu.dot_dimension_numbers<[1], [0], [0], [1], [0, 0, 1, 1], [], []>} : vector<2x32xbf16>, vector<32x128xbf16>, vector<2x128xf32> -> vector<2x128xf32>
    %291 = arith.addf %288, %290 : vector<2x128xf32>
    %292 = arith.negf %287 : vector<2x128xf32>
    %293 = math.exp %292 : vector<2x128xf32>
    %cst_43 = arith.constant 1.000000e+00 : f32
    %294 = vector.broadcast %cst_43 : f32 to vector<2x128xf32>
    %295 = arith.addf %294, %293 : vector<2x128xf32>
    %296 = arith.divf %294, %295 : vector<2x128xf32>
    %297 = math.tanh %287 : vector<2x128xf32>
    %298 = vector.extract_strided_slice %296 {offsets = [0, 0], sizes = [2, 32], strides = [1, 1]} : vector<2x128xf32> to vector<2x32xf32>
    %299 = vector.extract_strided_slice %296 {offsets = [0, 32], sizes = [2, 32], strides = [1, 1]} : vector<2x128xf32> to vector<2x32xf32>
    %300 = vector.extract_strided_slice %297 {offsets = [0, 64], sizes = [2, 32], strides = [1, 1]} : vector<2x128xf32> to vector<2x32xf32>
    %301 = arith.mulf %299, %266 : vector<2x32xf32>
    %302 = arith.mulf %298, %300 : vector<2x32xf32>
    %303 = arith.addf %301, %302 : vector<2x32xf32>
    %304 = arith.negf %291 : vector<2x128xf32>
    %305 = math.exp %304 : vector<2x128xf32>
    %cst_44 = arith.constant 1.000000e+00 : f32
    %306 = vector.broadcast %cst_44 : f32 to vector<2x128xf32>
    %307 = arith.addf %306, %305 : vector<2x128xf32>
    %308 = arith.divf %306, %307 : vector<2x128xf32>
    %309 = math.tanh %291 : vector<2x128xf32>
    %310 = vector.extract_strided_slice %308 {offsets = [0, 0], sizes = [2, 32], strides = [1, 1]} : vector<2x128xf32> to vector<2x32xf32>
    %311 = vector.extract_strided_slice %308 {offsets = [0, 32], sizes = [2, 32], strides = [1, 1]} : vector<2x128xf32> to vector<2x32xf32>
    %312 = vector.extract_strided_slice %309 {offsets = [0, 64], sizes = [2, 32], strides = [1, 1]} : vector<2x128xf32> to vector<2x32xf32>
    %313 = arith.mulf %311, %281 : vector<2x32xf32>
    %314 = arith.mulf %310, %312 : vector<2x32xf32>
    %315 = arith.addf %313, %314 : vector<2x32xf32>
    %316 = tpu.concatenate %303, %315 in 1 : vector<2x32xf32>, vector<2x32xf32> -> vector<2x64xf32>
    %317 = arith.truncf %316 : vector<2x64xf32> to vector<2x64xbf16>
    %c0_45 = arith.constant 0 : index
    %c0_46 = arith.constant 0 : index
    %318 = vector.load %arg9[%c0_45, %c0_46] : memref<64x32xbf16, #tpu.memory_space<vmem>>, vector<64x32xbf16>
    %cst_47 = arith.constant dense<0.000000e+00> : vector<2x32xf32>
    %319 = tpu.matmul %317, %318, %cst_47 {dimension_numbers = #tpu.dot_dimension_numbers<[1], [0], [0], [1], [0, 0, 1, 1], [], []>} : vector<2x64xbf16>, vector<64x32xbf16>, vector<2x32xf32> -> vector<2x32xf32>
    %c0_48 = arith.constant 0 : index
    %c0_49 = arith.constant 0 : index
    %320 = vector.load %arg10[%c0_48, %c0_49] : memref<1x32xf32, #tpu.memory_space<vmem>>, vector<1x32xf32>
    %321 = vector.broadcast %320 : vector<1x32xf32> to vector<2x32xf32>
    %322 = arith.addf %319, %321 : vector<2x32xf32>
    %323 = vector.extract_strided_slice %322 {offsets = [0, 0], sizes = [2, 16], strides = [1, 1]} : vector<2x32xf32> to vector<2x16xf32>
    %324 = vector.extract_strided_slice %322 {offsets = [0, 16], sizes = [2, 16], strides = [1, 1]} : vector<2x32xf32> to vector<2x16xf32>
    %cst_50 = arith.constant 5.000000e-01 : f32
    %325 = vector.broadcast %cst_50 : f32 to vector<2x16xf32>
    %326 = arith.mulf %325, %324 : vector<2x16xf32>
    %327 = math.exp %326 : vector<2x16xf32>
    %c0_51 = arith.constant 0 : index
    %c0_52 = arith.constant 0 : index
    %328 = vector.load %arg2[%c0_51, %c0_52] : memref<2x16xf32, #tpu.memory_space<vmem>>, vector<2x16xf32>
    %329 = arith.mulf %328, %327 : vector<2x16xf32>
    %330 = arith.addf %329, %323 : vector<2x16xf32>
    %331 = math.tanh %330 : vector<2x16xf32>
    %c0_53 = arith.constant 0 : index
    %c0_54 = arith.constant 0 : index
    %332 = vector.load %arg21[%c0_53, %c0_54] : memref<2x16xf32, #tpu.memory_space<vmem>>, vector<2x16xf32>
    tpu.vector_store %arg21[%c0_53, %c0_54], %331 {strides = array<i32>} : memref<2x16xf32, #tpu.memory_space<vmem>>, vector<2x16xf32>,
    %333 = arith.mulf %323, %323 : vector<2x16xf32>
    %334 = arith.subf %324, %333 : vector<2x16xf32>
    %335 = math.exp %324 : vector<2x16xf32>
    %336 = arith.subf %334, %335 : vector<2x16xf32>
    %cst_55 = arith.constant 1.000000e+00 : f32
    %337 = vector.broadcast %cst_55 : f32 to vector<2x16xf32>
    %338 = arith.addf %336, %337 : vector<2x16xf32>
    %cst_56 = arith.constant dense<0.000000e+00> : vector<2xf32>
    %339 = vector.multi_reduction <add>, %338, %cst_56 [1] : vector<2x16xf32> to vector<2xf32>
    %340 = vector.shape_cast %339 : vector<2xf32> to vector<2x1xf32>
    %cst_57 = arith.constant -5.000000e-01 : f32
    %341 = vector.broadcast %cst_57 : f32 to vector<2x1xf32>
    %342 = arith.mulf %341, %340 : vector<2x1xf32>
    %cst_58 = arith.constant dense<0.000000e+00> : vector<1xf32>
    %343 = vector.multi_reduction <add>, %342, %cst_58 [0] : vector<2x1xf32> to vector<1xf32>
    %344 = vector.shape_cast %343 : vector<1xf32> to vector<1x1xf32>
    %cst_59 = arith.constant 2.000000e+00 : f32
    %345 = vector.broadcast %cst_59 : f32 to vector<1x1xf32>
    %346 = arith.divf %344, %345 : vector<1x1xf32>
    %c0_60 = arith.constant 0 : index
    %c0_61 = arith.constant 0 : index
    %347 = vector.load %arg20[%c0_60, %c0_61] : memref<1x1xf32, #tpu.memory_space<vmem>>, vector<1x1xf32>
    tpu.vector_store %arg20[%c0_60, %c0_61], %346 {strides = array<i32>} : memref<1x1xf32, #tpu.memory_space<vmem>>, vector<1x1xf32>,
    %c0_62 = arith.constant 0 : index
    %c0_63 = arith.constant 0 : index
    %348 = vector.load %arg1[%c0_62, %c0_63] : memref<18x1xi32, #tpu.memory_space<vmem>>, vector<18x1xi32>
    %349 = tpu.iota {dimensions = array<i32: 1>} : vector<18x16xi32>
    %350 = vector.broadcast %348 : vector<18x1xi32> to vector<18x16xi32>
    %351 = arith.cmpi eq, %350, %349 : vector<18x16xi32>
    %352 = arith.extui %351 : vector<18x16xi1> to vector<18x16xi32>
    %353 = arith.sitofp %352 : vector<18x16xi32> to vector<18x16xf32>
    %354 = arith.truncf %353 : vector<18x16xf32> to vector<18x16xbf16>
    %c0_64 = arith.constant 0 : index
    %c0_65 = arith.constant 0 : index
    %355 = vector.load %arg11[%c0_64, %c0_65] : memref<16x128xbf16, #tpu.memory_space<vmem>>, vector<16x128xbf16>
    %cst_66 = arith.constant dense<0.000000e+00> : vector<18x128xf32>
    %356 = tpu.matmul %354, %355, %cst_66 {dimension_numbers = #tpu.dot_dimension_numbers<[1], [0], [0], [1], [0, 0, 1, 1], [], []>} : vector<18x16xbf16>, vector<16x128xbf16>, vector<18x128xf32> -> vector<18x128xf32>
    %c0_67 = arith.constant 0 : index
    %c0_68 = arith.constant 0 : index
    %357 = vector.load %arg12[%c0_67, %c0_68] : memref<1x128xf32, #tpu.memory_space<vmem>>, vector<1x128xf32>
    %358 = vector.broadcast %357 : vector<1x128xf32> to vector<18x128xf32>
    %359 = arith.addf %356, %358 : vector<18x128xf32>
    %360 = arith.truncf %331 : vector<2x16xf32> to vector<2x16xbf16>
    %c0_69 = arith.constant 0 : index
    %c0_70 = arith.constant 0 : index
    %361 = vector.load %arg13[%c0_69, %c0_70] : memref<16x128xbf16, #tpu.memory_space<vmem>>, vector<16x128xbf16>
    %cst_71 = arith.constant dense<0.000000e+00> : vector<2x128xf32>
    %362 = tpu.matmul %360, %361, %cst_71 {dimension_numbers = #tpu.dot_dimension_numbers<[1], [0], [0], [1], [0, 0, 1, 1], [], []>} : vector<2x16xbf16>, vector<16x128xbf16>, vector<2x128xf32> -> vector<2x128xf32>
    %c0_72 = arith.constant 0 : index
    %c0_73 = arith.constant 0 : index
    %363 = vector.load %arg14[%c0_72, %c0_73] : memref<32x128xbf16, #tpu.memory_space<vmem>>, vector<32x128xbf16>
    %c0_74 = arith.constant 0 : index
    %c0_75 = arith.constant 0 : index
    %364 = vector.load %arg3[%c0_74, %c0_75] : memref<2x32xf32, #tpu.memory_space<vmem>>, vector<2x32xf32>
    %c0_76 = arith.constant 0 : index
    %c0_77 = arith.constant 0 : index
    %365 = vector.load %arg4[%c0_76, %c0_77] : memref<2x32xf32, #tpu.memory_space<vmem>>, vector<2x32xf32>
    %366 = vector.extract_strided_slice %359 {offsets = [0, 0], sizes = [2, 128], strides = [1, 1]} : vector<18x128xf32> to vector<2x128xf32>
    %367 = arith.addf %366, %362 : vector<2x128xf32>
    %368 = arith.truncf %364 : vector<2x32xf32> to vector<2x32xbf16>
    %cst_78 = arith.constant dense<0.000000e+00> : vector<2x128xf32>
    %369 = tpu.matmul %368, %363, %cst_78 {dimension_numbers = #tpu.dot_dimension_numbers<[1], [0], [0], [1], [0, 0, 1, 1], [], []>} : vector<2x32xbf16>, vector<32x128xbf16>, vector<2x128xf32> -> vector<2x128xf32>
    %370 = arith.addf %367, %369 : vector<2x128xf32>
    %371 = arith.negf %370 : vector<2x128xf32>
    %372 = math.exp %371 : vector<2x128xf32>
    %cst_79 = arith.constant 1.000000e+00 : f32
    %373 = vector.broadcast %cst_79 : f32 to vector<2x128xf32>
    %374 = arith.addf %373, %372 : vector<2x128xf32>
    %375 = arith.divf %373, %374 : vector<2x128xf32>
    %376 = math.tanh %370 : vector<2x128xf32>
    %377 = vector.extract_strided_slice %375 {offsets = [0, 0], sizes = [2, 32], strides = [1, 1]} : vector<2x128xf32> to vector<2x32xf32>
    %378 = vector.extract_strided_slice %375 {offsets = [0, 32], sizes = [2, 32], strides = [1, 1]} : vector<2x128xf32> to vector<2x32xf32>
    %379 = vector.extract_strided_slice %376 {offsets = [0, 64], sizes = [2, 32], strides = [1, 1]} : vector<2x128xf32> to vector<2x32xf32>
    %380 = vector.extract_strided_slice %375 {offsets = [0, 96], sizes = [2, 32], strides = [1, 1]} : vector<2x128xf32> to vector<2x32xf32>
    %381 = arith.mulf %378, %365 : vector<2x32xf32>
    %382 = arith.mulf %377, %379 : vector<2x32xf32>
    %383 = arith.addf %381, %382 : vector<2x32xf32>
    %384 = math.tanh %383 : vector<2x32xf32>
    %385 = arith.mulf %380, %384 : vector<2x32xf32>
    %c0_80 = arith.constant 0 : index
    %c0_81 = arith.constant 0 : index
    %386 = vector.load %arg22[%c0_80, %c0_81] : memref<18x32xf32, #tpu.memory_space<vmem>>, vector<2x32xf32>
    tpu.vector_store %arg22[%c0_80, %c0_81], %385 {strides = array<i32>} : memref<18x32xf32, #tpu.memory_space<vmem>>, vector<2x32xf32>,
    %387 = vector.extract_strided_slice %359 {offsets = [2, 0], sizes = [2, 128], strides = [1, 1]} : vector<18x128xf32> to vector<2x128xf32>
    %388 = arith.addf %387, %362 : vector<2x128xf32>
    %389 = arith.truncf %385 : vector<2x32xf32> to vector<2x32xbf16>
    %cst_82 = arith.constant dense<0.000000e+00> : vector<2x128xf32>
    %390 = tpu.matmul %389, %363, %cst_82 {dimension_numbers = #tpu.dot_dimension_numbers<[1], [0], [0], [1], [0, 0, 1, 1], [], []>} : vector<2x32xbf16>, vector<32x128xbf16>, vector<2x128xf32> -> vector<2x128xf32>
    %391 = arith.addf %388, %390 : vector<2x128xf32>
    %392 = arith.negf %391 : vector<2x128xf32>
    %393 = math.exp %392 : vector<2x128xf32>
    %cst_83 = arith.constant 1.000000e+00 : f32
    %394 = vector.broadcast %cst_83 : f32 to vector<2x128xf32>
    %395 = arith.addf %394, %393 : vector<2x128xf32>
    %396 = arith.divf %394, %395 : vector<2x128xf32>
    %397 = math.tanh %391 : vector<2x128xf32>
    %398 = vector.extract_strided_slice %396 {offsets = [0, 0], sizes = [2, 32], strides = [1, 1]} : vector<2x128xf32> to vector<2x32xf32>
    %399 = vector.extract_strided_slice %396 {offsets = [0, 32], sizes = [2, 32], strides = [1, 1]} : vector<2x128xf32> to vector<2x32xf32>
    %400 = vector.extract_strided_slice %397 {offsets = [0, 64], sizes = [2, 32], strides = [1, 1]} : vector<2x128xf32> to vector<2x32xf32>
    %401 = vector.extract_strided_slice %396 {offsets = [0, 96], sizes = [2, 32], strides = [1, 1]} : vector<2x128xf32> to vector<2x32xf32>
    %402 = arith.mulf %399, %383 : vector<2x32xf32>
    %403 = arith.mulf %398, %400 : vector<2x32xf32>
    %404 = arith.addf %402, %403 : vector<2x32xf32>
    %405 = math.tanh %404 : vector<2x32xf32>
    %406 = arith.mulf %401, %405 : vector<2x32xf32>
    %c2 = arith.constant 2 : index
    %c0_84 = arith.constant 0 : index
    %407 = vector.load %arg22[%c2, %c0_84] : memref<18x32xf32, #tpu.memory_space<vmem>>, vector<2x32xf32>
    tpu.vector_store %arg22[%c2, %c0_84], %406 {strides = array<i32>} : memref<18x32xf32, #tpu.memory_space<vmem>>, vector<2x32xf32>,
    %408 = vector.extract_strided_slice %359 {offsets = [4, 0], sizes = [2, 128], strides = [1, 1]} : vector<18x128xf32> to vector<2x128xf32>
    %409 = arith.addf %408, %362 : vector<2x128xf32>
    %410 = arith.truncf %406 : vector<2x32xf32> to vector<2x32xbf16>
    %cst_85 = arith.constant dense<0.000000e+00> : vector<2x128xf32>
    %411 = tpu.matmul %410, %363, %cst_85 {dimension_numbers = #tpu.dot_dimension_numbers<[1], [0], [0], [1], [0, 0, 1, 1], [], []>} : vector<2x32xbf16>, vector<32x128xbf16>, vector<2x128xf32> -> vector<2x128xf32>
    %412 = arith.addf %409, %411 : vector<2x128xf32>
    %413 = arith.negf %412 : vector<2x128xf32>
    %414 = math.exp %413 : vector<2x128xf32>
    %cst_86 = arith.constant 1.000000e+00 : f32
    %415 = vector.broadcast %cst_86 : f32 to vector<2x128xf32>
    %416 = arith.addf %415, %414 : vector<2x128xf32>
    %417 = arith.divf %415, %416 : vector<2x128xf32>
    %418 = math.tanh %412 : vector<2x128xf32>
    %419 = vector.extract_strided_slice %417 {offsets = [0, 0], sizes = [2, 32], strides = [1, 1]} : vector<2x128xf32> to vector<2x32xf32>
    %420 = vector.extract_strided_slice %417 {offsets = [0, 32], sizes = [2, 32], strides = [1, 1]} : vector<2x128xf32> to vector<2x32xf32>
    %421 = vector.extract_strided_slice %418 {offsets = [0, 64], sizes = [2, 32], strides = [1, 1]} : vector<2x128xf32> to vector<2x32xf32>
    %422 = vector.extract_strided_slice %417 {offsets = [0, 96], sizes = [2, 32], strides = [1, 1]} : vector<2x128xf32> to vector<2x32xf32>
    %423 = arith.mulf %420, %404 : vector<2x32xf32>
    %424 = arith.mulf %419, %421 : vector<2x32xf32>
    %425 = arith.addf %423, %424 : vector<2x32xf32>
    %426 = math.tanh %425 : vector<2x32xf32>
    %427 = arith.mulf %422, %426 : vector<2x32xf32>
    %c4 = arith.constant 4 : index
    %c0_87 = arith.constant 0 : index
    %428 = vector.load %arg22[%c4, %c0_87] : memref<18x32xf32, #tpu.memory_space<vmem>>, vector<2x32xf32>
    tpu.vector_store %arg22[%c4, %c0_87], %427 {strides = array<i32>} : memref<18x32xf32, #tpu.memory_space<vmem>>, vector<2x32xf32>,
    %429 = vector.extract_strided_slice %359 {offsets = [6, 0], sizes = [2, 128], strides = [1, 1]} : vector<18x128xf32> to vector<2x128xf32>
    %430 = arith.addf %429, %362 : vector<2x128xf32>
    %431 = arith.truncf %427 : vector<2x32xf32> to vector<2x32xbf16>
    %cst_88 = arith.constant dense<0.000000e+00> : vector<2x128xf32>
    %432 = tpu.matmul %431, %363, %cst_88 {dimension_numbers = #tpu.dot_dimension_numbers<[1], [0], [0], [1], [0, 0, 1, 1], [], []>} : vector<2x32xbf16>, vector<32x128xbf16>, vector<2x128xf32> -> vector<2x128xf32>
    %433 = arith.addf %430, %432 : vector<2x128xf32>
    %434 = arith.negf %433 : vector<2x128xf32>
    %435 = math.exp %434 : vector<2x128xf32>
    %cst_89 = arith.constant 1.000000e+00 : f32
    %436 = vector.broadcast %cst_89 : f32 to vector<2x128xf32>
    %437 = arith.addf %436, %435 : vector<2x128xf32>
    %438 = arith.divf %436, %437 : vector<2x128xf32>
    %439 = math.tanh %433 : vector<2x128xf32>
    %440 = vector.extract_strided_slice %438 {offsets = [0, 0], sizes = [2, 32], strides = [1, 1]} : vector<2x128xf32> to vector<2x32xf32>
    %441 = vector.extract_strided_slice %438 {offsets = [0, 32], sizes = [2, 32], strides = [1, 1]} : vector<2x128xf32> to vector<2x32xf32>
    %442 = vector.extract_strided_slice %439 {offsets = [0, 64], sizes = [2, 32], strides = [1, 1]} : vector<2x128xf32> to vector<2x32xf32>
    %443 = vector.extract_strided_slice %438 {offsets = [0, 96], sizes = [2, 32], strides = [1, 1]} : vector<2x128xf32> to vector<2x32xf32>
    %444 = arith.mulf %441, %425 : vector<2x32xf32>
    %445 = arith.mulf %440, %442 : vector<2x32xf32>
    %446 = arith.addf %444, %445 : vector<2x32xf32>
    %447 = math.tanh %446 : vector<2x32xf32>
    %448 = arith.mulf %443, %447 : vector<2x32xf32>
    %c6 = arith.constant 6 : index
    %c0_90 = arith.constant 0 : index
    %449 = vector.load %arg22[%c6, %c0_90] : memref<18x32xf32, #tpu.memory_space<vmem>>, vector<2x32xf32>
    tpu.vector_store %arg22[%c6, %c0_90], %448 {strides = array<i32>} : memref<18x32xf32, #tpu.memory_space<vmem>>, vector<2x32xf32>,
    %450 = vector.extract_strided_slice %359 {offsets = [8, 0], sizes = [2, 128], strides = [1, 1]} : vector<18x128xf32> to vector<2x128xf32>
    %451 = arith.addf %450, %362 : vector<2x128xf32>
    %452 = arith.truncf %448 : vector<2x32xf32> to vector<2x32xbf16>
    %cst_91 = arith.constant dense<0.000000e+00> : vector<2x128xf32>
    %453 = tpu.matmul %452, %363, %cst_91 {dimension_numbers = #tpu.dot_dimension_numbers<[1], [0], [0], [1], [0, 0, 1, 1], [], []>} : vector<2x32xbf16>, vector<32x128xbf16>, vector<2x128xf32> -> vector<2x128xf32>
    %454 = arith.addf %451, %453 : vector<2x128xf32>
    %455 = arith.negf %454 : vector<2x128xf32>
    %456 = math.exp %455 : vector<2x128xf32>
    %cst_92 = arith.constant 1.000000e+00 : f32
    %457 = vector.broadcast %cst_92 : f32 to vector<2x128xf32>
    %458 = arith.addf %457, %456 : vector<2x128xf32>
    %459 = arith.divf %457, %458 : vector<2x128xf32>
    %460 = math.tanh %454 : vector<2x128xf32>
    %461 = vector.extract_strided_slice %459 {offsets = [0, 0], sizes = [2, 32], strides = [1, 1]} : vector<2x128xf32> to vector<2x32xf32>
    %462 = vector.extract_strided_slice %459 {offsets = [0, 32], sizes = [2, 32], strides = [1, 1]} : vector<2x128xf32> to vector<2x32xf32>
    %463 = vector.extract_strided_slice %460 {offsets = [0, 64], sizes = [2, 32], strides = [1, 1]} : vector<2x128xf32> to vector<2x32xf32>
    %464 = vector.extract_strided_slice %459 {offsets = [0, 96], sizes = [2, 32], strides = [1, 1]} : vector<2x128xf32> to vector<2x32xf32>
    %465 = arith.mulf %462, %446 : vector<2x32xf32>
    %466 = arith.mulf %461, %463 : vector<2x32xf32>
    %467 = arith.addf %465, %466 : vector<2x32xf32>
    %468 = math.tanh %467 : vector<2x32xf32>
    %469 = arith.mulf %464, %468 : vector<2x32xf32>
    %c8 = arith.constant 8 : index
    %c0_93 = arith.constant 0 : index
    %470 = vector.load %arg22[%c8, %c0_93] : memref<18x32xf32, #tpu.memory_space<vmem>>, vector<2x32xf32>
    tpu.vector_store %arg22[%c8, %c0_93], %469 {strides = array<i32>} : memref<18x32xf32, #tpu.memory_space<vmem>>, vector<2x32xf32>,
    %471 = vector.extract_strided_slice %359 {offsets = [10, 0], sizes = [2, 128], strides = [1, 1]} : vector<18x128xf32> to vector<2x128xf32>
    %472 = arith.addf %471, %362 : vector<2x128xf32>
    %473 = arith.truncf %469 : vector<2x32xf32> to vector<2x32xbf16>
    %cst_94 = arith.constant dense<0.000000e+00> : vector<2x128xf32>
    %474 = tpu.matmul %473, %363, %cst_94 {dimension_numbers = #tpu.dot_dimension_numbers<[1], [0], [0], [1], [0, 0, 1, 1], [], []>} : vector<2x32xbf16>, vector<32x128xbf16>, vector<2x128xf32> -> vector<2x128xf32>
    %475 = arith.addf %472, %474 : vector<2x128xf32>
    %476 = arith.negf %475 : vector<2x128xf32>
    %477 = math.exp %476 : vector<2x128xf32>
    %cst_95 = arith.constant 1.000000e+00 : f32
    %478 = vector.broadcast %cst_95 : f32 to vector<2x128xf32>
    %479 = arith.addf %478, %477 : vector<2x128xf32>
    %480 = arith.divf %478, %479 : vector<2x128xf32>
    %481 = math.tanh %475 : vector<2x128xf32>
    %482 = vector.extract_strided_slice %480 {offsets = [0, 0], sizes = [2, 32], strides = [1, 1]} : vector<2x128xf32> to vector<2x32xf32>
    %483 = vector.extract_strided_slice %480 {offsets = [0, 32], sizes = [2, 32], strides = [1, 1]} : vector<2x128xf32> to vector<2x32xf32>
    %484 = vector.extract_strided_slice %481 {offsets = [0, 64], sizes = [2, 32], strides = [1, 1]} : vector<2x128xf32> to vector<2x32xf32>
    %485 = vector.extract_strided_slice %480 {offsets = [0, 96], sizes = [2, 32], strides = [1, 1]} : vector<2x128xf32> to vector<2x32xf32>
    %486 = arith.mulf %483, %467 : vector<2x32xf32>
    %487 = arith.mulf %482, %484 : vector<2x32xf32>
    %488 = arith.addf %486, %487 : vector<2x32xf32>
    %489 = math.tanh %488 : vector<2x32xf32>
    %490 = arith.mulf %485, %489 : vector<2x32xf32>
    %c10 = arith.constant 10 : index
    %c0_96 = arith.constant 0 : index
    %491 = vector.load %arg22[%c10, %c0_96] : memref<18x32xf32, #tpu.memory_space<vmem>>, vector<2x32xf32>
    tpu.vector_store %arg22[%c10, %c0_96], %490 {strides = array<i32>} : memref<18x32xf32, #tpu.memory_space<vmem>>, vector<2x32xf32>,
    %492 = vector.extract_strided_slice %359 {offsets = [12, 0], sizes = [2, 128], strides = [1, 1]} : vector<18x128xf32> to vector<2x128xf32>
    %493 = arith.addf %492, %362 : vector<2x128xf32>
    %494 = arith.truncf %490 : vector<2x32xf32> to vector<2x32xbf16>
    %cst_97 = arith.constant dense<0.000000e+00> : vector<2x128xf32>
    %495 = tpu.matmul %494, %363, %cst_97 {dimension_numbers = #tpu.dot_dimension_numbers<[1], [0], [0], [1], [0, 0, 1, 1], [], []>} : vector<2x32xbf16>, vector<32x128xbf16>, vector<2x128xf32> -> vector<2x128xf32>
    %496 = arith.addf %493, %495 : vector<2x128xf32>
    %497 = arith.negf %496 : vector<2x128xf32>
    %498 = math.exp %497 : vector<2x128xf32>
    %cst_98 = arith.constant 1.000000e+00 : f32
    %499 = vector.broadcast %cst_98 : f32 to vector<2x128xf32>
    %500 = arith.addf %499, %498 : vector<2x128xf32>
    %501 = arith.divf %499, %500 : vector<2x128xf32>
    %502 = math.tanh %496 : vector<2x128xf32>
    %503 = vector.extract_strided_slice %501 {offsets = [0, 0], sizes = [2, 32], strides = [1, 1]} : vector<2x128xf32> to vector<2x32xf32>
    %504 = vector.extract_strided_slice %501 {offsets = [0, 32], sizes = [2, 32], strides = [1, 1]} : vector<2x128xf32> to vector<2x32xf32>
    %505 = vector.extract_strided_slice %502 {offsets = [0, 64], sizes = [2, 32], strides = [1, 1]} : vector<2x128xf32> to vector<2x32xf32>
    %506 = vector.extract_strided_slice %501 {offsets = [0, 96], sizes = [2, 32], strides = [1, 1]} : vector<2x128xf32> to vector<2x32xf32>
    %507 = arith.mulf %504, %488 : vector<2x32xf32>
    %508 = arith.mulf %503, %505 : vector<2x32xf32>
    %509 = arith.addf %507, %508 : vector<2x32xf32>
    %510 = math.tanh %509 : vector<2x32xf32>
    %511 = arith.mulf %506, %510 : vector<2x32xf32>
    %c12 = arith.constant 12 : index
    %c0_99 = arith.constant 0 : index
    %512 = vector.load %arg22[%c12, %c0_99] : memref<18x32xf32, #tpu.memory_space<vmem>>, vector<2x32xf32>
    tpu.vector_store %arg22[%c12, %c0_99], %511 {strides = array<i32>} : memref<18x32xf32, #tpu.memory_space<vmem>>, vector<2x32xf32>,
    %513 = vector.extract_strided_slice %359 {offsets = [14, 0], sizes = [2, 128], strides = [1, 1]} : vector<18x128xf32> to vector<2x128xf32>
    %514 = arith.addf %513, %362 : vector<2x128xf32>
    %515 = arith.truncf %511 : vector<2x32xf32> to vector<2x32xbf16>
    %cst_100 = arith.constant dense<0.000000e+00> : vector<2x128xf32>
    %516 = tpu.matmul %515, %363, %cst_100 {dimension_numbers = #tpu.dot_dimension_numbers<[1], [0], [0], [1], [0, 0, 1, 1], [], []>} : vector<2x32xbf16>, vector<32x128xbf16>, vector<2x128xf32> -> vector<2x128xf32>
    %517 = arith.addf %514, %516 : vector<2x128xf32>
    %518 = arith.negf %517 : vector<2x128xf32>
    %519 = math.exp %518 : vector<2x128xf32>
    %cst_101 = arith.constant 1.000000e+00 : f32
    %520 = vector.broadcast %cst_101 : f32 to vector<2x128xf32>
    %521 = arith.addf %520, %519 : vector<2x128xf32>
    %522 = arith.divf %520, %521 : vector<2x128xf32>
    %523 = math.tanh %517 : vector<2x128xf32>
    %524 = vector.extract_strided_slice %522 {offsets = [0, 0], sizes = [2, 32], strides = [1, 1]} : vector<2x128xf32> to vector<2x32xf32>
    %525 = vector.extract_strided_slice %522 {offsets = [0, 32], sizes = [2, 32], strides = [1, 1]} : vector<2x128xf32> to vector<2x32xf32>
    %526 = vector.extract_strided_slice %523 {offsets = [0, 64], sizes = [2, 32], strides = [1, 1]} : vector<2x128xf32> to vector<2x32xf32>
    %527 = vector.extract_strided_slice %522 {offsets = [0, 96], sizes = [2, 32], strides = [1, 1]} : vector<2x128xf32> to vector<2x32xf32>
    %528 = arith.mulf %525, %509 : vector<2x32xf32>
    %529 = arith.mulf %524, %526 : vector<2x32xf32>
    %530 = arith.addf %528, %529 : vector<2x32xf32>
    %531 = math.tanh %530 : vector<2x32xf32>
    %532 = arith.mulf %527, %531 : vector<2x32xf32>
    %c14 = arith.constant 14 : index
    %c0_102 = arith.constant 0 : index
    %533 = vector.load %arg22[%c14, %c0_102] : memref<18x32xf32, #tpu.memory_space<vmem>>, vector<2x32xf32>
    tpu.vector_store %arg22[%c14, %c0_102], %532 {strides = array<i32>} : memref<18x32xf32, #tpu.memory_space<vmem>>, vector<2x32xf32>,
    %534 = vector.extract_strided_slice %359 {offsets = [16, 0], sizes = [2, 128], strides = [1, 1]} : vector<18x128xf32> to vector<2x128xf32>
    %535 = arith.addf %534, %362 : vector<2x128xf32>
    %536 = arith.truncf %532 : vector<2x32xf32> to vector<2x32xbf16>
    %cst_103 = arith.constant dense<0.000000e+00> : vector<2x128xf32>
    %537 = tpu.matmul %536, %363, %cst_103 {dimension_numbers = #tpu.dot_dimension_numbers<[1], [0], [0], [1], [0, 0, 1, 1], [], []>} : vector<2x32xbf16>, vector<32x128xbf16>, vector<2x128xf32> -> vector<2x128xf32>
    %538 = arith.addf %535, %537 : vector<2x128xf32>
    %539 = arith.negf %538 : vector<2x128xf32>
    %540 = math.exp %539 : vector<2x128xf32>
    %cst_104 = arith.constant 1.000000e+00 : f32
    %541 = vector.broadcast %cst_104 : f32 to vector<2x128xf32>
    %542 = arith.addf %541, %540 : vector<2x128xf32>
    %543 = arith.divf %541, %542 : vector<2x128xf32>
    %544 = math.tanh %538 : vector<2x128xf32>
    %545 = vector.extract_strided_slice %543 {offsets = [0, 0], sizes = [2, 32], strides = [1, 1]} : vector<2x128xf32> to vector<2x32xf32>
    %546 = vector.extract_strided_slice %543 {offsets = [0, 32], sizes = [2, 32], strides = [1, 1]} : vector<2x128xf32> to vector<2x32xf32>
    %547 = vector.extract_strided_slice %544 {offsets = [0, 64], sizes = [2, 32], strides = [1, 1]} : vector<2x128xf32> to vector<2x32xf32>
    %548 = vector.extract_strided_slice %543 {offsets = [0, 96], sizes = [2, 32], strides = [1, 1]} : vector<2x128xf32> to vector<2x32xf32>
    %549 = arith.mulf %546, %530 : vector<2x32xf32>
    %550 = arith.mulf %545, %547 : vector<2x32xf32>
    %551 = arith.addf %549, %550 : vector<2x32xf32>
    %552 = math.tanh %551 : vector<2x32xf32>
    %553 = arith.mulf %548, %552 : vector<2x32xf32>
    %c16 = arith.constant 16 : index
    %c0_105 = arith.constant 0 : index
    %554 = vector.load %arg22[%c16, %c0_105] : memref<18x32xf32, #tpu.memory_space<vmem>>, vector<2x32xf32>
    tpu.vector_store %arg22[%c16, %c0_105], %553 {strides = array<i32>} : memref<18x32xf32, #tpu.memory_space<vmem>>, vector<2x32xf32>,
    %c0_106 = arith.constant 0 : index
    %c0_107 = arith.constant 0 : index
    %555 = vector.load %arg18[%c0_106, %c0_107] : memref<2x32xf32, #tpu.memory_space<vmem>>, vector<2x32xf32>
    tpu.vector_store %arg18[%c0_106, %c0_107], %553 {strides = array<i32>} : memref<2x32xf32, #tpu.memory_space<vmem>>, vector<2x32xf32>,
    %c0_108 = arith.constant 0 : index
    %c0_109 = arith.constant 0 : index
    %556 = vector.load %arg19[%c0_108, %c0_109] : memref<2x32xf32, #tpu.memory_space<vmem>>, vector<2x32xf32>
    tpu.vector_store %arg19[%c0_108, %c0_109], %551 {strides = array<i32>} : memref<2x32xf32, #tpu.memory_space<vmem>>, vector<2x32xf32>,
    %c0_110 = arith.constant 0 : index
    %c0_111 = arith.constant 0 : index
    %557 = vector.load %arg22[%c0_110, %c0_111] : memref<18x32xf32, #tpu.memory_space<vmem>>, vector<18x32xf32>
    %558 = arith.truncf %557 : vector<18x32xf32> to vector<18x32xbf16>
    %c0_112 = arith.constant 0 : index
    %c0_113 = arith.constant 0 : index
    %559 = vector.load %arg15[%c0_112, %c0_113] : memref<32x128xbf16, #tpu.memory_space<vmem>>, vector<32x128xbf16>
    %cst_114 = arith.constant dense<0.000000e+00> : vector<18x128xf32>
    %560 = tpu.matmul %558, %559, %cst_114 {dimension_numbers = #tpu.dot_dimension_numbers<[1], [0], [0], [1], [0, 0, 1, 1], [], []>} : vector<18x32xbf16>, vector<32x128xbf16>, vector<18x128xf32> -> vector<18x128xf32>
    %c0_115 = arith.constant 0 : index
    %c0_116 = arith.constant 0 : index
    %561 = vector.load %arg16[%c0_115, %c0_116] : memref<1x128xf32, #tpu.memory_space<vmem>>, vector<1x128xf32>
    %562 = vector.broadcast %561 : vector<1x128xf32> to vector<18x128xf32>
    %563 = arith.addf %560, %562 : vector<18x128xf32>
    %c0_117 = arith.constant 0 : index
    %c0_118 = arith.constant 0 : index
    %564 = vector.load %arg17[%c0_117, %c0_118] : memref<18x128xf32, #tpu.memory_space<vmem>>, vector<18x128xf32>
    tpu.vector_store %arg17[%c0_117, %c0_118], %563 {strides = array<i32>} : memref<18x128xf32, #tpu.memory_space<vmem>>, vector<18x128xf32>,
    return
  }
}

</mosaic_0001>

<llo_original>
// kernel: rvae_forward.1
$region0: #{rvae_forward.1}
  #allocation0 [shape = 'u32[]', space=smem, size = 0x4, offset = 0x4, fixed_abs, tag = 'smem constant byte address 0x4 - core index']
  #allocation1 [shape = 'u32[144,128]{1,0:T(1,128)}', space=vmem, size = 0x12000, scoped, tag = 'internal scratch']
  #allocation2 [shape = 'f32[18,32]{1,0:T(8,128)}', space=vmem, size = 0x3000, scoped, tag = 'scratch operand']
  %s0 = inlined_call_operand.vmem [shape: s32[16,1], index: 0, kind: input, shape index: {}]
  %s1 = inlined_call_operand.vmem [shape: s32[18,1], index: 1, kind: input, shape index: {}]
  %s2 = inlined_call_operand.vmem [shape: f32[2,16], index: 2, kind: input, shape index: {}]
  %s3 = inlined_call_operand.vmem [shape: f32[2,32], index: 3, kind: input, shape index: {}, may-alias: {3,4}]
  %s4 = inlined_call_operand.vmem [shape: f32[2,32], index: 4, kind: input, shape index: {}, may-alias: {3,4}]
  %s5 = inlined_call_operand.vmem [shape: bf16[16,256], index: 5, kind: input, shape index: {}]
  %s6 = inlined_call_operand.vmem [shape: f32[1,256], index: 6, kind: input, shape index: {}]
  %s7 = inlined_call_operand.vmem [shape: bf16[32,128], index: 7, kind: input, shape index: {}]
  %s8 = inlined_call_operand.vmem [shape: bf16[32,128], index: 8, kind: input, shape index: {}]
  %s9 = inlined_call_operand.vmem [shape: bf16[64,32], index: 9, kind: input, shape index: {}]
  %s10 = inlined_call_operand.vmem [shape: f32[1,32], index: 10, kind: input, shape index: {}]
  %s11 = inlined_call_operand.vmem [shape: bf16[16,128], index: 11, kind: input, shape index: {}]
  %s12 = inlined_call_operand.vmem [shape: f32[1,128], index: 12, kind: input, shape index: {}]
  %s13 = inlined_call_operand.vmem [shape: bf16[16,128], index: 13, kind: input, shape index: {}]
  %s14 = inlined_call_operand.vmem [shape: bf16[32,128], index: 14, kind: input, shape index: {}]
  %s15 = inlined_call_operand.vmem [shape: bf16[32,128], index: 15, kind: input, shape index: {}]
  %s16 = inlined_call_operand.vmem [shape: f32[1,128], index: 16, kind: input, shape index: {}]
  %s17 = inlined_call_operand.vmem [shape: f32[18,128], index: 17, kind: output, shape index: {0}]
  %s18 = inlined_call_operand.hbm [shape: f32[2,32], index: 18, kind: output, shape index: {1}]
  %s19 = inlined_call_operand.hbm [shape: f32[2,32], index: 19, kind: output, shape index: {2}]
  %s20 = inlined_call_operand.hbm [shape: f32[1,1], index: 20, kind: output, shape index: {3}]
  %s21 = inlined_call_operand.hbm [shape: f32[2,16], index: 21, kind: output, shape index: {4}]
  %22 = xla_tuple %s17, %s18, %s19, %s20, %s21
  %s23 = sld [smem:[#allocation0]]
  $region110: #{rvae_forward.1} parent=0
    _
  %s25 = ssub.s32 1, %s23
  %s26 = scalar_select 0, %s25, %s23
  $region1: #{rvae_forward.1} parent=0
    #allocation3 [shape = 'u8[1024]{0}', space=vmem, size = 0x400, scoped, tag = 'output window, operand 1, single buffered']
    #allocation4 [shape = 's32[1]{0}', space=sflag, size = 0x4, scoped, tag = 'scoped memory for rvae_forward.1']
    #allocation5 [shape = 'u8[1024]{0}', space=vmem, size = 0x400, scoped, tag = 'output window, operand 2, single buffered']
    #allocation6 [shape = 's32[1]{0}', space=sflag, size = 0x4, scoped, tag = 'scoped memory for rvae_forward.1']
    #allocation7 [shape = 'u8[512]{0}', space=vmem, size = 0x400, scoped, tag = 'output window, operand 3, single buffered']
    #allocation8 [shape = 'u8[1024]{0}', space=vmem, size = 0x400, scoped, tag = 'output window, operand 4, single buffered']
    #allocation9 [shape = 's32[1]{0}', space=sflag, size = 0x4, scoped, tag = 'scoped memory for rvae_forward.1']
    %27 = vsyncpa [#allocation4], 0
    %28 = vsyncpa [#allocation6], 0
    %29 = vsyncpa [#allocation9], 0
    // Predicated region
    $region2: #{rvae_forward.1} parent=1 // pred_check
      _
    $region3: #{rvae_forward.1} parent=1 // pred_check_branch
      %31 = sbr.rel (0) target = $region5
    $region4: #{rvae_forward.1} parent=1 // pred_region
      _
    $region5: #{rvae_forward.1} parent=1 // pred_fallthru
      _
    // Predicated region
    $region6: #{rvae_forward.1} parent=1 // pred_check
      _
    $region7: #{rvae_forward.1} parent=1 // pred_check_branch
      %33 = sbr.rel (0) target = $region9
    $region8: #{rvae_forward.1} parent=1 // pred_region
      _
    $region9: #{rvae_forward.1} parent=1 // pred_fallthru
      _
    // Predicated region
    $region10: #{rvae_forward.1} parent=1 // pred_check
      _
    $region11: #{rvae_forward.1} parent=1 // pred_check_branch
      %35 = sbr.rel (0) target = $region13
    $region12: #{rvae_forward.1} parent=1 // pred_region
      _
    $region13: #{rvae_forward.1} parent=1 // pred_fallthru
      _
    // Predicated region
    $region14: #{rvae_forward.1} parent=1 // pred_check
      _
    $region15: #{rvae_forward.1} parent=1 // pred_check_branch
      %37 = sbr.rel (0) target = $region17
    $region16: #{rvae_forward.1} parent=1 // pred_region
      _
    $region17: #{rvae_forward.1} parent=1 // pred_fallthru
      _
    // Predicated region
    $region18: #{rvae_forward.1} parent=1 // pred_check
      _
    $region19: #{rvae_forward.1} parent=1 // pred_check_branch
      %39 = sbr.rel (0) target = $region21
    $region20: #{rvae_forward.1} parent=1 // pred_region
      _
    $region21: #{rvae_forward.1} parent=1 // pred_fallthru
      _
    // Predicated region
    $region22: #{rvae_forward.1} parent=1 // pred_check
      _
    $region23: #{rvae_forward.1} parent=1 // pred_check_branch
      %41 = sbr.rel (0) target = $region25
    $region24: #{rvae_forward.1} parent=1 // pred_region
      _
    $region25: #{rvae_forward.1} parent=1 // pred_fallthru
      _
    // Predicated region
    $region26: #{rvae_forward.1} parent=1 // pred_check
      _
    $region27: #{rvae_forward.1} parent=1 // pred_check_branch
      %43 = sbr.rel (0) target = $region29
    $region28: #{rvae_forward.1} parent=1 // pred_region
      _
    $region29: #{rvae_forward.1} parent=1 // pred_fallthru
      _
    // Predicated region
    $region30: #{rvae_forward.1} parent=1 // pred_check
      _
    $region31: #{rvae_forward.1} parent=1 // pred_check_branch
      %45 = sbr.rel (0) target = $region33
    $region32: #{rvae_forward.1} parent=1 // pred_region
      _
    $region33: #{rvae_forward.1} parent=1 // pred_fallthru
      _
    // Predicated region
    $region34: #{rvae_forward.1} parent=1 // pred_check
      _
    $region35: #{rvae_forward.1} parent=1 // pred_check_branch
      %47 = sbr.rel (0) target = $region37
    $region36: #{rvae_forward.1} parent=1 // pred_region
      _
    $region37: #{rvae_forward.1} parent=1 // pred_fallthru
      _
    // Predicated region
    $region38: #{rvae_forward.1} parent=1 // pred_check
      _
    $region39: #{rvae_forward.1} parent=1 // pred_check_branch
      %49 = sbr.rel (0) target = $region41
    $region40: #{rvae_forward.1} parent=1 // pred_region
      _
    $region41: #{rvae_forward.1} parent=1 // pred_fallthru
      _
    // Predicated region
    $region42: #{rvae_forward.1} parent=1 // pred_check
      _
    $region43: #{rvae_forward.1} parent=1 // pred_check_branch
      %51 = sbr.rel (0) target = $region45
    $region44: #{rvae_forward.1} parent=1 // pred_region
      _
    $region45: #{rvae_forward.1} parent=1 // pred_fallthru
      _
    // Predicated region
    $region46: #{rvae_forward.1} parent=1 // pred_check
      _
    $region47: #{rvae_forward.1} parent=1 // pred_check_branch
      %53 = sbr.rel (0) target = $region49
    $region48: #{rvae_forward.1} parent=1 // pred_region
      _
    $region49: #{rvae_forward.1} parent=1 // pred_fallthru
      _
    // Predicated region
    $region50: #{rvae_forward.1} parent=1 // pred_check
      _
    $region51: #{rvae_forward.1} parent=1 // pred_check_branch
      %55 = sbr.rel (0) target = $region53
    $region52: #{rvae_forward.1} parent=1 // pred_region
      _
    $region53: #{rvae_forward.1} parent=1 // pred_fallthru
      _
    // Predicated region
    $region54: #{rvae_forward.1} parent=1 // pred_check
      _
    $region55: #{rvae_forward.1} parent=1 // pred_check_branch
      %57 = sbr.rel (0) target = $region57
    $region56: #{rvae_forward.1} parent=1 // pred_region
      _
    $region57: #{rvae_forward.1} parent=1 // pred_fallthru
      _
    // Predicated region
    $region58: #{rvae_forward.1} parent=1 // pred_check
      _
    $region59: #{rvae_forward.1} parent=1 // pred_check_branch
      %59 = sbr.rel (0) target = $region61
    $region60: #{rvae_forward.1} parent=1 // pred_region
      _
    $region61: #{rvae_forward.1} parent=1 // pred_fallthru
      _
    // Predicated region
    $region62: #{rvae_forward.1} parent=1 // pred_check
      _
    $region63: #{rvae_forward.1} parent=1 // pred_check_branch
      %61 = sbr.rel (0) target = $region65
    $region64: #{rvae_forward.1} parent=1 // pred_region
      _
    $region65: #{rvae_forward.1} parent=1 // pred_fallthru
      _
    // Predicated region
    $region66: #{rvae_forward.1} parent=1 // pred_check
      _
    $region67: #{rvae_forward.1} parent=1 // pred_check_branch
      %63 = sbr.rel (0) target = $region69
    $region68: #{rvae_forward.1} parent=1 // pred_region
      _
    $region69: #{rvae_forward.1} parent=1 // pred_fallthru
      _
    %v65 = vld [vmem:[%s0] sm:$0xff]
    %v66 = vld [vmem:[%s0 + $0x8] sm:$0xff]
    %v67 = vlaneseq
    %v68 = vand.u32 %v67, 127
    %69 = vset.pattern.permute.xlu0 0
    %70 = vperm.xlu0 %69, %v65
    %v71 = vpop.permute.xlu0 %70
    %72 = vset.pattern.permute.xlu0 0
    %73 = vperm.xlu0 %72, %v66
    %v74 = vpop.permute.xlu0 %73
    %vm75 = vcmp.eq.s32.totalorder %v71, %v68
    %vm76 = vcmp.eq.s32.totalorder %v74, %v68
    %v77 = vsel %vm75, 1, 0
    %v78 = vsel %vm76, 1, 0
    %v79 = vcvt.s32.f32 %v77
    %v80 = vcvt.s32.f32 %v78
    %v81 = vpack.c.bf16 %v80, %v79
    %v82 = vld [vmem:[%s5] sm:$0xff]
    %v83 = vld [vmem:[%s5 + $0x8] sm:$0xff]
    %v84 = vld [vmem:[%s6] sm:$0x3]
    %v86 = vlaneseq
    %v87 = vshrl.u32 %v86, 7
    %v88 = vsub.s32 0, %v87
    %v89 = vrot.slane %v84, %v88
    %v90 = vlaneseq
    %v91 = vshrl.u32 %v90, 7
    %v92 = vsub.s32 1, %v91
    %v93 = vrot.slane %v84, %v92
    %v98 = vunpack.c.l.b16 %v82
    %v99 = vunpack.c.h.b16 %v82
    %v100 = vunpack.c.l.b16 %v83
    %v101 = vunpack.c.h.b16 %v83
    %v102 = vpack.c.b16 %v100, %v98
    %v103 = vpack.c.b16 %v101, %v99
    %vm106 = vcmask 130048
    %v108 = vsel %vm106, %v81, 0
    %110 = vmatprep.subr.bf16.mxu0 0
    %111 = vmatpush1.bf16.msra.mxu0 0
    %112 = vmatprep.subr.bf16.mxu0 0
    %113 = vmatpush1.bf16.msra.mxu0 0
    %114 = vmatprep.subr.bf16.mxu0 0
    %115 = vmatpush1.bf16.msra.mxu0 0
    %116 = vmatprep.subr.bf16.mxu0 0
    %117 = vmatpush1.bf16.msra.mxu0 0
    %118 = vmatprep.subr.bf16.mxu0 0
    %119 = vmatpush1.bf16.msra.mxu0 0
    %120 = vmatprep.subr.bf16.mxu0 0
    %121 = vmatpush1.bf16.msra.mxu0 0
    %122 = vmatprep.subr.bf16.mxu0 0
    %123 = vmatpush1.bf16.msra.mxu0 0
    %124 = vmatprep.subr.bf16.mxu0 %v103
    %125 = vmatpush1.bf16.msra.mxu0 %v102
    %126 = vmatprep.subr.bf16.mxu0 0
    %127 = vmatpush2.bf16.msra.mxu0 0
    %128 = vmatprep.subr.bf16.mxu0 0
    %129 = vmatpush2.bf16.msra.mxu0 0
    %130 = vmatprep.subr.bf16.mxu0 0
    %131 = vmatpush2.bf16.msra.mxu0 0
    %132 = vmatprep.subr.bf16.mxu0 0
    %133 = vmatpush2.bf16.msra.mxu0 0
    %134 = vmatprep.subr.bf16.mxu0 0
    %135 = vmatpush2.bf16.msra.mxu0 0
    %136 = vmatprep.subr.bf16.mxu0 0
    %137 = vmatpush2.bf16.msra.mxu0 0
    %138 = vmatprep.subr.bf16.mxu0 0
    %139 = vmatpush2.bf16.msra.mxu0 0
    %140 = vmatprep.subr.bf16.mxu0 0
    %141 = vmatpush2.bf16.msra.mxu0 0
    %142 = vmatprep.mubr.bf16.mxu0 0
    %143 = vmatmul.mubr.bf16.gmra.mxu0 %v108
    %v144 = vpop.f32.mrf.mxu0
    %v145 = vadd.f32 %v89, %v144
    %v146 = vpop.f32.mrf.mxu0
    %v147 = vadd.f32 %v93, %v146
    %v148 = vpop.f32.mrf.mxu0
    %v149 = vadd.f32 %v89, %v148
    %v150 = vpop.f32.mrf.mxu0
    %v151 = vadd.f32 %v93, %v150
    %152 = vdwg.mxu0
    %v153 = vld [vmem:[%s7] sm:$0xf]
    %v154 = vld [vmem:[%s7 + $0x4] sm:$0xf]
    %v155 = vld [vmem:[%s7 + $0x8] sm:$0xf]
    %v156 = vld [vmem:[%s7 + $0xc] sm:$0xf]
    %v157 = vld [vmem:[%s8] sm:$0xf]
    %v158 = vld [vmem:[%s8 + $0x4] sm:$0xf]
    %v159 = vld [vmem:[%s8 + $0x8] sm:$0xf]
    %v160 = vld [vmem:[%s8 + $0xc] sm:$0xf]
    %v165 = vunpack.c.l.b16 %v153
    %v166 = vunpack.c.l.b16 %v154
    %v167 = vunpack.c.l.b16 %v155
    %v168 = vunpack.c.l.b16 %v156
    %v169 = vpack.c.b16 %v166, %v165
    %v170 = vpack.c.b16 %v168, %v167
    %vm173 = vcmask 261120
    %v175 = vsel %vm173, 0, 0
    %177 = vmatprep.subr.bf16.mxu0 0
    %178 = vmatpush1.bf16.msra.mxu0 0
    %179 = vmatprep.subr.bf16.mxu0 0
    %180 = vmatpush1.bf16.msra.mxu0 0
    %181 = vmatprep.subr.bf16.mxu0 0
    %182 = vmatpush1.bf16.msra.mxu0 0
    %183 = vmatprep.subr.bf16.mxu0 0
    %184 = vmatpush1.bf16.msra.mxu0 0
    %185 = vmatprep.subr.bf16.mxu0 0
    %186 = vmatpush1.bf16.msra.mxu0 0
    %187 = vmatprep.subr.bf16.mxu0 0
    %188 = vmatpush1.bf16.msra.mxu0 0
    %189 = vmatprep.subr.bf16.mxu0 0
    %190 = vmatpush1.bf16.msra.mxu0 %v170
    %191 = vmatprep.subr.bf16.mxu0 0
    %192 = vmatpush1.bf16.msra.mxu0 %v169
    %193 = vmatprep.subr.bf16.mxu0 0
    %194 = vmatpush2.bf16.msra.mxu0 0
    %195 = vmatprep.subr.bf16.mxu0 0
    %196 = vmatpush2.bf16.msra.mxu0 0
    %197 = vmatprep.subr.bf16.mxu0 0
    %198 = vmatpush2.bf16.msra.mxu0 0
    %199 = vmatprep.subr.bf16.mxu0 0
    %200 = vmatpush2.bf16.msra.mxu0 0
    %201 = vmatprep.subr.bf16.mxu0 0
    %202 = vmatpush2.bf16.msra.mxu0 0
    %203 = vmatprep.subr.bf16.mxu0 0
    %204 = vmatpush2.bf16.msra.mxu0 0
    %205 = vmatprep.subr.bf16.mxu0 0
    %206 = vmatpush2.bf16.msra.mxu0 0
    %207 = vmatprep.subr.bf16.mxu0 0
    %208 = vmatpush2.bf16.msra.mxu0 0
    %209 = vmatprep.mubr.bf16.mxu0 0
    %210 = vmatmul.mubr.bf16.gmra.mxu0 %v175
    %v211 = vpop.f32.mrf.mxu0
    %v212 = vadd.f32 0.0, %v211
    %v213 = vpop.f32.mrf.mxu0
    %v214 = vpop.f32.mrf.mxu0
    %v215 = vpop.f32.mrf.mxu0
    %216 = vdwg.mxu0
    %v217 = vadd.f32 %v145, %v212
    %v222 = vunpack.c.l.b16 %v157
    %v223 = vunpack.c.l.b16 %v158
    %v224 = vunpack.c.l.b16 %v159
    %v225 = vunpack.c.l.b16 %v160
    %v226 = vpack.c.b16 %v223, %v222
    %v227 = vpack.c.b16 %v225, %v224
    %230 = vmatprep.subr.bf16.mxu0 0
    %231 = vmatpush1.bf16.msra.mxu0 0
    %232 = vmatprep.subr.bf16.mxu0 0
    %233 = vmatpush1.bf16.msra.mxu0 0
    %234 = vmatprep.subr.bf16.mxu0 0
    %235 = vmatpush1.bf16.msra.mxu0 0
    %236 = vmatprep.subr.bf16.mxu0 0
    %237 = vmatpush1.bf16.msra.mxu0 0
    %238 = vmatprep.subr.bf16.mxu0 0
    %239 = vmatpush1.bf16.msra.mxu0 0
    %240 = vmatprep.subr.bf16.mxu0 0
    %241 = vmatpush1.bf16.msra.mxu0 0
    %242 = vmatprep.subr.bf16.mxu0 0
    %243 = vmatpush1.bf16.msra.mxu0 %v227
    %244 = vmatprep.subr.bf16.mxu0 0
    %245 = vmatpush1.bf16.msra.mxu0 %v226
    %246 = vmatprep.subr.bf16.mxu0 0
    %247 = vmatpush2.bf16.msra.mxu0 0
    %248 = vmatprep.subr.bf16.mxu0 0
    %249 = vmatpush2.bf16.msra.mxu0 0
    %250 = vmatprep.subr.bf16.mxu0 0
    %251 = vmatpush2.bf16.msra.mxu0 0
    %252 = vmatprep.subr.bf16.mxu0 0
    %253 = vmatpush2.bf16.msra.mxu0 0
    %254 = vmatprep.subr.bf16.mxu0 0
    %255 = vmatpush2.bf16.msra.mxu0 0
    %256 = vmatprep.subr.bf16.mxu0 0
    %257 = vmatpush2.bf16.msra.mxu0 0
    %258 = vmatprep.subr.bf16.mxu0 0
    %259 = vmatpush2.bf16.msra.mxu0 0
    %260 = vmatprep.subr.bf16.mxu0 0
    %261 = vmatpush2.bf16.msra.mxu0 0
    %262 = vmatprep.mubr.bf16.mxu0 0
    %263 = vmatmul.mubr.bf16.gmra.mxu0 %v175
    %v264 = vpop.f32.mrf.mxu0
    %v265 = vadd.f32 0.0, %v264
    %v266 = vpop.f32.mrf.mxu0
    %v267 = vpop.f32.mrf.mxu0
    %v268 = vpop.f32.mrf.mxu0
    %269 = vdwg.mxu0
    %v271 = vrot.slane %v265, 2
    %v273 = vadd.f32 %v151, %v271
    %v274 = vxor.u32 %v217, 2147483648
    %v275 = vmul.f32 %v274, 1.442695
    %v276 = vpow.pop %v275
    %v277 = vadd.f32 %v276, 1.0
    %v278 = vrcp.pop %v277
    %v279 = vmul.f32 1.0, %v278
    %v280 = vtanh.pop %v217
    %v281 = vmul.f32 %v279, 0.0
    %283 = vrot.lane.b32.xlu0 %v280, 64
    %v284 = vpop.permute.xlu0 %283
    %v286 = vmul.f32 %v279, %v284
    %288 = vrot.lane.b32.xlu0 %v286, 32
    %v289 = vpop.permute.xlu0 %288
    %v291 = vadd.f32 %v281, %v289
    %v292 = vtanh.pop %v291
    %294 = vrot.lane.b32.xlu0 %v292, 64
    %v295 = vpop.permute.xlu0 %294
    %v297 = vmul.f32 %v279, %v295
    %v298 = vxor.u32 %v273, 2147483648
    %v299 = vmul.f32 %v298, 1.442695
    %v300 = vpow.pop %v299
    %v301 = vadd.f32 %v300, 1.0
    %v302 = vrcp.pop %v301
    %v303 = vmul.f32 1.0, %v302
    %v304 = vtanh.pop %v273
    %v305 = vmul.f32 %v303, 0.0
    %307 = vrot.lane.b32.xlu0 %v304, 64
    %v308 = vpop.permute.xlu0 %307
    %v310 = vmul.f32 %v303, %v308
    %312 = vrot.lane.b32.xlu0 %v310, 32
    %v313 = vpop.permute.xlu0 %312
    %v315 = vadd.f32 %v305, %v313
    %v316 = vtanh.pop %v315
    %318 = vrot.lane.b32.xlu0 %v316, 64
    %v319 = vpop.permute.xlu0 %318
    %v321 = vmul.f32 %v303, %v319
    %v322 = vpack.c.bf16 %v297, %v297
    %324 = vrot.lane.b32.xlu0 %v322, 32
    %v325 = vpop.permute.xlu0 %324
    %v327 = vsel %vm173, %v325, 0
    %329 = vmatprep.subr.bf16.mxu0 0
    %330 = vmatpush1.bf16.msra.mxu0 0
    %331 = vmatprep.subr.bf16.mxu0 0
    %332 = vmatpush1.bf16.msra.mxu0 0
    %333 = vmatprep.subr.bf16.mxu0 0
    %334 = vmatpush1.bf16.msra.mxu0 0
    %335 = vmatprep.subr.bf16.mxu0 0
    %336 = vmatpush1.bf16.msra.mxu0 0
    %337 = vmatprep.subr.bf16.mxu0 0
    %338 = vmatpush1.bf16.msra.mxu0 0
    %339 = vmatprep.subr.bf16.mxu0 0
    %340 = vmatpush1.bf16.msra.mxu0 0
    %341 = vmatprep.subr.bf16.mxu0 0
    %342 = vmatpush1.bf16.msra.mxu0 %v170
    %343 = vmatprep.subr.bf16.mxu0 0
    %344 = vmatpush1.bf16.msra.mxu0 %v169
    %345 = vmatprep.subr.bf16.mxu0 0
    %346 = vmatpush2.bf16.msra.mxu0 0
    %347 = vmatprep.subr.bf16.mxu0 0
    %348 = vmatpush2.bf16.msra.mxu0 0
    %349 = vmatprep.subr.bf16.mxu0 0
    %350 = vmatpush2.bf16.msra.mxu0 0
    %351 = vmatprep.subr.bf16.mxu0 0
    %352 = vmatpush2.bf16.msra.mxu0 0
    %353 = vmatprep.subr.bf16.mxu0 0
    %354 = vmatpush2.bf16.msra.mxu0 0
    %355 = vmatprep.subr.bf16.mxu0 0
    %356 = vmatpush2.bf16.msra.mxu0 0
    %357 = vmatprep.subr.bf16.mxu0 0
    %358 = vmatpush2.bf16.msra.mxu0 0
    %359 = vmatprep.subr.bf16.mxu0 0
    %360 = vmatpush2.bf16.msra.mxu0 0
    %361 = vmatprep.mubr.bf16.mxu0 0
    %362 = vmatmul.mubr.bf16.gmra.mxu0 %v327
    %v363 = vpop.f32.mrf.mxu0
    %v364 = vadd.f32 0.0, %v363
    %v365 = vpop.f32.mrf.mxu0
    %v366 = vpop.f32.mrf.mxu0
    %v367 = vpop.f32.mrf.mxu0
    %368 = vdwg.mxu0
    %v370 = vrot.slane %v364, 6
    %v372 = vadd.f32 %v145, %v370
    %v373 = vpack.c.bf16 %v321, %v321
    %v375 = vrot.slane %v373, 3
    %376 = vrot.lane.b32.xlu0 %v375, 32
    %v377 = vpop.permute.xlu0 %376
    %v379 = vsel %vm173, %v377, 0
    %381 = vmatprep.subr.bf16.mxu0 0
    %382 = vmatpush1.bf16.msra.mxu0 0
    %383 = vmatprep.subr.bf16.mxu0 0
    %384 = vmatpush1.bf16.msra.mxu0 0
    %385 = vmatprep.subr.bf16.mxu0 0
    %386 = vmatpush1.bf16.msra.mxu0 0
    %387 = vmatprep.subr.bf16.mxu0 0
    %388 = vmatpush1.bf16.msra.mxu0 0
    %389 = vmatprep.subr.bf16.mxu0 0
    %390 = vmatpush1.bf16.msra.mxu0 0
    %391 = vmatprep.subr.bf16.mxu0 0
    %392 = vmatpush1.bf16.msra.mxu0 0
    %393 = vmatprep.subr.bf16.mxu0 0
    %394 = vmatpush1.bf16.msra.mxu0 %v227
    %395 = vmatprep.subr.bf16.mxu0 0
    %396 = vmatpush1.bf16.msra.mxu0 %v226
    %397 = vmatprep.subr.bf16.mxu0 0
    %398 = vmatpush2.bf16.msra.mxu0 0
    %399 = vmatprep.subr.bf16.mxu0 0
    %400 = vmatpush2.bf16.msra.mxu0 0
    %401 = vmatprep.subr.bf16.mxu0 0
    %402 = vmatpush2.bf16.msra.mxu0 0
    %403 = vmatprep.subr.bf16.mxu0 0
    %404 = vmatpush2.bf16.msra.mxu0 0
    %405 = vmatprep.subr.bf16.mxu0 0
    %406 = vmatpush2.bf16.msra.mxu0 0
    %407 = vmatprep.subr.bf16.mxu0 0
    %408 = vmatpush2.bf16.msra.mxu0 0
    %409 = vmatprep.subr.bf16.mxu0 0
    %410 = vmatpush2.bf16.msra.mxu0 0
    %411 = vmatprep.subr.bf16.mxu0 0
    %412 = vmatpush2.bf16.msra.mxu0 0
    %413 = vmatprep.mubr.bf16.mxu0 0
    %414 = vmatmul.mubr.bf16.gmra.mxu0 %v379
    %v415 = vpop.f32.mrf.mxu0
    %v416 = vadd.f32 0.0, %v415
    %v417 = vpop.f32.mrf.mxu0
    %v418 = vpop.f32.mrf.mxu0
    %v419 = vpop.f32.mrf.mxu0
    %420 = vdwg.mxu0
    %v422 = vrot.slane %v416, 4
    %v424 = vadd.f32 %v151, %v422
    %v425 = vxor.u32 %v372, 2147483648
    %v426 = vmul.f32 %v425, 1.442695
    %v427 = vpow.pop %v426
    %v428 = vadd.f32 %v427, 1.0
    %v429 = vrcp.pop %v428
    %v430 = vmul.f32 1.0, %v429
    %v431 = vtanh.pop %v372
    %v433 = vrot.slane %v291, 6
    %v435 = vmul.f32 %v430, %v433
    %437 = vrot.lane.b32.xlu0 %v431, 64
    %v438 = vpop.permute.xlu0 %437
    %v440 = vmul.f32 %v430, %v438
    %442 = vrot.lane.b32.xlu0 %v440, 32
    %v443 = vpop.permute.xlu0 %442
    %v445 = vadd.f32 %v435, %v443
    %v446 = vtanh.pop %v445
    %448 = vrot.lane.b32.xlu0 %v446, 64
    %v449 = vpop.permute.xlu0 %448
    %v451 = vmul.f32 %v430, %v449
    %v452 = vxor.u32 %v424, 2147483648
    %v453 = vmul.f32 %v452, 1.442695
    %v454 = vpow.pop %v453
    %v455 = vadd.f32 %v454, 1.0
    %v456 = vrcp.pop %v455
    %v457 = vmul.f32 1.0, %v456
    %v458 = vtanh.pop %v424
    %v460 = vrot.slane %v315, 2
    %v462 = vmul.f32 %v457, %v460
    %464 = vrot.lane.b32.xlu0 %v458, 64
    %v465 = vpop.permute.xlu0 %464
    %v467 = vmul.f32 %v457, %v465
    %469 = vrot.lane.b32.xlu0 %v467, 32
    %v470 = vpop.permute.xlu0 %469
    %v472 = vadd.f32 %v462, %v470
    %v473 = vtanh.pop %v472
    %475 = vrot.lane.b32.xlu0 %v473, 64
    %v476 = vpop.permute.xlu0 %475
    %v478 = vmul.f32 %v457, %v476
    %v479 = vpack.c.bf16 %v451, %v451
    %v481 = vrot.slane %v479, 1
    %482 = vrot.lane.b32.xlu0 %v481, 32
    %v483 = vpop.permute.xlu0 %482
    %v485 = vsel %vm173, %v483, 0
    %487 = vmatprep.subr.bf16.mxu0 0
    %488 = vmatpush1.bf16.msra.mxu0 0
    %489 = vmatprep.subr.bf16.mxu0 0
    %490 = vmatpush1.bf16.msra.mxu0 0
    %491 = vmatprep.subr.bf16.mxu0 0
    %492 = vmatpush1.bf16.msra.mxu0 0
    %493 = vmatprep.subr.bf16.mxu0 0
    %494 = vmatpush1.bf16.msra.mxu0 0
    %495 = vmatprep.subr.bf16.mxu0 0
    %496 = vmatpush1.bf16.msra.mxu0 0
    %497 = vmatprep.subr.bf16.mxu0 0
    %498 = vmatpush1.bf16.msra.mxu0 0
    %499 = vmatprep.subr.bf16.mxu0 0
    %500 = vmatpush1.bf16.msra.mxu0 %v170
    %501 = vmatprep.subr.bf16.mxu0 0
    %502 = vmatpush1.bf16.msra.mxu0 %v169
    %503 = vmatprep.subr.bf16.mxu0 0
    %504 = vmatpush2.bf16.msra.mxu0 0
    %505 = vmatprep.subr.bf16.mxu0 0
    %506 = vmatpush2.bf16.msra.mxu0 0
    %507 = vmatprep.subr.bf16.mxu0 0
    %508 = vmatpush2.bf16.msra.mxu0 0
    %509 = vmatprep.subr.bf16.mxu0 0
    %510 = vmatpush2.bf16.msra.mxu0 0
    %511 = vmatprep.subr.bf16.mxu0 0
    %512 = vmatpush2.bf16.msra.mxu0 0
    %513 = vmatprep.subr.bf16.mxu0 0
    %514 = vmatpush2.bf16.msra.mxu0 0
    %515 = vmatprep.subr.bf16.mxu0 0
    %516 = vmatpush2.bf16.msra.mxu0 0
    %517 = vmatprep.subr.bf16.mxu0 0
    %518 = vmatpush2.bf16.msra.mxu0 0
    %519 = vmatprep.mubr.bf16.mxu0 0
    %520 = vmatmul.mubr.bf16.gmra.mxu0 %v485
    %v521 = vpop.f32.mrf.mxu0
    %v522 = vadd.f32 0.0, %v521
    %v523 = vpop.f32.mrf.mxu0
    %v524 = vpop.f32.mrf.mxu0
    %v525 = vpop.f32.mrf.mxu0
    %526 = vdwg.mxu0
    %v528 = vrot.slane %v522, 4
    %v530 = vadd.f32 %v145, %v528
    %v531 = vpack.c.bf16 %v478, %v478
    %v533 = vrot.slane %v531, 2
    %534 = vrot.lane.b32.xlu0 %v533, 32
    %v535 = vpop.permute.xlu0 %534
    %v537 = vsel %vm173, %v535, 0
    %539 = vmatprep.subr.bf16.mxu0 0
    %540 = vmatpush1.bf16.msra.mxu0 0
    %541 = vmatprep.subr.bf16.mxu0 0
    %542 = vmatpush1.bf16.msra.mxu0 0
    %543 = vmatprep.subr.bf16.mxu0 0
    %544 = vmatpush1.bf16.msra.mxu0 0
    %545 = vmatprep.subr.bf16.mxu0 0
    %546 = vmatpush1.bf16.msra.mxu0 0
    %547 = vmatprep.subr.bf16.mxu0 0
    %548 = vmatpush1.bf16.msra.mxu0 0
    %549 = vmatprep.subr.bf16.mxu0 0
    %550 = vmatpush1.bf16.msra.mxu0 0
    %551 = vmatprep.subr.bf16.mxu0 0
    %552 = vmatpush1.bf16.msra.mxu0 %v227
    %553 = vmatprep.subr.bf16.mxu0 0
    %554 = vmatpush1.bf16.msra.mxu0 %v226
    %555 = vmatprep.subr.bf16.mxu0 0
    %556 = vmatpush2.bf16.msra.mxu0 0
    %557 = vmatprep.subr.bf16.mxu0 0
    %558 = vmatpush2.bf16.msra.mxu0 0
    %559 = vmatprep.subr.bf16.mxu0 0
    %560 = vmatpush2.bf16.msra.mxu0 0
    %561 = vmatprep.subr.bf16.mxu0 0
    %562 = vmatpush2.bf16.msra.mxu0 0
    %563 = vmatprep.subr.bf16.mxu0 0
    %564 = vmatpush2.bf16.msra.mxu0 0
    %565 = vmatprep.subr.bf16.mxu0 0
    %566 = vmatpush2.bf16.msra.mxu0 0
    %567 = vmatprep.subr.bf16.mxu0 0
    %568 = vmatpush2.bf16.msra.mxu0 0
    %569 = vmatprep.subr.bf16.mxu0 0
    %570 = vmatpush2.bf16.msra.mxu0 0
    %571 = vmatprep.mubr.bf16.mxu0 0
    %572 = vmatmul.mubr.bf16.gmra.mxu0 %v537
    %v573 = vpop.f32.mrf.mxu0
    %v574 = vadd.f32 0.0, %v573
    %v575 = vpop.f32.mrf.mxu0
    %v576 = vpop.f32.mrf.mxu0
    %v577 = vpop.f32.mrf.mxu0
    %578 = vdwg.mxu0
    %v580 = vrot.slane %v574, 6
    %v582 = vadd.f32 %v151, %v580
    %v583 = vxor.u32 %v530, 2147483648
    %v584 = vmul.f32 %v583, 1.442695
    %v585 = vpow.pop %v584
    %v586 = vadd.f32 %v585, 1.0
    %v587 = vrcp.pop %v586
    %v588 = vmul.f32 1.0, %v587
    %v589 = vtanh.pop %v530
    %v591 = vrot.slane %v445, 6
    %v593 = vmul.f32 %v588, %v591
    %595 = vrot.lane.b32.xlu0 %v589, 64
    %v596 = vpop.permute.xlu0 %595
    %v598 = vmul.f32 %v588, %v596
    %600 = vrot.lane.b32.xlu0 %v598, 32
    %v601 = vpop.permute.xlu0 %600
    %v603 = vadd.f32 %v593, %v601
    %v604 = vtanh.pop %v603
    %606 = vrot.lane.b32.xlu0 %v604, 64
    %v607 = vpop.permute.xlu0 %606
    %v609 = vmul.f32 %v588, %v607
    %v610 = vxor.u32 %v582, 2147483648
    %v611 = vmul.f32 %v610, 1.442695
    %v612 = vpow.pop %v611
    %v613 = vadd.f32 %v612, 1.0
    %v614 = vrcp.pop %v613
    %v615 = vmul.f32 1.0, %v614
    %v616 = vtanh.pop %v582
    %v618 = vrot.slane %v472, 2
    %v620 = vmul.f32 %v615, %v618
    %622 = vrot.lane.b32.xlu0 %v616, 64
    %v623 = vpop.permute.xlu0 %622
    %v625 = vmul.f32 %v615, %v623
    %627 = vrot.lane.b32.xlu0 %v625, 32
    %v628 = vpop.permute.xlu0 %627
    %v630 = vadd.f32 %v620, %v628
    %v631 = vtanh.pop %v630
    %633 = vrot.lane.b32.xlu0 %v631, 64
    %v634 = vpop.permute.xlu0 %633
    %v636 = vmul.f32 %v615, %v634
    %v637 = vpack.c.bf16 %v609, %v609
    %v639 = vrot.slane %v637, 2
    %640 = vrot.lane.b32.xlu0 %v639, 32
    %v641 = vpop.permute.xlu0 %640
    %v643 = vsel %vm173, %v641, 0
    %645 = vmatprep.subr.bf16.mxu0 0
    %646 = vmatpush1.bf16.msra.mxu0 0
    %647 = vmatprep.subr.bf16.mxu0 0
    %648 = vmatpush1.bf16.msra.mxu0 0
    %649 = vmatprep.subr.bf16.mxu0 0
    %650 = vmatpush1.bf16.msra.mxu0 0
    %651 = vmatprep.subr.bf16.mxu0 0
    %652 = vmatpush1.bf16.msra.mxu0 0
    %653 = vmatprep.subr.bf16.mxu0 0
    %654 = vmatpush1.bf16.msra.mxu0 0
    %655 = vmatprep.subr.bf16.mxu0 0
    %656 = vmatpush1.bf16.msra.mxu0 0
    %657 = vmatprep.subr.bf16.mxu0 0
    %658 = vmatpush1.bf16.msra.mxu0 %v170
    %659 = vmatprep.subr.bf16.mxu0 0
    %660 = vmatpush1.bf16.msra.mxu0 %v169
    %661 = vmatprep.subr.bf16.mxu0 0
    %662 = vmatpush2.bf16.msra.mxu0 0
    %663 = vmatprep.subr.bf16.mxu0 0
    %664 = vmatpush2.bf16.msra.mxu0 0
    %665 = vmatprep.subr.bf16.mxu0 0
    %666 = vmatpush2.bf16.msra.mxu0 0
    %667 = vmatprep.subr.bf16.mxu0 0
    %668 = vmatpush2.bf16.msra.mxu0 0
    %669 = vmatprep.subr.bf16.mxu0 0
    %670 = vmatpush2.bf16.msra.mxu0 0
    %671 = vmatprep.subr.bf16.mxu0 0
    %672 = vmatpush2.bf16.msra.mxu0 0
    %673 = vmatprep.subr.bf16.mxu0 0
    %674 = vmatpush2.bf16.msra.mxu0 0
    %675 = vmatprep.subr.bf16.mxu0 0
    %676 = vmatpush2.bf16.msra.mxu0 0
    %677 = vmatprep.mubr.bf16.mxu0 0
    %678 = vmatmul.mubr.bf16.gmra.mxu0 %v643
    %v679 = vpop.f32.mrf.mxu0
    %v680 = vadd.f32 0.0, %v679
    %v681 = vpop.f32.mrf.mxu0
    %v682 = vpop.f32.mrf.mxu0
    %v683 = vpop.f32.mrf.mxu0
    %684 = vdwg.mxu0
    %v686 = vrot.slane %v680, 2
    %v688 = vadd.f32 %v145, %v686
    %v689 = vpack.c.bf16 %v636, %v636
    %v691 = vrot.slane %v689, 1
    %692 = vrot.lane.b32.xlu0 %v691, 32
    %v693 = vpop.permute.xlu0 %692
    %v695 = vsel %vm173, %v693, 0
    %697 = vmatprep.subr.bf16.mxu0 0
    %698 = vmatpush1.bf16.msra.mxu0 0
    %699 = vmatprep.subr.bf16.mxu0 0
    %700 = vmatpush1.bf16.msra.mxu0 0
    %701 = vmatprep.subr.bf16.mxu0 0
    %702 = vmatpush1.bf16.msra.mxu0 0
    %703 = vmatprep.subr.bf16.mxu0 0
    %704 = vmatpush1.bf16.msra.mxu0 0
    %705 = vmatprep.subr.bf16.mxu0 0
    %706 = vmatpush1.bf16.msra.mxu0 0
    %707 = vmatprep.subr.bf16.mxu0 0
    %708 = vmatpush1.bf16.msra.mxu0 0
    %709 = vmatprep.subr.bf16.mxu0 0
    %710 = vmatpush1.bf16.msra.mxu0 %v227
    %711 = vmatprep.subr.bf16.mxu0 0
    %712 = vmatpush1.bf16.msra.mxu0 %v226
    %713 = vmatprep.subr.bf16.mxu0 0
    %714 = vmatpush2.bf16.msra.mxu0 0
    %715 = vmatprep.subr.bf16.mxu0 0
    %716 = vmatpush2.bf16.msra.mxu0 0
    %717 = vmatprep.subr.bf16.mxu0 0
    %718 = vmatpush2.bf16.msra.mxu0 0
    %719 = vmatprep.subr.bf16.mxu0 0
    %720 = vmatpush2.bf16.msra.mxu0 0
    %721 = vmatprep.subr.bf16.mxu0 0
    %722 = vmatpush2.bf16.msra.mxu0 0
    %723 = vmatprep.subr.bf16.mxu0 0
    %724 = vmatpush2.bf16.msra.mxu0 0
    %725 = vmatprep.subr.bf16.mxu0 0
    %726 = vmatpush2.bf16.msra.mxu0 0
    %727 = vmatprep.subr.bf16.mxu0 0
    %728 = vmatpush2.bf16.msra.mxu0 0
    %729 = vmatprep.mubr.bf16.mxu0 0
    %730 = vmatmul.mubr.bf16.gmra.mxu0 %v695
    %v731 = vpop.f32.mrf.mxu0
    %v732 = vadd.f32 0.0, %v731
    %v733 = vpop.f32.mrf.mxu0
    %v734 = vpop.f32.mrf.mxu0
    %v735 = vpop.f32.mrf.mxu0
    %736 = vdwg.mxu0
    %v737 = vadd.f32 %v151, %v732
    %v738 = vxor.u32 %v688, 2147483648
    %v739 = vmul.f32 %v738, 1.442695
    %v740 = vpow.pop %v739
    %v741 = vadd.f32 %v740, 1.0
    %v742 = vrcp.pop %v741
    %v743 = vmul.f32 1.0, %v742
    %v744 = vtanh.pop %v688
    %v746 = vrot.slane %v603, 6
    %v748 = vmul.f32 %v743, %v746
    %750 = vrot.lane.b32.xlu0 %v744, 64
    %v751 = vpop.permute.xlu0 %750
    %v753 = vmul.f32 %v743, %v751
    %755 = vrot.lane.b32.xlu0 %v753, 32
    %v756 = vpop.permute.xlu0 %755
    %v758 = vadd.f32 %v748, %v756
    %v759 = vtanh.pop %v758
    %761 = vrot.lane.b32.xlu0 %v759, 64
    %v762 = vpop.permute.xlu0 %761
    %v764 = vmul.f32 %v743, %v762
    %v765 = vxor.u32 %v737, 2147483648
    %v766 = vmul.f32 %v765, 1.442695
    %v767 = vpow.pop %v766
    %v768 = vadd.f32 %v767, 1.0
    %v769 = vrcp.pop %v768
    %v770 = vmul.f32 1.0, %v769
    %v771 = vtanh.pop %v737
    %v773 = vrot.slane %v630, 2
    %v775 = vmul.f32 %v770, %v773
    %777 = vrot.lane.b32.xlu0 %v771, 64
    %v778 = vpop.permute.xlu0 %777
    %v780 = vmul.f32 %v770, %v778
    %782 = vrot.lane.b32.xlu0 %v780, 32
    %v783 = vpop.permute.xlu0 %782
    %v785 = vadd.f32 %v775, %v783
    %v786 = vtanh.pop %v785
    %788 = vrot.lane.b32.xlu0 %v786, 64
    %v789 = vpop.permute.xlu0 %788
    %v791 = vmul.f32 %v770, %v789
    %v792 = vpack.c.bf16 %v764, %v764
    %v794 = vrot.slane %v792, 3
    %795 = vrot.lane.b32.xlu0 %v794, 32
    %v796 = vpop.permute.xlu0 %795
    %v798 = vsel %vm173, %v796, 0
    %800 = vmatprep.subr.bf16.mxu0 0
    %801 = vmatpush1.bf16.msra.mxu0 0
    %802 = vmatprep.subr.bf16.mxu0 0
    %803 = vmatpush1.bf16.msra.mxu0 0
    %804 = vmatprep.subr.bf16.mxu0 0
    %805 = vmatpush1.bf16.msra.mxu0 0
    %806 = vmatprep.subr.bf16.mxu0 0
    %807 = vmatpush1.bf16.msra.mxu0 0
    %808 = vmatprep.subr.bf16.mxu0 0
    %809 = vmatpush1.bf16.msra.mxu0 0
    %810 = vmatprep.subr.bf16.mxu0 0
    %811 = vmatpush1.bf16.msra.mxu0 0
    %812 = vmatprep.subr.bf16.mxu0 0
    %813 = vmatpush1.bf16.msra.mxu0 %v170
    %814 = vmatprep.subr.bf16.mxu0 0
    %815 = vmatpush1.bf16.msra.mxu0 %v169
    %816 = vmatprep.subr.bf16.mxu0 0
    %817 = vmatpush2.bf16.msra.mxu0 0
    %818 = vmatprep.subr.bf16.mxu0 0
    %819 = vmatpush2.bf16.msra.mxu0 0
    %820 = vmatprep.subr.bf16.mxu0 0
    %821 = vmatpush2.bf16.msra.mxu0 0
    %822 = vmatprep.subr.bf16.mxu0 0
    %823 = vmatpush2.bf16.msra.mxu0 0
    %824 = vmatprep.subr.bf16.mxu0 0
    %825 = vmatpush2.bf16.msra.mxu0 0
    %826 = vmatprep.subr.bf16.mxu0 0
    %827 = vmatpush2.bf16.msra.mxu0 0
    %828 = vmatprep.subr.bf16.mxu0 0
    %829 = vmatpush2.bf16.msra.mxu0 0
    %830 = vmatprep.subr.bf16.mxu0 0
    %831 = vmatpush2.bf16.msra.mxu0 0
    %832 = vmatprep.mubr.bf16.mxu0 0
    %833 = vmatmul.mubr.bf16.gmra.mxu0 %v798
    %v834 = vpop.f32.mrf.mxu0
    %v835 = vadd.f32 0.0, %v834
    %v836 = vpop.f32.mrf.mxu0
    %v837 = vpop.f32.mrf.mxu0
    %v838 = vpop.f32.mrf.mxu0
    %839 = vdwg.mxu0
    %v840 = vadd.f32 %v149, %v835
    %v841 = vpack.c.bf16 %v791, %v791
    %843 = vrot.lane.b32.xlu0 %v841, 32
    %v844 = vpop.permute.xlu0 %843
    %v846 = vsel %vm173, %v844, 0
    %848 = vmatprep.subr.bf16.mxu0 0
    %849 = vmatpush1.bf16.msra.mxu0 0
    %850 = vmatprep.subr.bf16.mxu0 0
    %851 = vmatpush1.bf16.msra.mxu0 0
    %852 = vmatprep.subr.bf16.mxu0 0
    %853 = vmatpush1.bf16.msra.mxu0 0
    %854 = vmatprep.subr.bf16.mxu0 0
    %855 = vmatpush1.bf16.msra.mxu0 0
    %856 = vmatprep.subr.bf16.mxu0 0
    %857 = vmatpush1.bf16.msra.mxu0 0
    %858 = vmatprep.subr.bf16.mxu0 0
    %859 = vmatpush1.bf16.msra.mxu0 0
    %860 = vmatprep.subr.bf16.mxu0 0
    %861 = vmatpush1.bf16.msra.mxu0 %v227
    %862 = vmatprep.subr.bf16.mxu0 0
    %863 = vmatpush1.bf16.msra.mxu0 %v226
    %864 = vmatprep.subr.bf16.mxu0 0
    %865 = vmatpush2.bf16.msra.mxu0 0
    %866 = vmatprep.subr.bf16.mxu0 0
    %867 = vmatpush2.bf16.msra.mxu0 0
    %868 = vmatprep.subr.bf16.mxu0 0
    %869 = vmatpush2.bf16.msra.mxu0 0
    %870 = vmatprep.subr.bf16.mxu0 0
    %871 = vmatpush2.bf16.msra.mxu0 0
    %872 = vmatprep.subr.bf16.mxu0 0
    %873 = vmatpush2.bf16.msra.mxu0 0
    %874 = vmatprep.subr.bf16.mxu0 0
    %875 = vmatpush2.bf16.msra.mxu0 0
    %876 = vmatprep.subr.bf16.mxu0 0
    %877 = vmatpush2.bf16.msra.mxu0 0
    %878 = vmatprep.subr.bf16.mxu0 0
    %879 = vmatpush2.bf16.msra.mxu0 0
    %880 = vmatprep.mubr.bf16.mxu0 0
    %881 = vmatmul.mubr.bf16.gmra.mxu0 %v846
    %v882 = vpop.f32.mrf.mxu0
    %v883 = vadd.f32 0.0, %v882
    %v884 = vpop.f32.mrf.mxu0
    %v885 = vpop.f32.mrf.mxu0
    %v886 = vpop.f32.mrf.mxu0
    %887 = vdwg.mxu0
    %v889 = vrot.slane %v883, 2
    %v891 = vadd.f32 %v147, %v889
    %v892 = vxor.u32 %v840, 2147483648
    %v893 = vmul.f32 %v892, 1.442695
    %v894 = vpow.pop %v893
    %v895 = vadd.f32 %v894, 1.0
    %v896 = vrcp.pop %v895
    %v897 = vmul.f32 1.0, %v896
    %v898 = vtanh.pop %v840
    %v900 = vrot.slane %v758, 6
    %v902 = vmul.f32 %v897, %v900
    %904 = vrot.lane.b32.xlu0 %v898, 64
    %v905 = vpop.permute.xlu0 %904
    %v907 = vmul.f32 %v897, %v905
    %909 = vrot.lane.b32.xlu0 %v907, 32
    %v910 = vpop.permute.xlu0 %909
    %v912 = vadd.f32 %v902, %v910
    %v913 = vtanh.pop %v912
    %915 = vrot.lane.b32.xlu0 %v913, 64
    %v916 = vpop.permute.xlu0 %915
    %v918 = vmul.f32 %v897, %v916
    %v919 = vxor.u32 %v891, 2147483648
    %v920 = vmul.f32 %v919, 1.442695
    %v921 = vpow.pop %v920
    %v922 = vadd.f32 %v921, 1.0
    %v923 = vrcp.pop %v922
    %v924 = vmul.f32 1.0, %v923
    %v925 = vtanh.pop %v891
    %v927 = vrot.slane %v785, 2
    %v929 = vmul.f32 %v924, %v927
    %931 = vrot.lane.b32.xlu0 %v925, 64
    %v932 = vpop.permute.xlu0 %931
    %v934 = vmul.f32 %v924, %v932
    %936 = vrot.lane.b32.xlu0 %v934, 32
    %v937 = vpop.permute.xlu0 %936
    %v939 = vadd.f32 %v929, %v937
    %v940 = vtanh.pop %v939
    %942 = vrot.lane.b32.xlu0 %v940, 64
    %v943 = vpop.permute.xlu0 %942
    %v945 = vmul.f32 %v924, %v943
    %v946 = vpack.c.bf16 %v918, %v918
    %948 = vrot.lane.b32.xlu0 %v946, 32
    %v949 = vpop.permute.xlu0 %948
    %v951 = vsel %vm173, %v949, 0
    %953 = vmatprep.subr.bf16.mxu0 0
    %954 = vmatpush1.bf16.msra.mxu0 0
    %955 = vmatprep.subr.bf16.mxu0 0
    %956 = vmatpush1.bf16.msra.mxu0 0
    %957 = vmatprep.subr.bf16.mxu0 0
    %958 = vmatpush1.bf16.msra.mxu0 0
    %959 = vmatprep.subr.bf16.mxu0 0
    %960 = vmatpush1.bf16.msra.mxu0 0
    %961 = vmatprep.subr.bf16.mxu0 0
    %962 = vmatpush1.bf16.msra.mxu0 0
    %963 = vmatprep.subr.bf16.mxu0 0
    %964 = vmatpush1.bf16.msra.mxu0 0
    %965 = vmatprep.subr.bf16.mxu0 0
    %966 = vmatpush1.bf16.msra.mxu0 %v170
    %967 = vmatprep.subr.bf16.mxu0 0
    %968 = vmatpush1.bf16.msra.mxu0 %v169
    %969 = vmatprep.subr.bf16.mxu0 0
    %970 = vmatpush2.bf16.msra.mxu0 0
    %971 = vmatprep.subr.bf16.mxu0 0
    %972 = vmatpush2.bf16.msra.mxu0 0
    %973 = vmatprep.subr.bf16.mxu0 0
    %974 = vmatpush2.bf16.msra.mxu0 0
    %975 = vmatprep.subr.bf16.mxu0 0
    %976 = vmatpush2.bf16.msra.mxu0 0
    %977 = vmatprep.subr.bf16.mxu0 0
    %978 = vmatpush2.bf16.msra.mxu0 0
    %979 = vmatprep.subr.bf16.mxu0 0
    %980 = vmatpush2.bf16.msra.mxu0 0
    %981 = vmatprep.subr.bf16.mxu0 0
    %982 = vmatpush2.bf16.msra.mxu0 0
    %983 = vmatprep.subr.bf16.mxu0 0
    %984 = vmatpush2.bf16.msra.mxu0 0
    %985 = vmatprep.mubr.bf16.mxu0 0
    %986 = vmatmul.mubr.bf16.gmra.mxu0 %v951
    %v987 = vpop.f32.mrf.mxu0
    %v988 = vadd.f32 0.0, %v987
    %v989 = vpop.f32.mrf.mxu0
    %v990 = vpop.f32.mrf.mxu0
    %v991 = vpop.f32.mrf.mxu0
    %992 = vdwg.mxu0
    %v994 = vrot.slane %v988, 6
    %v996 = vadd.f32 %v149, %v994
    %v997 = vpack.c.bf16 %v945, %v945
    %v999 = vrot.slane %v997, 3
    %1000 = vrot.lane.b32.xlu0 %v999, 32
    %v1001 = vpop.permute.xlu0 %1000
    %v1003 = vsel %vm173, %v1001, 0
    %1005 = vmatprep.subr.bf16.mxu0 0
    %1006 = vmatpush1.bf16.msra.mxu0 0
    %1007 = vmatprep.subr.bf16.mxu0 0
    %1008 = vmatpush1.bf16.msra.mxu0 0
    %1009 = vmatprep.subr.bf16.mxu0 0
    %1010 = vmatpush1.bf16.msra.mxu0 0
    %1011 = vmatprep.subr.bf16.mxu0 0
    %1012 = vmatpush1.bf16.msra.mxu0 0
    %1013 = vmatprep.subr.bf16.mxu0 0
    %1014 = vmatpush1.bf16.msra.mxu0 0
    %1015 = vmatprep.subr.bf16.mxu0 0
    %1016 = vmatpush1.bf16.msra.mxu0 0
    %1017 = vmatprep.subr.bf16.mxu0 0
    %1018 = vmatpush1.bf16.msra.mxu0 %v227
    %1019 = vmatprep.subr.bf16.mxu0 0
    %1020 = vmatpush1.bf16.msra.mxu0 %v226
    %1021 = vmatprep.subr.bf16.mxu0 0
    %1022 = vmatpush2.bf16.msra.mxu0 0
    %1023 = vmatprep.subr.bf16.mxu0 0
    %1024 = vmatpush2.bf16.msra.mxu0 0
    %1025 = vmatprep.subr.bf16.mxu0 0
    %1026 = vmatpush2.bf16.msra.mxu0 0
    %1027 = vmatprep.subr.bf16.mxu0 0
    %1028 = vmatpush2.bf16.msra.mxu0 0
    %1029 = vmatprep.subr.bf16.mxu0 0
    %1030 = vmatpush2.bf16.msra.mxu0 0
    %1031 = vmatprep.subr.bf16.mxu0 0
    %1032 = vmatpush2.bf16.msra.mxu0 0
    %1033 = vmatprep.subr.bf16.mxu0 0
    %1034 = vmatpush2.bf16.msra.mxu0 0
    %1035 = vmatprep.subr.bf16.mxu0 0
    %1036 = vmatpush2.bf16.msra.mxu0 0
    %1037 = vmatprep.mubr.bf16.mxu0 0
    %1038 = vmatmul.mubr.bf16.gmra.mxu0 %v1003
    %v1039 = vpop.f32.mrf.mxu0
    %v1040 = vadd.f32 0.0, %v1039
    %v1041 = vpop.f32.mrf.mxu0
    %v1042 = vpop.f32.mrf.mxu0
    %v1043 = vpop.f32.mrf.mxu0
    %1044 = vdwg.mxu0
    %v1046 = vrot.slane %v1040, 4
    %v1048 = vadd.f32 %v147, %v1046
    %v1049 = vxor.u32 %v996, 2147483648
    %v1050 = vmul.f32 %v1049, 1.442695
    %v1051 = vpow.pop %v1050
    %v1052 = vadd.f32 %v1051, 1.0
    %v1053 = vrcp.pop %v1052
    %v1054 = vmul.f32 1.0, %v1053
    %v1055 = vtanh.pop %v996
    %v1057 = vrot.slane %v912, 6
    %v1059 = vmul.f32 %v1054, %v1057
    %1061 = vrot.lane.b32.xlu0 %v1055, 64
    %v1062 = vpop.permute.xlu0 %1061
    %v1064 = vmul.f32 %v1054, %v1062
    %1066 = vrot.lane.b32.xlu0 %v1064, 32
    %v1067 = vpop.permute.xlu0 %1066
    %v1069 = vadd.f32 %v1059, %v1067
    %v1070 = vtanh.pop %v1069
    %1072 = vrot.lane.b32.xlu0 %v1070, 64
    %v1073 = vpop.permute.xlu0 %1072
    %v1075 = vmul.f32 %v1054, %v1073
    %v1076 = vxor.u32 %v1048, 2147483648
    %v1077 = vmul.f32 %v1076, 1.442695
    %v1078 = vpow.pop %v1077
    %v1079 = vadd.f32 %v1078, 1.0
    %v1080 = vrcp.pop %v1079
    %v1081 = vmul.f32 1.0, %v1080
    %v1082 = vtanh.pop %v1048
    %v1084 = vrot.slane %v939, 2
    %v1086 = vmul.f32 %v1081, %v1084
    %1088 = vrot.lane.b32.xlu0 %v1082, 64
    %v1089 = vpop.permute.xlu0 %1088
    %v1091 = vmul.f32 %v1081, %v1089
    %1093 = vrot.lane.b32.xlu0 %v1091, 32
    %v1094 = vpop.permute.xlu0 %1093
    %v1096 = vadd.f32 %v1086, %v1094
    %v1097 = vtanh.pop %v1096
    %1099 = vrot.lane.b32.xlu0 %v1097, 64
    %v1100 = vpop.permute.xlu0 %1099
    %v1102 = vmul.f32 %v1081, %v1100
    %v1103 = vpack.c.bf16 %v1075, %v1075
    %v1105 = vrot.slane %v1103, 1
    %1106 = vrot.lane.b32.xlu0 %v1105, 32
    %v1107 = vpop.permute.xlu0 %1106
    %v1109 = vsel %vm173, %v1107, 0
    %1111 = vmatprep.subr.bf16.mxu0 0
    %1112 = vmatpush1.bf16.msra.mxu0 0
    %1113 = vmatprep.subr.bf16.mxu0 0
    %1114 = vmatpush1.bf16.msra.mxu0 0
    %1115 = vmatprep.subr.bf16.mxu0 0
    %1116 = vmatpush1.bf16.msra.mxu0 0
    %1117 = vmatprep.subr.bf16.mxu0 0
    %1118 = vmatpush1.bf16.msra.mxu0 0
    %1119 = vmatprep.subr.bf16.mxu0 0
    %1120 = vmatpush1.bf16.msra.mxu0 0
    %1121 = vmatprep.subr.bf16.mxu0 0
    %1122 = vmatpush1.bf16.msra.mxu0 0
    %1123 = vmatprep.subr.bf16.mxu0 0
    %1124 = vmatpush1.bf16.msra.mxu0 %v170
    %1125 = vmatprep.subr.bf16.mxu0 0
    %1126 = vmatpush1.bf16.msra.mxu0 %v169
    %1127 = vmatprep.subr.bf16.mxu0 0
    %1128 = vmatpush2.bf16.msra.mxu0 0
    %1129 = vmatprep.subr.bf16.mxu0 0
    %1130 = vmatpush2.bf16.msra.mxu0 0
    %1131 = vmatprep.subr.bf16.mxu0 0
    %1132 = vmatpush2.bf16.msra.mxu0 0
    %1133 = vmatprep.subr.bf16.mxu0 0
    %1134 = vmatpush2.bf16.msra.mxu0 0
    %1135 = vmatprep.subr.bf16.mxu0 0
    %1136 = vmatpush2.bf16.msra.mxu0 0
    %1137 = vmatprep.subr.bf16.mxu0 0
    %1138 = vmatpush2.bf16.msra.mxu0 0
    %1139 = vmatprep.subr.bf16.mxu0 0
    %1140 = vmatpush2.bf16.msra.mxu0 0
    %1141 = vmatprep.subr.bf16.mxu0 0
    %1142 = vmatpush2.bf16.msra.mxu0 0
    %1143 = vmatprep.mubr.bf16.mxu0 0
    %1144 = vmatmul.mubr.bf16.gmra.mxu0 %v1109
    %v1145 = vpop.f32.mrf.mxu0
    %v1146 = vadd.f32 0.0, %v1145
    %v1147 = vpop.f32.mrf.mxu0
    %v1148 = vpop.f32.mrf.mxu0
    %v1149 = vpop.f32.mrf.mxu0
    %1150 = vdwg.mxu0
    %v1152 = vrot.slane %v1146, 4
    %v1154 = vadd.f32 %v149, %v1152
    %v1155 = vpack.c.bf16 %v1102, %v1102
    %v1157 = vrot.slane %v1155, 2
    %1158 = vrot.lane.b32.xlu0 %v1157, 32
    %v1159 = vpop.permute.xlu0 %1158
    %v1161 = vsel %vm173, %v1159, 0
    %1163 = vmatprep.subr.bf16.mxu0 0
    %1164 = vmatpush1.bf16.msra.mxu0 0
    %1165 = vmatprep.subr.bf16.mxu0 0
    %1166 = vmatpush1.bf16.msra.mxu0 0
    %1167 = vmatprep.subr.bf16.mxu0 0
    %1168 = vmatpush1.bf16.msra.mxu0 0
    %1169 = vmatprep.subr.bf16.mxu0 0
    %1170 = vmatpush1.bf16.msra.mxu0 0
    %1171 = vmatprep.subr.bf16.mxu0 0
    %1172 = vmatpush1.bf16.msra.mxu0 0
    %1173 = vmatprep.subr.bf16.mxu0 0
    %1174 = vmatpush1.bf16.msra.mxu0 0
    %1175 = vmatprep.subr.bf16.mxu0 0
    %1176 = vmatpush1.bf16.msra.mxu0 %v227
    %1177 = vmatprep.subr.bf16.mxu0 0
    %1178 = vmatpush1.bf16.msra.mxu0 %v226
    %1179 = vmatprep.subr.bf16.mxu0 0
    %1180 = vmatpush2.bf16.msra.mxu0 0
    %1181 = vmatprep.subr.bf16.mxu0 0
    %1182 = vmatpush2.bf16.msra.mxu0 0
    %1183 = vmatprep.subr.bf16.mxu0 0
    %1184 = vmatpush2.bf16.msra.mxu0 0
    %1185 = vmatprep.subr.bf16.mxu0 0
    %1186 = vmatpush2.bf16.msra.mxu0 0
    %1187 = vmatprep.subr.bf16.mxu0 0
    %1188 = vmatpush2.bf16.msra.mxu0 0
    %1189 = vmatprep.subr.bf16.mxu0 0
    %1190 = vmatpush2.bf16.msra.mxu0 0
    %1191 = vmatprep.subr.bf16.mxu0 0
    %1192 = vmatpush2.bf16.msra.mxu0 0
    %1193 = vmatprep.subr.bf16.mxu0 0
    %1194 = vmatpush2.bf16.msra.mxu0 0
    %1195 = vmatprep.mubr.bf16.mxu0 0
    %1196 = vmatmul.mubr.bf16.gmra.mxu0 %v1161
    %v1197 = vpop.f32.mrf.mxu0
    %v1198 = vadd.f32 0.0, %v1197
    %v1199 = vpop.f32.mrf.mxu0
    %v1200 = vpop.f32.mrf.mxu0
    %v1201 = vpop.f32.mrf.mxu0
    %1202 = vdwg.mxu0
    %v1204 = vrot.slane %v1198, 6
    %v1206 = vadd.f32 %v147, %v1204
    %v1207 = vxor.u32 %v1154, 2147483648
    %v1208 = vmul.f32 %v1207, 1.442695
    %v1209 = vpow.pop %v1208
    %v1210 = vadd.f32 %v1209, 1.0
    %v1211 = vrcp.pop %v1210
    %v1212 = vmul.f32 1.0, %v1211
    %v1213 = vtanh.pop %v1154
    %v1215 = vrot.slane %v1069, 6
    %v1217 = vmul.f32 %v1212, %v1215
    %1219 = vrot.lane.b32.xlu0 %v1213, 64
    %v1220 = vpop.permute.xlu0 %1219
    %v1222 = vmul.f32 %v1212, %v1220
    %1224 = vrot.lane.b32.xlu0 %v1222, 32
    %v1225 = vpop.permute.xlu0 %1224
    %v1227 = vadd.f32 %v1217, %v1225
    %v1228 = vtanh.pop %v1227
    %1230 = vrot.lane.b32.xlu0 %v1228, 64
    %v1231 = vpop.permute.xlu0 %1230
    %v1233 = vmul.f32 %v1212, %v1231
    %v1234 = vxor.u32 %v1206, 2147483648
    %v1235 = vmul.f32 %v1234, 1.442695
    %v1236 = vpow.pop %v1235
    %v1237 = vadd.f32 %v1236, 1.0
    %v1238 = vrcp.pop %v1237
    %v1239 = vmul.f32 1.0, %v1238
    %v1240 = vtanh.pop %v1206
    %v1242 = vrot.slane %v1096, 2
    %v1244 = vmul.f32 %v1239, %v1242
    %1246 = vrot.lane.b32.xlu0 %v1240, 64
    %v1247 = vpop.permute.xlu0 %1246
    %v1249 = vmul.f32 %v1239, %v1247
    %1251 = vrot.lane.b32.xlu0 %v1249, 32
    %v1252 = vpop.permute.xlu0 %1251
    %v1254 = vadd.f32 %v1244, %v1252
    %v1255 = vtanh.pop %v1254
    %1257 = vrot.lane.b32.xlu0 %v1255, 64
    %v1258 = vpop.permute.xlu0 %1257
    %v1260 = vmul.f32 %v1239, %v1258
    %v1261 = vpack.c.bf16 %v1233, %v1233
    %v1263 = vrot.slane %v1261, 2
    %1264 = vrot.lane.b32.xlu0 %v1263, 32
    %v1265 = vpop.permute.xlu0 %1264
    %v1267 = vsel %vm173, %v1265, 0
    %1269 = vmatprep.subr.bf16.mxu0 0
    %1270 = vmatpush1.bf16.msra.mxu0 0
    %1271 = vmatprep.subr.bf16.mxu0 0
    %1272 = vmatpush1.bf16.msra.mxu0 0
    %1273 = vmatprep.subr.bf16.mxu0 0
    %1274 = vmatpush1.bf16.msra.mxu0 0
    %1275 = vmatprep.subr.bf16.mxu0 0
    %1276 = vmatpush1.bf16.msra.mxu0 0
    %1277 = vmatprep.subr.bf16.mxu0 0
    %1278 = vmatpush1.bf16.msra.mxu0 0
    %1279 = vmatprep.subr.bf16.mxu0 0
    %1280 = vmatpush1.bf16.msra.mxu0 0
    %1281 = vmatprep.subr.bf16.mxu0 0
    %1282 = vmatpush1.bf16.msra.mxu0 %v170
    %1283 = vmatprep.subr.bf16.mxu0 0
    %1284 = vmatpush1.bf16.msra.mxu0 %v169
    %1285 = vmatprep.subr.bf16.mxu0 0
    %1286 = vmatpush2.bf16.msra.mxu0 0
    %1287 = vmatprep.subr.bf16.mxu0 0
    %1288 = vmatpush2.bf16.msra.mxu0 0
    %1289 = vmatprep.subr.bf16.mxu0 0
    %1290 = vmatpush2.bf16.msra.mxu0 0
    %1291 = vmatprep.subr.bf16.mxu0 0
    %1292 = vmatpush2.bf16.msra.mxu0 0
    %1293 = vmatprep.subr.bf16.mxu0 0
    %1294 = vmatpush2.bf16.msra.mxu0 0
    %1295 = vmatprep.subr.bf16.mxu0 0
    %1296 = vmatpush2.bf16.msra.mxu0 0
    %1297 = vmatprep.subr.bf16.mxu0 0
    %1298 = vmatpush2.bf16.msra.mxu0 0
    %1299 = vmatprep.subr.bf16.mxu0 0
    %1300 = vmatpush2.bf16.msra.mxu0 0
    %1301 = vmatprep.mubr.bf16.mxu0 0
    %1302 = vmatmul.mubr.bf16.gmra.mxu0 %v1267
    %v1303 = vpop.f32.mrf.mxu0
    %v1304 = vadd.f32 0.0, %v1303
    %v1305 = vpop.f32.mrf.mxu0
    %v1306 = vpop.f32.mrf.mxu0
    %v1307 = vpop.f32.mrf.mxu0
    %1308 = vdwg.mxu0
    %v1310 = vrot.slane %v1304, 2
    %v1312 = vadd.f32 %v149, %v1310
    %v1313 = vpack.c.bf16 %v1260, %v1260
    %v1315 = vrot.slane %v1313, 1
    %1316 = vrot.lane.b32.xlu0 %v1315, 32
    %v1317 = vpop.permute.xlu0 %1316
    %v1319 = vsel %vm173, %v1317, 0
    %1321 = vmatprep.subr.bf16.mxu0 0
    %1322 = vmatpush1.bf16.msra.mxu0 0
    %1323 = vmatprep.subr.bf16.mxu0 0
    %1324 = vmatpush1.bf16.msra.mxu0 0
    %1325 = vmatprep.subr.bf16.mxu0 0
    %1326 = vmatpush1.bf16.msra.mxu0 0
    %1327 = vmatprep.subr.bf16.mxu0 0
    %1328 = vmatpush1.bf16.msra.mxu0 0
    %1329 = vmatprep.subr.bf16.mxu0 0
    %1330 = vmatpush1.bf16.msra.mxu0 0
    %1331 = vmatprep.subr.bf16.mxu0 0
    %1332 = vmatpush1.bf16.msra.mxu0 0
    %1333 = vmatprep.subr.bf16.mxu0 0
    %1334 = vmatpush1.bf16.msra.mxu0 %v227
    %1335 = vmatprep.subr.bf16.mxu0 0
    %1336 = vmatpush1.bf16.msra.mxu0 %v226
    %1337 = vmatprep.subr.bf16.mxu0 0
    %1338 = vmatpush2.bf16.msra.mxu0 0
    %1339 = vmatprep.subr.bf16.mxu0 0
    %1340 = vmatpush2.bf16.msra.mxu0 0
    %1341 = vmatprep.subr.bf16.mxu0 0
    %1342 = vmatpush2.bf16.msra.mxu0 0
    %1343 = vmatprep.subr.bf16.mxu0 0
    %1344 = vmatpush2.bf16.msra.mxu0 0
    %1345 = vmatprep.subr.bf16.mxu0 0
    %1346 = vmatpush2.bf16.msra.mxu0 0
    %1347 = vmatprep.subr.bf16.mxu0 0
    %1348 = vmatpush2.bf16.msra.mxu0 0
    %1349 = vmatprep.subr.bf16.mxu0 0
    %1350 = vmatpush2.bf16.msra.mxu0 0
    %1351 = vmatprep.subr.bf16.mxu0 0
    %1352 = vmatpush2.bf16.msra.mxu0 0
    %1353 = vmatprep.mubr.bf16.mxu0 0
    %1354 = vmatmul.mubr.bf16.gmra.mxu0 %v1319
    %v1355 = vpop.f32.mrf.mxu0
    %v1356 = vadd.f32 0.0, %v1355
    %v1357 = vpop.f32.mrf.mxu0
    %v1358 = vpop.f32.mrf.mxu0
    %v1359 = vpop.f32.mrf.mxu0
    %1360 = vdwg.mxu0
    %v1361 = vadd.f32 %v147, %v1356
    %v1362 = vxor.u32 %v1312, 2147483648
    %v1363 = vmul.f32 %v1362, 1.442695
    %v1364 = vpow.pop %v1363
    %v1365 = vadd.f32 %v1364, 1.0
    %v1366 = vrcp.pop %v1365
    %v1367 = vmul.f32 1.0, %v1366
    %v1368 = vtanh.pop %v1312
    %v1370 = vrot.slane %v1227, 6
    %v1372 = vmul.f32 %v1367, %v1370
    %1374 = vrot.lane.b32.xlu0 %v1368, 64
    %v1375 = vpop.permute.xlu0 %1374
    %v1377 = vmul.f32 %v1367, %v1375
    %1379 = vrot.lane.b32.xlu0 %v1377, 32
    %v1380 = vpop.permute.xlu0 %1379
    %v1382 = vadd.f32 %v1372, %v1380
    %v1383 = vxor.u32 %v1361, 2147483648
    %v1384 = vmul.f32 %v1383, 1.442695
    %v1385 = vpow.pop %v1384
    %v1386 = vadd.f32 %v1385, 1.0
    %v1387 = vrcp.pop %v1386
    %v1388 = vmul.f32 1.0, %v1387
    %v1389 = vtanh.pop %v1361
    %v1391 = vrot.slane %v1254, 2
    %v1393 = vmul.f32 %v1388, %v1391
    %1395 = vrot.lane.b32.xlu0 %v1389, 64
    %v1396 = vpop.permute.xlu0 %1395
    %v1398 = vmul.f32 %v1388, %v1396
    %1400 = vrot.lane.b32.xlu0 %v1398, 32
    %v1401 = vpop.permute.xlu0 %1400
    %v1403 = vadd.f32 %v1393, %v1401
    %1405 = vrot.lane.b32.xlu0 %v1382, 96
    %v1406 = vpop.permute.xlu0 %1405
    %v1409 = vrot.slane %v1403, 2
    %v1411 = vsel %vm173, %v1406, %v1409
    %v1412 = vpack.c.bf16 %v1411, %v1411
    %v1413 = vld [vmem:[%s9] sm:$0xf]
    %v1414 = vld [vmem:[%s9 + $0x4] sm:$0xf]
    %v1415 = vld [vmem:[%s9 + $0x8] sm:$0xf]
    %v1416 = vld [vmem:[%s9 + $0xc] sm:$0xf]
    %v1417 = vld [vmem:[%s9 + $0x10] sm:$0xf]
    %v1418 = vld [vmem:[%s9 + $0x14] sm:$0xf]
    %v1419 = vld [vmem:[%s9 + $0x18] sm:$0xf]
    %v1420 = vld [vmem:[%s9 + $0x1c] sm:$0xf]
    %v1421 = vld [vmem:[%s10] sm:$0x1]
    %v1423 = vlaneseq
    %v1424 = vshrl.u32 %v1423, 7
    %v1425 = vsub.s32 0, %v1424
    %v1426 = vrot.slane %v1421, %v1425
    %v1429 = vrot.slane %v1412, 3
    %v1438 = vunpack.c.l.b16 %v1413
    %v1439 = vunpack.c.l.b16 %v1414
    %v1440 = vunpack.c.l.b16 %v1415
    %v1441 = vunpack.c.l.b16 %v1416
    %v1442 = vunpack.c.l.b16 %v1417
    %v1443 = vunpack.c.l.b16 %v1418
    %v1444 = vunpack.c.l.b16 %v1419
    %v1445 = vunpack.c.l.b16 %v1420
    %v1446 = vpack.c.b16 %v1439, %v1438
    %v1447 = vpack.c.b16 %v1441, %v1440
    %v1448 = vpack.c.b16 %v1443, %v1442
    %v1449 = vpack.c.b16 %v1445, %v1444
    %vm1454 = vcmask 523264
    %v1456 = vsel %vm1454, %v1429, 0
    %1458 = vmatprep.subr.bf16.mxu0 0
    %1459 = vmatpush1.bf16.msra.mxu0 0
    %1460 = vmatprep.subr.bf16.mxu0 0
    %1461 = vmatpush1.bf16.msra.mxu0 0
    %1462 = vmatprep.subr.bf16.mxu0 0
    %1463 = vmatpush1.bf16.msra.mxu0 0
    %1464 = vmatprep.subr.bf16.mxu0 0
    %1465 = vmatpush1.bf16.msra.mxu0 0
    %1466 = vmatprep.subr.bf16.mxu0 0
    %1467 = vmatpush1.bf16.msra.mxu0 %v1449
    %1468 = vmatprep.subr.bf16.mxu0 0
    %1469 = vmatpush1.bf16.msra.mxu0 %v1448
    %1470 = vmatprep.subr.bf16.mxu0 0
    %1471 = vmatpush1.bf16.msra.mxu0 %v1447
    %1472 = vmatprep.subr.bf16.mxu0 0
    %1473 = vmatpush1.bf16.msra.mxu0 %v1446
    %1474 = vmatprep.subr.bf16.mxu0 0
    %1475 = vmatpush2.bf16.msra.mxu0 0
    %1476 = vmatprep.subr.bf16.mxu0 0
    %1477 = vmatpush2.bf16.msra.mxu0 0
    %1478 = vmatprep.subr.bf16.mxu0 0
    %1479 = vmatpush2.bf16.msra.mxu0 0
    %1480 = vmatprep.subr.bf16.mxu0 0
    %1481 = vmatpush2.bf16.msra.mxu0 0
    %1482 = vmatprep.subr.bf16.mxu0 0
    %1483 = vmatpush2.bf16.msra.mxu0 0
    %1484 = vmatprep.subr.bf16.mxu0 0
    %1485 = vmatpush2.bf16.msra.mxu0 0
    %1486 = vmatprep.subr.bf16.mxu0 0
    %1487 = vmatpush2.bf16.msra.mxu0 0
    %1488 = vmatprep.subr.bf16.mxu0 0
    %1489 = vmatpush2.bf16.msra.mxu0 0
    %1490 = vmatprep.mubr.bf16.mxu0 0
    %1491 = vmatmul.mubr.bf16.gmra.mxu0 %v1456
    %v1492 = vpop.f32.mrf.mxu0
    %v1493 = vadd.f32 %v1426, %v1492
    %v1494 = vpop.f32.mrf.mxu0
    %v1495 = vpop.f32.mrf.mxu0
    %v1496 = vpop.f32.mrf.mxu0
    %1497 = vdwg.mxu0
    %v1498 = vmul.f32 %v1493, 0.5
    %v1499 = vmul.f32 %v1498, 1.442695
    %v1500 = vpow.pop %v1499
    %v1501 = vld [vmem:[%s2] sm:$0x3]
    %1503 = vrot.lane.b32.xlu0 %v1500, 112
    %v1504 = vpop.permute.xlu0 %1503
    %v1506 = vmul.f32 %v1501, %v1504
    %v1507 = vadd.f32 %v1506, %v1493
    %v1508 = vtanh.pop %v1507
    %vm1509 = vcmask 123904
    %1510 = vst.msk [vmem:[#allocation8] sm:$0x3] %vm1509, %v1508
    %v1511 = vmul.f32 %v1493, %v1493
    %1513 = vrot.lane.b32.xlu0 %v1511, 16
    %v1514 = vpop.permute.xlu0 %1513
    %v1516 = vsub.f32 %v1493, %v1514
    %v1517 = vmul.f32 %v1493, 1.442695
    %v1518 = vpow.pop %v1517
    %v1519 = vsub.f32 %v1516, %v1518
    %v1520 = vadd.f32 %v1519, 1.0
    %1522 = vrot.lane.b32.xlu0 %v1520, 112
    %v1523 = vpop.permute.xlu0 %1522
    %v1525 = vsel %vm1509, %v1523, 0.0
    %1526 = vadd.xlane.f32.xlu0 %v1525
    %v1527 = vpop.xlane.xlu0 %1526
    %v1528 = vmul.f32 %v1527, -0.5
    %vm1529 = vcmask 1041408
    %v1530 = vsel %vm1529, %v1528, 0.0
    %v1531 = vrot.slane %v1530, 4
    %v1532 = vadd.f32 %v1530, %v1531
    %v1533 = vrot.slane %v1532, 2
    %v1534 = vadd.f32 %v1532, %v1533
    %v1535 = vrot.slane %v1534, 1
    %v1536 = vadd.f32 %v1534, %v1535
    %v1537 = vrcp.pop 2.0
    %v1538 = vmul.f32 %v1536, %v1537
    %vm1539 = vcmask 0
    %1540 = vst.msk [vmem:[#allocation7] sm:$0x1] %vm1539, %v1538
    %v1541 = vld [vmem:[%s1] sm:$0xff]
    %v1542 = vld [vmem:[%s1 + $0x8] sm:$0xff]
    %v1543 = vld [vmem:[%s1 + $0x10] sm:$0x3]
    %1544 = vset.pattern.permute.xlu0 0
    %1545 = vperm.xlu0 %1544, %v1541
    %v1546 = vpop.permute.xlu0 %1545
    %1547 = vset.pattern.permute.xlu0 0
    %1548 = vperm.xlu0 %1547, %v1542
    %v1549 = vpop.permute.xlu0 %1548
    %1550 = vset.pattern.permute.xlu0 0
    %1551 = vperm.xlu0 %1550, %v1543
    %v1552 = vpop.permute.xlu0 %1551
    %vm1553 = vcmp.eq.s32.totalorder %v1546, %v68
    %vm1554 = vcmp.eq.s32.totalorder %v1549, %v68
    %vm1555 = vcmp.eq.s32.totalorder %v1552, %v68
    %v1556 = vsel %vm1553, 1, 0
    %v1557 = vsel %vm1554, 1, 0
    %v1558 = vsel %vm1555, 1, 0
    %v1559 = vcvt.s32.f32 %v1556
    %v1560 = vcvt.s32.f32 %v1557
    %v1561 = vcvt.s32.f32 %v1558
    %v1562 = vpack.c.bf16 %v1560, %v1559
    %v1563 = vpack.c.bf16 %v1561, %v1561
    %v1564 = vld [vmem:[%s11] sm:$0xf]
    %v1565 = vld [vmem:[%s11 + $0x4] sm:$0xf]
    %v1566 = vld [vmem:[%s12] sm:$0x1]
    %v1568 = vlaneseq
    %v1569 = vshrl.u32 %v1568, 7
    %v1570 = vsub.s32 0, %v1569
    %v1571 = vrot.slane %v1566, %v1570
    %v1575 = vunpack.c.l.b16 %v1564
    %v1576 = vunpack.c.l.b16 %v1565
    %v1577 = vpack.c.b16 %v1576, %v1575
    %v1580 = vsel %vm106, %v1562, 0
    %v1583 = vsel %vm106, %v1563, 0
    %1585 = vmatprep.subr.bf16.mxu0 0
    %1586 = vmatpush1.bf16.msra.mxu0 0
    %1587 = vmatprep.subr.bf16.mxu0 0
    %1588 = vmatpush1.bf16.msra.mxu0 0
    %1589 = vmatprep.subr.bf16.mxu0 0
    %1590 = vmatpush1.bf16.msra.mxu0 0
    %1591 = vmatprep.subr.bf16.mxu0 0
    %1592 = vmatpush1.bf16.msra.mxu0 0
    %1593 = vmatprep.subr.bf16.mxu0 0
    %1594 = vmatpush1.bf16.msra.mxu0 0
    %1595 = vmatprep.subr.bf16.mxu0 0
    %1596 = vmatpush1.bf16.msra.mxu0 0
    %1597 = vmatprep.subr.bf16.mxu0 0
    %1598 = vmatpush1.bf16.msra.mxu0 0
    %1599 = vmatprep.subr.bf16.mxu0 0
    %1600 = vmatpush1.bf16.msra.mxu0 %v1577
    %1601 = vmatprep.subr.bf16.mxu0 0
    %1602 = vmatpush2.bf16.msra.mxu0 0
    %1603 = vmatprep.subr.bf16.mxu0 0
    %1604 = vmatpush2.bf16.msra.mxu0 0
    %1605 = vmatprep.subr.bf16.mxu0 0
    %1606 = vmatpush2.bf16.msra.mxu0 0
    %1607 = vmatprep.subr.bf16.mxu0 0
    %1608 = vmatpush2.bf16.msra.mxu0 0
    %1609 = vmatprep.subr.bf16.mxu0 0
    %1610 = vmatpush2.bf16.msra.mxu0 0
    %1611 = vmatprep.subr.bf16.mxu0 0
    %1612 = vmatpush2.bf16.msra.mxu0 0
    %1613 = vmatprep.subr.bf16.mxu0 0
    %1614 = vmatpush2.bf16.msra.mxu0 0
    %1615 = vmatprep.subr.bf16.mxu0 0
    %1616 = vmatpush2.bf16.msra.mxu0 0
    %1617 = vmatprep.mubr.bf16.mxu0 0
    %1618 = vmatmul.mubr.bf16.gmra.mxu0 %v1580
    %v1619 = vpop.f32.mrf.mxu0
    %v1620 = vadd.f32 %v1571, %v1619
    %v1621 = vpop.f32.mrf.mxu0
    %v1622 = vpop.f32.mrf.mxu0
    %v1623 = vadd.f32 %v1571, %v1622
    %v1624 = vpop.f32.mrf.mxu0
    %1625 = vmatprep.mubr.bf16.mxu0 0
    %1626 = vmatmul.mubr.bf16.gmra.mxu0 %v1583
    %v1627 = vpop.f32.mrf.mxu0
    %v1628 = vadd.f32 %v1571, %v1627
    %v1629 = vpop.f32.mrf.mxu0
    %v1630 = vpop.f32.mrf.mxu0
    %v1631 = vpop.f32.mrf.mxu0
    %1632 = vdwg.mxu0
    %v1633 = vpack.c.bf16 %v1508, %v1508
    %v1634 = vld [vmem:[%s13] sm:$0xf]
    %v1635 = vld [vmem:[%s13 + $0x4] sm:$0xf]
    %v1638 = vunpack.c.l.b16 %v1634
    %v1639 = vunpack.c.l.b16 %v1635
    %v1640 = vpack.c.b16 %v1639, %v1638
    %v1643 = vsel %vm106, %v1633, 0
    %1645 = vmatprep.subr.bf16.mxu0 0
    %1646 = vmatpush1.bf16.msra.mxu0 0
    %1647 = vmatprep.subr.bf16.mxu0 0
    %1648 = vmatpush1.bf16.msra.mxu0 0
    %1649 = vmatprep.subr.bf16.mxu0 0
    %1650 = vmatpush1.bf16.msra.mxu0 0
    %1651 = vmatprep.subr.bf16.mxu0 0
    %1652 = vmatpush1.bf16.msra.mxu0 0
    %1653 = vmatprep.subr.bf16.mxu0 0
    %1654 = vmatpush1.bf16.msra.mxu0 0
    %1655 = vmatprep.subr.bf16.mxu0 0
    %1656 = vmatpush1.bf16.msra.mxu0 0
    %1657 = vmatprep.subr.bf16.mxu0 0
    %1658 = vmatpush1.bf16.msra.mxu0 0
    %1659 = vmatprep.subr.bf16.mxu0 0
    %1660 = vmatpush1.bf16.msra.mxu0 %v1640
    %1661 = vmatprep.subr.bf16.mxu0 0
    %1662 = vmatpush2.bf16.msra.mxu0 0
    %1663 = vmatprep.subr.bf16.mxu0 0
    %1664 = vmatpush2.bf16.msra.mxu0 0
    %1665 = vmatprep.subr.bf16.mxu0 0
    %1666 = vmatpush2.bf16.msra.mxu0 0
    %1667 = vmatprep.subr.bf16.mxu0 0
    %1668 = vmatpush2.bf16.msra.mxu0 0
    %1669 = vmatprep.subr.bf16.mxu0 0
    %1670 = vmatpush2.bf16.msra.mxu0 0
    %1671 = vmatprep.subr.bf16.mxu0 0
    %1672 = vmatpush2.bf16.msra.mxu0 0
    %1673 = vmatprep.subr.bf16.mxu0 0
    %1674 = vmatpush2.bf16.msra.mxu0 0
    %1675 = vmatprep.subr.bf16.mxu0 0
    %1676 = vmatpush2.bf16.msra.mxu0 0
    %1677 = vmatprep.mubr.bf16.mxu0 0
    %1678 = vmatmul.mubr.bf16.gmra.mxu0 %v1643
    %v1679 = vpop.f32.mrf.mxu0
    %v1680 = vadd.f32 0.0, %v1679
    %v1681 = vpop.f32.mrf.mxu0
    %v1682 = vpop.f32.mrf.mxu0
    %v1683 = vpop.f32.mrf.mxu0
    %1684 = vdwg.mxu0
    %v1685 = vld [vmem:[%s14] sm:$0xf]
    %v1686 = vld [vmem:[%s14 + $0x4] sm:$0xf]
    %v1687 = vld [vmem:[%s14 + $0x8] sm:$0xf]
    %v1688 = vld [vmem:[%s14 + $0xc] sm:$0xf]
    %v1689 = vld [vmem:[%s3] sm:$0x3]
    %v1690 = vld [vmem:[%s4] sm:$0x3]
    %v1691 = vadd.f32 %v1620, %v1680
    %v1692 = vpack.c.bf16 %v1689, %v1689
    %v1697 = vunpack.c.l.b16 %v1685
    %v1698 = vunpack.c.l.b16 %v1686
    %v1699 = vunpack.c.l.b16 %v1687
    %v1700 = vunpack.c.l.b16 %v1688
    %v1701 = vpack.c.b16 %v1698, %v1697
    %v1702 = vpack.c.b16 %v1700, %v1699
    %v1706 = vsel %vm173, %v1692, 0
    %1708 = vmatprep.subr.bf16.mxu0 0
    %1709 = vmatpush1.bf16.msra.mxu0 0
    %1710 = vmatprep.subr.bf16.mxu0 0
    %1711 = vmatpush1.bf16.msra.mxu0 0
    %1712 = vmatprep.subr.bf16.mxu0 0
    %1713 = vmatpush1.bf16.msra.mxu0 0
    %1714 = vmatprep.subr.bf16.mxu0 0
    %1715 = vmatpush1.bf16.msra.mxu0 0
    %1716 = vmatprep.subr.bf16.mxu0 0
    %1717 = vmatpush1.bf16.msra.mxu0 0
    %1718 = vmatprep.subr.bf16.mxu0 0
    %1719 = vmatpush1.bf16.msra.mxu0 0
    %1720 = vmatprep.subr.bf16.mxu0 0
    %1721 = vmatpush1.bf16.msra.mxu0 %v1702
    %1722 = vmatprep.subr.bf16.mxu0 0
    %1723 = vmatpush1.bf16.msra.mxu0 %v1701
    %1724 = vmatprep.subr.bf16.mxu0 0
    %1725 = vmatpush2.bf16.msra.mxu0 0
    %1726 = vmatprep.subr.bf16.mxu0 0
    %1727 = vmatpush2.bf16.msra.mxu0 0
    %1728 = vmatprep.subr.bf16.mxu0 0
    %1729 = vmatpush2.bf16.msra.mxu0 0
    %1730 = vmatprep.subr.bf16.mxu0 0
    %1731 = vmatpush2.bf16.msra.mxu0 0
    %1732 = vmatprep.subr.bf16.mxu0 0
    %1733 = vmatpush2.bf16.msra.mxu0 0
    %1734 = vmatprep.subr.bf16.mxu0 0
    %1735 = vmatpush2.bf16.msra.mxu0 0
    %1736 = vmatprep.subr.bf16.mxu0 0
    %1737 = vmatpush2.bf16.msra.mxu0 0
    %1738 = vmatprep.subr.bf16.mxu0 0
    %1739 = vmatpush2.bf16.msra.mxu0 0
    %1740 = vmatprep.mubr.bf16.mxu0 0
    %1741 = vmatmul.mubr.bf16.gmra.mxu0 %v1706
    %v1742 = vpop.f32.mrf.mxu0
    %v1743 = vadd.f32 0.0, %v1742
    %v1744 = vpop.f32.mrf.mxu0
    %v1745 = vpop.f32.mrf.mxu0
    %v1746 = vpop.f32.mrf.mxu0
    %1747 = vdwg.mxu0
    %v1748 = vadd.f32 %v1691, %v1743
    %v1749 = vxor.u32 %v1748, 2147483648
    %v1750 = vmul.f32 %v1749, 1.442695
    %v1751 = vpow.pop %v1750
    %v1752 = vadd.f32 %v1751, 1.0
    %v1753 = vrcp.pop %v1752
    %v1754 = vmul.f32 1.0, %v1753
    %v1755 = vtanh.pop %v1748
    %1757 = vrot.lane.b32.xlu0 %v1690, 32
    %v1758 = vpop.permute.xlu0 %1757
    %v1760 = vmul.f32 %v1754, %v1758
    %1762 = vrot.lane.b32.xlu0 %v1755, 64
    %v1763 = vpop.permute.xlu0 %1762
    %v1765 = vmul.f32 %v1754, %v1763
    %1767 = vrot.lane.b32.xlu0 %v1765, 32
    %v1768 = vpop.permute.xlu0 %1767
    %v1770 = vadd.f32 %v1760, %v1768
    %v1771 = vtanh.pop %v1770
    %1773 = vrot.lane.b32.xlu0 %v1771, 64
    %v1774 = vpop.permute.xlu0 %1773
    %v1776 = vmul.f32 %v1754, %v1774
    %1778 = vrot.lane.b32.xlu0 %v1776, 32
    %v1779 = vpop.permute.xlu0 %1778
    %vm1781 = vcmask 254976
    %1782 = vst.msk [vmem:[#allocation2] sm:$0x3] %vm1781, %v1779
    %v1784 = vrot.slane %v1680, 6
    %v1786 = vadd.f32 %v1620, %v1784
    %v1787 = vpack.c.bf16 %v1776, %v1776
    %1789 = vrot.lane.b32.xlu0 %v1787, 32
    %v1790 = vpop.permute.xlu0 %1789
    %v1792 = vsel %vm173, %v1790, 0
    %1794 = vmatprep.subr.bf16.mxu0 0
    %1795 = vmatpush1.bf16.msra.mxu0 0
    %1796 = vmatprep.subr.bf16.mxu0 0
    %1797 = vmatpush1.bf16.msra.mxu0 0
    %1798 = vmatprep.subr.bf16.mxu0 0
    %1799 = vmatpush1.bf16.msra.mxu0 0
    %1800 = vmatprep.subr.bf16.mxu0 0
    %1801 = vmatpush1.bf16.msra.mxu0 0
    %1802 = vmatprep.subr.bf16.mxu0 0
    %1803 = vmatpush1.bf16.msra.mxu0 0
    %1804 = vmatprep.subr.bf16.mxu0 0
    %1805 = vmatpush1.bf16.msra.mxu0 0
    %1806 = vmatprep.subr.bf16.mxu0 0
    %1807 = vmatpush1.bf16.msra.mxu0 %v1702
    %1808 = vmatprep.subr.bf16.mxu0 0
    %1809 = vmatpush1.bf16.msra.mxu0 %v1701
    %1810 = vmatprep.subr.bf16.mxu0 0
    %1811 = vmatpush2.bf16.msra.mxu0 0
    %1812 = vmatprep.subr.bf16.mxu0 0
    %1813 = vmatpush2.bf16.msra.mxu0 0
    %1814 = vmatprep.subr.bf16.mxu0 0
    %1815 = vmatpush2.bf16.msra.mxu0 0
    %1816 = vmatprep.subr.bf16.mxu0 0
    %1817 = vmatpush2.bf16.msra.mxu0 0
    %1818 = vmatprep.subr.bf16.mxu0 0
    %1819 = vmatpush2.bf16.msra.mxu0 0
    %1820 = vmatprep.subr.bf16.mxu0 0
    %1821 = vmatpush2.bf16.msra.mxu0 0
    %1822 = vmatprep.subr.bf16.mxu0 0
    %1823 = vmatpush2.bf16.msra.mxu0 0
    %1824 = vmatprep.subr.bf16.mxu0 0
    %1825 = vmatpush2.bf16.msra.mxu0 0
    %1826 = vmatprep.mubr.bf16.mxu0 0
    %1827 = vmatmul.mubr.bf16.gmra.mxu0 %v1792
    %v1828 = vpop.f32.mrf.mxu0
    %v1829 = vadd.f32 0.0, %v1828
    %v1830 = vpop.f32.mrf.mxu0
    %v1831 = vpop.f32.mrf.mxu0
    %v1832 = vpop.f32.mrf.mxu0
    %1833 = vdwg.mxu0
    %v1835 = vrot.slane %v1829, 6
    %v1837 = vadd.f32 %v1786, %v1835
    %v1838 = vxor.u32 %v1837, 2147483648
    %v1839 = vmul.f32 %v1838, 1.442695
    %v1840 = vpow.pop %v1839
    %v1841 = vadd.f32 %v1840, 1.0
    %v1842 = vrcp.pop %v1841
    %v1843 = vmul.f32 1.0, %v1842
    %v1844 = vtanh.pop %v1837
    %v1846 = vrot.slane %v1770, 6
    %v1848 = vmul.f32 %v1843, %v1846
    %1850 = vrot.lane.b32.xlu0 %v1844, 64
    %v1851 = vpop.permute.xlu0 %1850
    %v1853 = vmul.f32 %v1843, %v1851
    %1855 = vrot.lane.b32.xlu0 %v1853, 32
    %v1856 = vpop.permute.xlu0 %1855
    %v1858 = vadd.f32 %v1848, %v1856
    %v1859 = vtanh.pop %v1858
    %1861 = vrot.lane.b32.xlu0 %v1859, 64
    %v1862 = vpop.permute.xlu0 %1861
    %v1864 = vmul.f32 %v1843, %v1862
    %1866 = vrot.lane.b32.xlu0 %v1864, 32
    %v1867 = vpop.permute.xlu0 %1866
    %vm1869 = vcmask 257026
    %1870 = vst.msk [vmem:[#allocation2] sm:$0xc] %vm1869, %v1867
    %v1871 = vrot.slane %v1680, 4
    %v1873 = vadd.f32 %v1620, %v1871
    %v1874 = vpack.c.bf16 %v1864, %v1864
    %v1876 = vrot.slane %v1874, 1
    %1877 = vrot.lane.b32.xlu0 %v1876, 32
    %v1878 = vpop.permute.xlu0 %1877
    %v1880 = vsel %vm173, %v1878, 0
    %1882 = vmatprep.subr.bf16.mxu0 0
    %1883 = vmatpush1.bf16.msra.mxu0 0
    %1884 = vmatprep.subr.bf16.mxu0 0
    %1885 = vmatpush1.bf16.msra.mxu0 0
    %1886 = vmatprep.subr.bf16.mxu0 0
    %1887 = vmatpush1.bf16.msra.mxu0 0
    %1888 = vmatprep.subr.bf16.mxu0 0
    %1889 = vmatpush1.bf16.msra.mxu0 0
    %1890 = vmatprep.subr.bf16.mxu0 0
    %1891 = vmatpush1.bf16.msra.mxu0 0
    %1892 = vmatprep.subr.bf16.mxu0 0
    %1893 = vmatpush1.bf16.msra.mxu0 0
    %1894 = vmatprep.subr.bf16.mxu0 0
    %1895 = vmatpush1.bf16.msra.mxu0 %v1702
    %1896 = vmatprep.subr.bf16.mxu0 0
    %1897 = vmatpush1.bf16.msra.mxu0 %v1701
    %1898 = vmatprep.subr.bf16.mxu0 0
    %1899 = vmatpush2.bf16.msra.mxu0 0
    %1900 = vmatprep.subr.bf16.mxu0 0
    %1901 = vmatpush2.bf16.msra.mxu0 0
    %1902 = vmatprep.subr.bf16.mxu0 0
    %1903 = vmatpush2.bf16.msra.mxu0 0
    %1904 = vmatprep.subr.bf16.mxu0 0
    %1905 = vmatpush2.bf16.msra.mxu0 0
    %1906 = vmatprep.subr.bf16.mxu0 0
    %1907 = vmatpush2.bf16.msra.mxu0 0
    %1908 = vmatprep.subr.bf16.mxu0 0
    %1909 = vmatpush2.bf16.msra.mxu0 0
    %1910 = vmatprep.subr.bf16.mxu0 0
    %1911 = vmatpush2.bf16.msra.mxu0 0
    %1912 = vmatprep.subr.bf16.mxu0 0
    %1913 = vmatpush2.bf16.msra.mxu0 0
    %1914 = vmatprep.mubr.bf16.mxu0 0
    %1915 = vmatmul.mubr.bf16.gmra.mxu0 %v1880
    %v1916 = vpop.f32.mrf.mxu0
    %v1917 = vadd.f32 0.0, %v1916
    %v1918 = vpop.f32.mrf.mxu0
    %v1919 = vpop.f32.mrf.mxu0
    %v1920 = vpop.f32.mrf.mxu0
    %1921 = vdwg.mxu0
    %v1923 = vrot.slane %v1917, 4
    %v1925 = vadd.f32 %v1873, %v1923
    %v1926 = vxor.u32 %v1925, 2147483648
    %v1927 = vmul.f32 %v1926, 1.442695
    %v1928 = vpow.pop %v1927
    %v1929 = vadd.f32 %v1928, 1.0
    %v1930 = vrcp.pop %v1929
    %v1931 = vmul.f32 1.0, %v1930
    %v1932 = vtanh.pop %v1925
    %v1934 = vrot.slane %v1858, 6
    %v1936 = vmul.f32 %v1931, %v1934
    %1938 = vrot.lane.b32.xlu0 %v1932, 64
    %v1939 = vpop.permute.xlu0 %1938
    %v1941 = vmul.f32 %v1931, %v1939
    %1943 = vrot.lane.b32.xlu0 %v1941, 32
    %v1944 = vpop.permute.xlu0 %1943
    %v1946 = vadd.f32 %v1936, %v1944
    %v1947 = vtanh.pop %v1946
    %1949 = vrot.lane.b32.xlu0 %v1947, 64
    %v1950 = vpop.permute.xlu0 %1949
    %v1952 = vmul.f32 %v1931, %v1950
    %1954 = vrot.lane.b32.xlu0 %v1952, 32
    %v1955 = vpop.permute.xlu0 %1954
    %vm1957 = vcmask 259076
    %1958 = vst.msk [vmem:[#allocation2] sm:$0x30] %vm1957, %v1955
    %v1959 = vrot.slane %v1680, 2
    %v1961 = vadd.f32 %v1620, %v1959
    %v1962 = vpack.c.bf16 %v1952, %v1952
    %v1964 = vrot.slane %v1962, 2
    %1965 = vrot.lane.b32.xlu0 %v1964, 32
    %v1966 = vpop.permute.xlu0 %1965
    %v1968 = vsel %vm173, %v1966, 0
    %1970 = vmatprep.subr.bf16.mxu0 0
    %1971 = vmatpush1.bf16.msra.mxu0 0
    %1972 = vmatprep.subr.bf16.mxu0 0
    %1973 = vmatpush1.bf16.msra.mxu0 0
    %1974 = vmatprep.subr.bf16.mxu0 0
    %1975 = vmatpush1.bf16.msra.mxu0 0
    %1976 = vmatprep.subr.bf16.mxu0 0
    %1977 = vmatpush1.bf16.msra.mxu0 0
    %1978 = vmatprep.subr.bf16.mxu0 0
    %1979 = vmatpush1.bf16.msra.mxu0 0
    %1980 = vmatprep.subr.bf16.mxu0 0
    %1981 = vmatpush1.bf16.msra.mxu0 0
    %1982 = vmatprep.subr.bf16.mxu0 0
    %1983 = vmatpush1.bf16.msra.mxu0 %v1702
    %1984 = vmatprep.subr.bf16.mxu0 0
    %1985 = vmatpush1.bf16.msra.mxu0 %v1701
    %1986 = vmatprep.subr.bf16.mxu0 0
    %1987 = vmatpush2.bf16.msra.mxu0 0
    %1988 = vmatprep.subr.bf16.mxu0 0
    %1989 = vmatpush2.bf16.msra.mxu0 0
    %1990 = vmatprep.subr.bf16.mxu0 0
    %1991 = vmatpush2.bf16.msra.mxu0 0
    %1992 = vmatprep.subr.bf16.mxu0 0
    %1993 = vmatpush2.bf16.msra.mxu0 0
    %1994 = vmatprep.subr.bf16.mxu0 0
    %1995 = vmatpush2.bf16.msra.mxu0 0
    %1996 = vmatprep.subr.bf16.mxu0 0
    %1997 = vmatpush2.bf16.msra.mxu0 0
    %1998 = vmatprep.subr.bf16.mxu0 0
    %1999 = vmatpush2.bf16.msra.mxu0 0
    %2000 = vmatprep.subr.bf16.mxu0 0
    %2001 = vmatpush2.bf16.msra.mxu0 0
    %2002 = vmatprep.mubr.bf16.mxu0 0
    %2003 = vmatmul.mubr.bf16.gmra.mxu0 %v1968
    %v2004 = vpop.f32.mrf.mxu0
    %v2005 = vadd.f32 0.0, %v2004
    %v2006 = vpop.f32.mrf.mxu0
    %v2007 = vpop.f32.mrf.mxu0
    %v2008 = vpop.f32.mrf.mxu0
    %2009 = vdwg.mxu0
    %v2011 = vrot.slane %v2005, 2
    %v2013 = vadd.f32 %v1961, %v2011
    %v2014 = vxor.u32 %v2013, 2147483648
    %v2015 = vmul.f32 %v2014, 1.442695
    %v2016 = vpow.pop %v2015
    %v2017 = vadd.f32 %v2016, 1.0
    %v2018 = vrcp.pop %v2017
    %v2019 = vmul.f32 1.0, %v2018
    %v2020 = vtanh.pop %v2013
    %v2022 = vrot.slane %v1946, 6
    %v2024 = vmul.f32 %v2019, %v2022
    %2026 = vrot.lane.b32.xlu0 %v2020, 64
    %v2027 = vpop.permute.xlu0 %2026
    %v2029 = vmul.f32 %v2019, %v2027
    %2031 = vrot.lane.b32.xlu0 %v2029, 32
    %v2032 = vpop.permute.xlu0 %2031
    %v2034 = vadd.f32 %v2024, %v2032
    %v2035 = vtanh.pop %v2034
    %2037 = vrot.lane.b32.xlu0 %v2035, 64
    %v2038 = vpop.permute.xlu0 %2037
    %v2040 = vmul.f32 %v2019, %v2038
    %2042 = vrot.lane.b32.xlu0 %v2040, 32
    %v2043 = vpop.permute.xlu0 %2042
    %vm2045 = vcmask 261126
    %2046 = vst.msk [vmem:[#allocation2] sm:$0xc0] %vm2045, %v2043
    %v2047 = vadd.f32 %v1623, %v1680
    %v2048 = vpack.c.bf16 %v2040, %v2040
    %v2050 = vrot.slane %v2048, 3
    %2051 = vrot.lane.b32.xlu0 %v2050, 32
    %v2052 = vpop.permute.xlu0 %2051
    %v2054 = vsel %vm173, %v2052, 0
    %2056 = vmatprep.subr.bf16.mxu0 0
    %2057 = vmatpush1.bf16.msra.mxu0 0
    %2058 = vmatprep.subr.bf16.mxu0 0
    %2059 = vmatpush1.bf16.msra.mxu0 0
    %2060 = vmatprep.subr.bf16.mxu0 0
    %2061 = vmatpush1.bf16.msra.mxu0 0
    %2062 = vmatprep.subr.bf16.mxu0 0
    %2063 = vmatpush1.bf16.msra.mxu0 0
    %2064 = vmatprep.subr.bf16.mxu0 0
    %2065 = vmatpush1.bf16.msra.mxu0 0
    %2066 = vmatprep.subr.bf16.mxu0 0
    %2067 = vmatpush1.bf16.msra.mxu0 0
    %2068 = vmatprep.subr.bf16.mxu0 0
    %2069 = vmatpush1.bf16.msra.mxu0 %v1702
    %2070 = vmatprep.subr.bf16.mxu0 0
    %2071 = vmatpush1.bf16.msra.mxu0 %v1701
    %2072 = vmatprep.subr.bf16.mxu0 0
    %2073 = vmatpush2.bf16.msra.mxu0 0
    %2074 = vmatprep.subr.bf16.mxu0 0
    %2075 = vmatpush2.bf16.msra.mxu0 0
    %2076 = vmatprep.subr.bf16.mxu0 0
    %2077 = vmatpush2.bf16.msra.mxu0 0
    %2078 = vmatprep.subr.bf16.mxu0 0
    %2079 = vmatpush2.bf16.msra.mxu0 0
    %2080 = vmatprep.subr.bf16.mxu0 0
    %2081 = vmatpush2.bf16.msra.mxu0 0
    %2082 = vmatprep.subr.bf16.mxu0 0
    %2083 = vmatpush2.bf16.msra.mxu0 0
    %2084 = vmatprep.subr.bf16.mxu0 0
    %2085 = vmatpush2.bf16.msra.mxu0 0
    %2086 = vmatprep.subr.bf16.mxu0 0
    %2087 = vmatpush2.bf16.msra.mxu0 0
    %2088 = vmatprep.mubr.bf16.mxu0 0
    %2089 = vmatmul.mubr.bf16.gmra.mxu0 %v2054
    %v2090 = vpop.f32.mrf.mxu0
    %v2091 = vadd.f32 0.0, %v2090
    %v2092 = vpop.f32.mrf.mxu0
    %v2093 = vpop.f32.mrf.mxu0
    %v2094 = vpop.f32.mrf.mxu0
    %2095 = vdwg.mxu0
    %v2096 = vadd.f32 %v2047, %v2091
    %v2097 = vxor.u32 %v2096, 2147483648
    %v2098 = vmul.f32 %v2097, 1.442695
    %v2099 = vpow.pop %v2098
    %v2100 = vadd.f32 %v2099, 1.0
    %v2101 = vrcp.pop %v2100
    %v2102 = vmul.f32 1.0, %v2101
    %v2103 = vtanh.pop %v2096
    %v2105 = vrot.slane %v2034, 6
    %v2107 = vmul.f32 %v2102, %v2105
    %2109 = vrot.lane.b32.xlu0 %v2103, 64
    %v2110 = vpop.permute.xlu0 %2109
    %v2112 = vmul.f32 %v2102, %v2110
    %2114 = vrot.lane.b32.xlu0 %v2112, 32
    %v2115 = vpop.permute.xlu0 %2114
    %v2117 = vadd.f32 %v2107, %v2115
    %v2118 = vtanh.pop %v2117
    %2120 = vrot.lane.b32.xlu0 %v2118, 64
    %v2121 = vpop.permute.xlu0 %2120
    %v2123 = vmul.f32 %v2102, %v2121
    %2125 = vrot.lane.b32.xlu0 %v2123, 32
    %v2126 = vpop.permute.xlu0 %2125
    %2128 = vst.msk [vmem:[#allocation2 + $0x8] sm:$0x3] %vm1781, %v2126
    %v2129 = vadd.f32 %v1623, %v1784
    %v2130 = vpack.c.bf16 %v2123, %v2123
    %2132 = vrot.lane.b32.xlu0 %v2130, 32
    %v2133 = vpop.permute.xlu0 %2132
    %v2135 = vsel %vm173, %v2133, 0
    %2137 = vmatprep.subr.bf16.mxu0 0
    %2138 = vmatpush1.bf16.msra.mxu0 0
    %2139 = vmatprep.subr.bf16.mxu0 0
    %2140 = vmatpush1.bf16.msra.mxu0 0
    %2141 = vmatprep.subr.bf16.mxu0 0
    %2142 = vmatpush1.bf16.msra.mxu0 0
    %2143 = vmatprep.subr.bf16.mxu0 0
    %2144 = vmatpush1.bf16.msra.mxu0 0
    %2145 = vmatprep.subr.bf16.mxu0 0
    %2146 = vmatpush1.bf16.msra.mxu0 0
    %2147 = vmatprep.subr.bf16.mxu0 0
    %2148 = vmatpush1.bf16.msra.mxu0 0
    %2149 = vmatprep.subr.bf16.mxu0 0
    %2150 = vmatpush1.bf16.msra.mxu0 %v1702
    %2151 = vmatprep.subr.bf16.mxu0 0
    %2152 = vmatpush1.bf16.msra.mxu0 %v1701
    %2153 = vmatprep.subr.bf16.mxu0 0
    %2154 = vmatpush2.bf16.msra.mxu0 0
    %2155 = vmatprep.subr.bf16.mxu0 0
    %2156 = vmatpush2.bf16.msra.mxu0 0
    %2157 = vmatprep.subr.bf16.mxu0 0
    %2158 = vmatpush2.bf16.msra.mxu0 0
    %2159 = vmatprep.subr.bf16.mxu0 0
    %2160 = vmatpush2.bf16.msra.mxu0 0
    %2161 = vmatprep.subr.bf16.mxu0 0
    %2162 = vmatpush2.bf16.msra.mxu0 0
    %2163 = vmatprep.subr.bf16.mxu0 0
    %2164 = vmatpush2.bf16.msra.mxu0 0
    %2165 = vmatprep.subr.bf16.mxu0 0
    %2166 = vmatpush2.bf16.msra.mxu0 0
    %2167 = vmatprep.subr.bf16.mxu0 0
    %2168 = vmatpush2.bf16.msra.mxu0 0
    %2169 = vmatprep.mubr.bf16.mxu0 0
    %2170 = vmatmul.mubr.bf16.gmra.mxu0 %v2135
    %v2171 = vpop.f32.mrf.mxu0
    %v2172 = vadd.f32 0.0, %v2171
    %v2173 = vpop.f32.mrf.mxu0
    %v2174 = vpop.f32.mrf.mxu0
    %v2175 = vpop.f32.mrf.mxu0
    %2176 = vdwg.mxu0
    %v2178 = vrot.slane %v2172, 6
    %v2180 = vadd.f32 %v2129, %v2178
    %v2181 = vxor.u32 %v2180, 2147483648
    %v2182 = vmul.f32 %v2181, 1.442695
    %v2183 = vpow.pop %v2182
    %v2184 = vadd.f32 %v2183, 1.0
    %v2185 = vrcp.pop %v2184
    %v2186 = vmul.f32 1.0, %v2185
    %v2187 = vtanh.pop %v2180
    %v2189 = vrot.slane %v2117, 6
    %v2191 = vmul.f32 %v2186, %v2189
    %2193 = vrot.lane.b32.xlu0 %v2187, 64
    %v2194 = vpop.permute.xlu0 %2193
    %v2196 = vmul.f32 %v2186, %v2194
    %2198 = vrot.lane.b32.xlu0 %v2196, 32
    %v2199 = vpop.permute.xlu0 %2198
    %v2201 = vadd.f32 %v2191, %v2199
    %v2202 = vtanh.pop %v2201
    %2204 = vrot.lane.b32.xlu0 %v2202, 64
    %v2205 = vpop.permute.xlu0 %2204
    %v2207 = vmul.f32 %v2186, %v2205
    %2209 = vrot.lane.b32.xlu0 %v2207, 32
    %v2210 = vpop.permute.xlu0 %2209
    %2212 = vst.msk [vmem:[#allocation2 + $0x8] sm:$0xc] %vm1869, %v2210
    %v2213 = vadd.f32 %v1623, %v1871
    %v2214 = vpack.c.bf16 %v2207, %v2207
    %v2216 = vrot.slane %v2214, 1
    %2217 = vrot.lane.b32.xlu0 %v2216, 32
    %v2218 = vpop.permute.xlu0 %2217
    %v2220 = vsel %vm173, %v2218, 0
    %2222 = vmatprep.subr.bf16.mxu0 0
    %2223 = vmatpush1.bf16.msra.mxu0 0
    %2224 = vmatprep.subr.bf16.mxu0 0
    %2225 = vmatpush1.bf16.msra.mxu0 0
    %2226 = vmatprep.subr.bf16.mxu0 0
    %2227 = vmatpush1.bf16.msra.mxu0 0
    %2228 = vmatprep.subr.bf16.mxu0 0
    %2229 = vmatpush1.bf16.msra.mxu0 0
    %2230 = vmatprep.subr.bf16.mxu0 0
    %2231 = vmatpush1.bf16.msra.mxu0 0
    %2232 = vmatprep.subr.bf16.mxu0 0
    %2233 = vmatpush1.bf16.msra.mxu0 0
    %2234 = vmatprep.subr.bf16.mxu0 0
    %2235 = vmatpush1.bf16.msra.mxu0 %v1702
    %2236 = vmatprep.subr.bf16.mxu0 0
    %2237 = vmatpush1.bf16.msra.mxu0 %v1701
    %2238 = vmatprep.subr.bf16.mxu0 0
    %2239 = vmatpush2.bf16.msra.mxu0 0
    %2240 = vmatprep.subr.bf16.mxu0 0
    %2241 = vmatpush2.bf16.msra.mxu0 0
    %2242 = vmatprep.subr.bf16.mxu0 0
    %2243 = vmatpush2.bf16.msra.mxu0 0
    %2244 = vmatprep.subr.bf16.mxu0 0
    %2245 = vmatpush2.bf16.msra.mxu0 0
    %2246 = vmatprep.subr.bf16.mxu0 0
    %2247 = vmatpush2.bf16.msra.mxu0 0
    %2248 = vmatprep.subr.bf16.mxu0 0
    %2249 = vmatpush2.bf16.msra.mxu0 0
    %2250 = vmatprep.subr.bf16.mxu0 0
    %2251 = vmatpush2.bf16.msra.mxu0 0
    %2252 = vmatprep.subr.bf16.mxu0 0
    %2253 = vmatpush2.bf16.msra.mxu0 0
    %2254 = vmatprep.mubr.bf16.mxu0 0
    %2255 = vmatmul.mubr.bf16.gmra.mxu0 %v2220
    %v2256 = vpop.f32.mrf.mxu0
    %v2257 = vadd.f32 0.0, %v2256
    %v2258 = vpop.f32.mrf.mxu0
    %v2259 = vpop.f32.mrf.mxu0
    %v2260 = vpop.f32.mrf.mxu0
    %2261 = vdwg.mxu0
    %v2263 = vrot.slane %v2257, 4
    %v2265 = vadd.f32 %v2213, %v2263
    %v2266 = vxor.u32 %v2265, 2147483648
    %v2267 = vmul.f32 %v2266, 1.442695
    %v2268 = vpow.pop %v2267
    %v2269 = vadd.f32 %v2268, 1.0
    %v2270 = vrcp.pop %v2269
    %v2271 = vmul.f32 1.0, %v2270
    %v2272 = vtanh.pop %v2265
    %v2274 = vrot.slane %v2201, 6
    %v2276 = vmul.f32 %v2271, %v2274
    %2278 = vrot.lane.b32.xlu0 %v2272, 64
    %v2279 = vpop.permute.xlu0 %2278
    %v2281 = vmul.f32 %v2271, %v2279
    %2283 = vrot.lane.b32.xlu0 %v2281, 32
    %v2284 = vpop.permute.xlu0 %2283
    %v2286 = vadd.f32 %v2276, %v2284
    %v2287 = vtanh.pop %v2286
    %2289 = vrot.lane.b32.xlu0 %v2287, 64
    %v2290 = vpop.permute.xlu0 %2289
    %v2292 = vmul.f32 %v2271, %v2290
    %2294 = vrot.lane.b32.xlu0 %v2292, 32
    %v2295 = vpop.permute.xlu0 %2294
    %2297 = vst.msk [vmem:[#allocation2 + $0x8] sm:$0x30] %vm1957, %v2295
    %v2298 = vadd.f32 %v1623, %v1959
    %v2299 = vpack.c.bf16 %v2292, %v2292
    %v2301 = vrot.slane %v2299, 2
    %2302 = vrot.lane.b32.xlu0 %v2301, 32
    %v2303 = vpop.permute.xlu0 %2302
    %v2305 = vsel %vm173, %v2303, 0
    %2307 = vmatprep.subr.bf16.mxu0 0
    %2308 = vmatpush1.bf16.msra.mxu0 0
    %2309 = vmatprep.subr.bf16.mxu0 0
    %2310 = vmatpush1.bf16.msra.mxu0 0
    %2311 = vmatprep.subr.bf16.mxu0 0
    %2312 = vmatpush1.bf16.msra.mxu0 0
    %2313 = vmatprep.subr.bf16.mxu0 0
    %2314 = vmatpush1.bf16.msra.mxu0 0
    %2315 = vmatprep.subr.bf16.mxu0 0
    %2316 = vmatpush1.bf16.msra.mxu0 0
    %2317 = vmatprep.subr.bf16.mxu0 0
    %2318 = vmatpush1.bf16.msra.mxu0 0
    %2319 = vmatprep.subr.bf16.mxu0 0
    %2320 = vmatpush1.bf16.msra.mxu0 %v1702
    %2321 = vmatprep.subr.bf16.mxu0 0
    %2322 = vmatpush1.bf16.msra.mxu0 %v1701
    %2323 = vmatprep.subr.bf16.mxu0 0
    %2324 = vmatpush2.bf16.msra.mxu0 0
    %2325 = vmatprep.subr.bf16.mxu0 0
    %2326 = vmatpush2.bf16.msra.mxu0 0
    %2327 = vmatprep.subr.bf16.mxu0 0
    %2328 = vmatpush2.bf16.msra.mxu0 0
    %2329 = vmatprep.subr.bf16.mxu0 0
    %2330 = vmatpush2.bf16.msra.mxu0 0
    %2331 = vmatprep.subr.bf16.mxu0 0
    %2332 = vmatpush2.bf16.msra.mxu0 0
    %2333 = vmatprep.subr.bf16.mxu0 0
    %2334 = vmatpush2.bf16.msra.mxu0 0
    %2335 = vmatprep.subr.bf16.mxu0 0
    %2336 = vmatpush2.bf16.msra.mxu0 0
    %2337 = vmatprep.subr.bf16.mxu0 0
    %2338 = vmatpush2.bf16.msra.mxu0 0
    %2339 = vmatprep.mubr.bf16.mxu0 0
    %2340 = vmatmul.mubr.bf16.gmra.mxu0 %v2305
    %v2341 = vpop.f32.mrf.mxu0
    %v2342 = vadd.f32 0.0, %v2341
    %v2343 = vpop.f32.mrf.mxu0
    %v2344 = vpop.f32.mrf.mxu0
    %v2345 = vpop.f32.mrf.mxu0
    %2346 = vdwg.mxu0
    %v2348 = vrot.slane %v2342, 2
    %v2350 = vadd.f32 %v2298, %v2348
    %v2351 = vxor.u32 %v2350, 2147483648
    %v2352 = vmul.f32 %v2351, 1.442695
    %v2353 = vpow.pop %v2352
    %v2354 = vadd.f32 %v2353, 1.0
    %v2355 = vrcp.pop %v2354
    %v2356 = vmul.f32 1.0, %v2355
    %v2357 = vtanh.pop %v2350
    %v2359 = vrot.slane %v2286, 6
    %v2361 = vmul.f32 %v2356, %v2359
    %2363 = vrot.lane.b32.xlu0 %v2357, 64
    %v2364 = vpop.permute.xlu0 %2363
    %v2366 = vmul.f32 %v2356, %v2364
    %2368 = vrot.lane.b32.xlu0 %v2366, 32
    %v2369 = vpop.permute.xlu0 %2368
    %v2371 = vadd.f32 %v2361, %v2369
    %v2372 = vtanh.pop %v2371
    %2374 = vrot.lane.b32.xlu0 %v2372, 64
    %v2375 = vpop.permute.xlu0 %2374
    %v2377 = vmul.f32 %v2356, %v2375
    %2379 = vrot.lane.b32.xlu0 %v2377, 32
    %v2380 = vpop.permute.xlu0 %2379
    %2382 = vst.msk [vmem:[#allocation2 + $0x8] sm:$0xc0] %vm2045, %v2380
    %v2383 = vadd.f32 %v1628, %v1680
    %v2384 = vpack.c.bf16 %v2377, %v2377
    %v2386 = vrot.slane %v2384, 3
    %2387 = vrot.lane.b32.xlu0 %v2386, 32
    %v2388 = vpop.permute.xlu0 %2387
    %v2390 = vsel %vm173, %v2388, 0
    %2392 = vmatprep.subr.bf16.mxu0 0
    %2393 = vmatpush1.bf16.msra.mxu0 0
    %2394 = vmatprep.subr.bf16.mxu0 0
    %2395 = vmatpush1.bf16.msra.mxu0 0
    %2396 = vmatprep.subr.bf16.mxu0 0
    %2397 = vmatpush1.bf16.msra.mxu0 0
    %2398 = vmatprep.subr.bf16.mxu0 0
    %2399 = vmatpush1.bf16.msra.mxu0 0
    %2400 = vmatprep.subr.bf16.mxu0 0
    %2401 = vmatpush1.bf16.msra.mxu0 0
    %2402 = vmatprep.subr.bf16.mxu0 0
    %2403 = vmatpush1.bf16.msra.mxu0 0
    %2404 = vmatprep.subr.bf16.mxu0 0
    %2405 = vmatpush1.bf16.msra.mxu0 %v1702
    %2406 = vmatprep.subr.bf16.mxu0 0
    %2407 = vmatpush1.bf16.msra.mxu0 %v1701
    %2408 = vmatprep.subr.bf16.mxu0 0
    %2409 = vmatpush2.bf16.msra.mxu0 0
    %2410 = vmatprep.subr.bf16.mxu0 0
    %2411 = vmatpush2.bf16.msra.mxu0 0
    %2412 = vmatprep.subr.bf16.mxu0 0
    %2413 = vmatpush2.bf16.msra.mxu0 0
    %2414 = vmatprep.subr.bf16.mxu0 0
    %2415 = vmatpush2.bf16.msra.mxu0 0
    %2416 = vmatprep.subr.bf16.mxu0 0
    %2417 = vmatpush2.bf16.msra.mxu0 0
    %2418 = vmatprep.subr.bf16.mxu0 0
    %2419 = vmatpush2.bf16.msra.mxu0 0
    %2420 = vmatprep.subr.bf16.mxu0 0
    %2421 = vmatpush2.bf16.msra.mxu0 0
    %2422 = vmatprep.subr.bf16.mxu0 0
    %2423 = vmatpush2.bf16.msra.mxu0 0
    %2424 = vmatprep.mubr.bf16.mxu0 0
    %2425 = vmatmul.mubr.bf16.gmra.mxu0 %v2390
    %v2426 = vpop.f32.mrf.mxu0
    %v2427 = vadd.f32 0.0, %v2426
    %v2428 = vpop.f32.mrf.mxu0
    %v2429 = vpop.f32.mrf.mxu0
    %v2430 = vpop.f32.mrf.mxu0
    %2431 = vdwg.mxu0
    %v2432 = vadd.f32 %v2383, %v2427
    %v2433 = vxor.u32 %v2432, 2147483648
    %v2434 = vmul.f32 %v2433, 1.442695
    %v2435 = vpow.pop %v2434
    %v2436 = vadd.f32 %v2435, 1.0
    %v2437 = vrcp.pop %v2436
    %v2438 = vmul.f32 1.0, %v2437
    %v2439 = vtanh.pop %v2432
    %v2441 = vrot.slane %v2371, 6
    %v2443 = vmul.f32 %v2438, %v2441
    %2445 = vrot.lane.b32.xlu0 %v2439, 64
    %v2446 = vpop.permute.xlu0 %2445
    %v2448 = vmul.f32 %v2438, %v2446
    %2450 = vrot.lane.b32.xlu0 %v2448, 32
    %v2451 = vpop.permute.xlu0 %2450
    %v2453 = vadd.f32 %v2443, %v2451
    %v2454 = vtanh.pop %v2453
    %2456 = vrot.lane.b32.xlu0 %v2454, 64
    %v2457 = vpop.permute.xlu0 %2456
    %v2459 = vmul.f32 %v2438, %v2457
    %2461 = vrot.lane.b32.xlu0 %v2459, 32
    %v2462 = vpop.permute.xlu0 %2461
    %2464 = vst.msk [vmem:[#allocation2 + $0x10] sm:$0x3] %vm1781, %v2462
    %2465 = vst.msk [vmem:[#allocation3] sm:$0x3] %vm1781, %v2462
    %2467 = vrot.lane.b32.xlu0 %v2453, 96
    %v2468 = vpop.permute.xlu0 %2467
    %2470 = vst.msk [vmem:[#allocation5] sm:$0x3] %vm1781, %v2468
    %v2471 = vld [vmem:[#allocation2] sm:$0xff]
    %v2472 = vld [vmem:[#allocation2 + $0x8] sm:$0xff]
    %v2473 = vld [vmem:[#allocation2 + $0x10] sm:$0x3]
    %v2474 = vpack.c.bf16 %v2472, %v2471
    %v2475 = vpack.c.bf16 %v2473, %v2473
    %v2476 = vld [vmem:[%s15] sm:$0xf]
    %v2477 = vld [vmem:[%s15 + $0x4] sm:$0xf]
    %v2478 = vld [vmem:[%s15 + $0x8] sm:$0xf]
    %v2479 = vld [vmem:[%s15 + $0xc] sm:$0xf]
    %v2480 = vld [vmem:[%s16] sm:$0x1]
    %v2482 = vlaneseq
    %v2483 = vshrl.u32 %v2482, 7
    %v2484 = vsub.s32 0, %v2483
    %v2485 = vrot.slane %v2480, %v2484
    %v2491 = vunpack.c.l.b16 %v2476
    %v2492 = vunpack.c.l.b16 %v2477
    %v2493 = vunpack.c.l.b16 %v2478
    %v2494 = vunpack.c.l.b16 %v2479
    %v2495 = vpack.c.b16 %v2492, %v2491
    %v2496 = vpack.c.b16 %v2494, %v2493
    %v2500 = vsel %vm173, %v2474, 0
    %v2503 = vsel %vm173, %v2475, 0
    %2505 = vmatprep.subr.bf16.mxu0 0
    %2506 = vmatpush1.bf16.msra.mxu0 0
    %2507 = vmatprep.subr.bf16.mxu0 0
    %2508 = vmatpush1.bf16.msra.mxu0 0
    %2509 = vmatprep.subr.bf16.mxu0 0
    %2510 = vmatpush1.bf16.msra.mxu0 0
    %2511 = vmatprep.subr.bf16.mxu0 0
    %2512 = vmatpush1.bf16.msra.mxu0 0
    %2513 = vmatprep.subr.bf16.mxu0 0
    %2514 = vmatpush1.bf16.msra.mxu0 0
    %2515 = vmatprep.subr.bf16.mxu0 0
    %2516 = vmatpush1.bf16.msra.mxu0 0
    %2517 = vmatprep.subr.bf16.mxu0 0
    %2518 = vmatpush1.bf16.msra.mxu0 %v2496
    %2519 = vmatprep.subr.bf16.mxu0 0
    %2520 = vmatpush1.bf16.msra.mxu0 %v2495
    %2521 = vmatprep.subr.bf16.mxu0 0
    %2522 = vmatpush2.bf16.msra.mxu0 0
    %2523 = vmatprep.subr.bf16.mxu0 0
    %2524 = vmatpush2.bf16.msra.mxu0 0
    %2525 = vmatprep.subr.bf16.mxu0 0
    %2526 = vmatpush2.bf16.msra.mxu0 0
    %2527 = vmatprep.subr.bf16.mxu0 0
    %2528 = vmatpush2.bf16.msra.mxu0 0
    %2529 = vmatprep.subr.bf16.mxu0 0
    %2530 = vmatpush2.bf16.msra.mxu0 0
    %2531 = vmatprep.subr.bf16.mxu0 0
    %2532 = vmatpush2.bf16.msra.mxu0 0
    %2533 = vmatprep.subr.bf16.mxu0 0
    %2534 = vmatpush2.bf16.msra.mxu0 0
    %2535 = vmatprep.subr.bf16.mxu0 0
    %2536 = vmatpush2.bf16.msra.mxu0 0
    %2537 = vmatprep.mubr.bf16.mxu0 0
    %2538 = vmatmul.mubr.bf16.gmra.mxu0 %v2500
    %v2539 = vpop.f32.mrf.mxu0
    %v2540 = vadd.f32 %v2485, %v2539
    %v2541 = vpop.f32.mrf.mxu0
    %v2542 = vpop.f32.mrf.mxu0
    %v2543 = vadd.f32 %v2485, %v2542
    %v2544 = vpop.f32.mrf.mxu0
    %2545 = vmatprep.mubr.bf16.mxu0 0
    %2546 = vmatmul.mubr.bf16.gmra.mxu0 %v2503
    %v2547 = vpop.f32.mrf.mxu0
    %v2548 = vadd.f32 %v2485, %v2547
    %v2549 = vpop.f32.mrf.mxu0
    %v2550 = vpop.f32.mrf.mxu0
    %v2551 = vpop.f32.mrf.mxu0
    %2552 = vdwg.mxu0
    %2553 = vst [vmem:[%s17] sm:$0xff] %v2540
    %2554 = vst [vmem:[%s17 + $0x8] sm:$0xff] %v2543
    %2555 = vst [vmem:[%s17 + $0x10] sm:$0x3] %v2548
    // Predicated region
    $region70: #{rvae_forward.1} parent=1 // pred_check
      _
    $region71: #{rvae_forward.1} parent=1 // pred_check_branch
      %2557 = sbr.rel (0) target = $region73
    $region72: #{rvae_forward.1} parent=1 // pred_region
      _
    $region73: #{rvae_forward.1} parent=1 // pred_fallthru
      _
    // Predicated region
    $region74: #{rvae_forward.1} parent=1 // pred_check
      _
    $region75: #{rvae_forward.1} parent=1 // pred_check_branch
      %2559 = sbr.rel (0) target = $region77
    $region76: #{rvae_forward.1} parent=1 // pred_region
      %s2561 = ssub.s32 32, 32
      %2562 = vsyncadd [#allocation4], %s2561
      %s2564 = sshll.u32 [#allocation3], 4
      %s2565 = int_to_ptr.vmem [resolvable:$true] %s2564
      %2567 = dma.vmem_to_hbm [thread:$0]  %s2565, 32, %s18, [#allocation4]
    $region77: #{rvae_forward.1} parent=1 // pred_fallthru
      _
    // Predicated region
    $region78: #{rvae_forward.1} parent=1 // pred_check
      _
    $region79: #{rvae_forward.1} parent=1 // pred_check_branch
      %2569 = sbr.rel (0) target = $region81
    $region80: #{rvae_forward.1} parent=1 // pred_region
      %s2571 = ssub.s32 32, 32
      %2572 = vsyncadd [#allocation6], %s2571
      %s2574 = sshll.u32 [#allocation5], 4
      %s2575 = int_to_ptr.vmem [resolvable:$true] %s2574
      %2577 = dma.vmem_to_hbm [thread:$0]  %s2575, 32, %s19, [#allocation6]
    $region81: #{rvae_forward.1} parent=1 // pred_fallthru
      _
    // Predicated region
    $region82: #{rvae_forward.1} parent=1 // pred_check
      _
    $region83: #{rvae_forward.1} parent=1 // pred_check_branch
      %2579 = sbr.rel (0) target = $region85
    $region84: #{rvae_forward.1} parent=1 // pred_region
      %s2581 = ssub.s32 16, 16
      %2582 = vsyncadd [#allocation6], %s2581
      %s2584 = sshll.u32 [#allocation7], 4
      %s2585 = int_to_ptr.vmem [resolvable:$true] %s2584
      %2587 = dma.vmem_to_hbm [thread:$0]  %s2585, 16, %s20, [#allocation6]
    $region85: #{rvae_forward.1} parent=1 // pred_fallthru
      _
    // Predicated region
    $region86: #{rvae_forward.1} parent=1 // pred_check
      _
    $region87: #{rvae_forward.1} parent=1 // pred_check_branch
      %2589 = sbr.rel (0) target = $region89
    $region88: #{rvae_forward.1} parent=1 // pred_region
      %s2591 = ssub.s32 32, 32
      %2592 = vsyncadd [#allocation9], %s2591
      %s2594 = sshll.u32 [#allocation8], 4
      %s2595 = int_to_ptr.vmem [resolvable:$true] %s2594
      %2597 = dma.vmem_to_hbm [thread:$0]  %s2595, 32, %s21, [#allocation9]
    $region89: #{rvae_forward.1} parent=1 // pred_fallthru
      _
    // Predicated region
    $region90: #{rvae_forward.1} parent=1 // pred_check
      _
    $region91: #{rvae_forward.1} parent=1 // pred_check_branch
      %2599 = sbr.rel (0) target = $region93
    $region92: #{rvae_forward.1} parent=1 // pred_region
      _
    $region93: #{rvae_forward.1} parent=1 // pred_fallthru
      _
    // Predicated region
    $region94: #{rvae_forward.1} parent=1 // pred_check
      _
    $region95: #{rvae_forward.1} parent=1 // pred_check_branch
      %2601 = sbr.rel (0) target = $region97
    $region96: #{rvae_forward.1} parent=1 // pred_region
      %2602 = dma.done [#allocation4], 32
    $region97: #{rvae_forward.1} parent=1 // pred_fallthru
      _
    // Predicated region
    $region98: #{rvae_forward.1} parent=1 // pred_check
      _
    $region99: #{rvae_forward.1} parent=1 // pred_check_branch
      %2604 = sbr.rel (0) target = $region101
    $region100: #{rvae_forward.1} parent=1 // pred_region
      %2605 = dma.done [#allocation6], 32
    $region101: #{rvae_forward.1} parent=1 // pred_fallthru
      _
    // Predicated region
    $region102: #{rvae_forward.1} parent=1 // pred_check
      _
    $region103: #{rvae_forward.1} parent=1 // pred_check_branch
      %2607 = sbr.rel (0) target = $region105
    $region104: #{rvae_forward.1} parent=1 // pred_region
      %2608 = dma.done [#allocation6], 16
    $region105: #{rvae_forward.1} parent=1 // pred_fallthru
      _
    // Predicated region
    $region106: #{rvae_forward.1} parent=1 // pred_check
      _
    $region107: #{rvae_forward.1} parent=1 // pred_check_branch
      %2610 = sbr.rel (0) target = $region109
    $region108: #{rvae_forward.1} parent=1 // pred_region
      %2611 = dma.done [#allocation9], 32
    $region109: #{rvae_forward.1} parent=1 // pred_fallthru
      _
    %2612 = vsyncpa [#allocation4], 1
    %2613 = vsyncpa [#allocation6], 1
    %2614 = vsyncpa [#allocation9], 1

</llo_original>
